<compile_context>
chip_gen: v7x
topology: tpu7x:2x2x1
jax: 0.10.0
libtpu: 0.0.40
codegen_flags: <defaults>
</compile_context>

<pallas_src>
import functools
import numpy as np

import jax
import jax.numpy as jnp
from jax import lax
from jax.experimental import pallas as pl
from jax.experimental.pallas import tpu as pltpu

EPS = 1e-5  # PyTorch GroupNorm default eps


# ----------------------------- Pallas kernel ------------------------------ #
def _residual_block_kernel(
    has_proj, W, HW, gsize_in, gsize_out,
    x_ref,                # (1, Cin, HW)   channels on sublanes, H*W on lanes
    ce1_ref,              # (1, Cout, 1)   cond embedding + conv1 bias (this batch)
    masks_ref,            # (9, 1, HW)     3x3 tap validity masks (center row = ones)
    g1_ref, b1_ref,       # (Cin, 1)       groupnorm1 gamma/beta
    w1_ref,               # (9, Cout, Cin)
    g2_ref, b2_ref,       # (Cout, 1)
    w2_ref, cb2_ref,      # (9, Cout, Cout), (Cout, 1)
    G1_ref, G1t_ref,      # (Cin, nG), (nG, Cin)   group one-hot / transpose
    G2_ref, G2t_ref,      # (Cout, nG), (nG, Cout)
    *rest,                # [scw (Cout, Cin), scb (Cout, 1)] if has_proj, then o_ref
):
    if has_proj:
        scw_ref, scb_ref, o_ref = rest
    else:
        (o_ref,) = rest

    x = x_ref[0].astype(jnp.float32)                       # (Cin, HW)

    # Flattened offsets of the 9 conv taps (row-major over dy, dx).
    taps = [dy * W + dx for dy in (-1, 0, 1) for dx in (-1, 0, 1)]

    def group_norm_swish(v, Gt_ref, G_ref, gamma_ref, beta_ref, n_per_group):
        # Two-pass GroupNorm (biased variance, eps=1e-5), stats in f32; Swish.
        s = jnp.sum(v, axis=1, keepdims=True)                              # (C, 1)
        mean_g = jnp.dot(Gt_ref[...], s,
                         preferred_element_type=jnp.float32) / n_per_group  # (nG, 1)
        mean_c = jnp.dot(G_ref[...], mean_g,
                         preferred_element_type=jnp.float32)               # (C, 1)
        d = v - mean_c
        ss = jnp.sum(d * d, axis=1, keepdims=True)                         # (C, 1)
        var_g = jnp.dot(Gt_ref[...], ss,
                        preferred_element_type=jnp.float32) / n_per_group  # (nG, 1)
        var_c = jnp.dot(G_ref[...], var_g,
                        preferred_element_type=jnp.float32)                # (C, 1)
        scale_c = lax.rsqrt(var_c + EPS) * gamma_ref[...]                  # fold gamma
        y = d * scale_c + beta_ref[...]
        return y * jax.nn.sigmoid(y)                                       # Swish

    def conv3x3(a, w_ref):
        # y[o, p] = sum_t sum_c w[t, o, c] * a[c, p + tap_t]  (zero padding via mask)
        cout, cin = w_ref.shape[1], w_ref.shape[2]
        mask_output = cout < cin   # apply the per-tap mask on the cheaper side
        acc = jnp.zeros((cout, HW), jnp.float32)
        for t in range(9):
            k = taps[t]
            shifted = a if k == 0 else pltpu.roll(a, shift=(-k) % HW, axis=1)
            if t == 4:                                       # center tap: always valid
                acc = acc + jnp.dot(w_ref[t], shifted,
                                    preferred_element_type=jnp.float32)
            elif mask_output:
                acc = acc + masks_ref[t] * jnp.dot(w_ref[t], shifted,
                                                   preferred_element_type=jnp.float32)
            else:
                acc = acc + jnp.dot(w_ref[t], masks_ref[t] * shifted,
                                    preferred_element_type=jnp.float32)
        return acc                                           # (Cout, HW)

    # h = conv1(act1(norm1(x))) ; bias1 + cond_emb(cond) folded into ce1
    h = conv3x3(group_norm_swish(x, G1t_ref, G1_ref, g1_ref, b1_ref,
                                 float(HW * gsize_in)), w1_ref)
    h = h + ce1_ref[0]
    # h = conv2(act2(norm2(h))) + bias2
    h = conv3x3(group_norm_swish(h, G2t_ref, G2_ref, g2_ref, b2_ref,
                                 float(HW * gsize_out)), w2_ref)
    h = h + cb2_ref[...]

    # + shortcut(x): 1x1 projection only when Cin != Cout (static branch).
    if has_proj:
        sc = jnp.dot(scw_ref[...], x,
                     preferred_element_type=jnp.float32) + scb_ref[...]
    else:
        sc = x
    o_ref[0] = (h + sc).astype(o_ref.dtype)


# ------------------------------- wrapper ----------------------------------- #
def residual_block_pallas(x_nchw, cond, params, *, n_groups):
    B, c_in, H, W = x_nchw.shape
    c_out = params["conv1_w"].shape[0]
    HW = H * W
    if c_in % n_groups or c_out % n_groups:
        raise ValueError("channel counts must be divisible by n_groups")

    # NCHW -> (B, C, H*W): channels on sublanes, spatial on lanes (pure reshape).
    x2 = x_nchw.reshape(B, c_in, HW)

    # Conv weights as 9 taps of (Cout, Cin) / (Cout, Cout).
    w1 = jnp.transpose(params["conv1_w"], (2, 3, 0, 1)).reshape(9, c_out, c_in)
    w2 = jnp.transpose(params["conv2_w"], (2, 3, 0, 1)).reshape(9, c_out, c_out)

    # cond embedding hoisted out of the kernel (one XLA GEMM), conv1 bias folded in.
    ce1 = (cond.astype(jnp.float32) @ params["cond_w"].T
           + params["cond_b"] + params["conv1_b"])           # (B, Cout)
    ce1 = ce1[:, :, None]                                     # (B, Cout, 1)

    g1 = params["gn1_gamma"].reshape(c_in, 1)
    b1 = params["gn1_beta"].reshape(c_in, 1)
    g2 = params["gn2_gamma"].reshape(c_out, 1)
    b2 = params["gn2_beta"].reshape(c_out, 1)
    cb2 = params["conv2_b"].reshape(c_out, 1)

    # Precomputed 3x3 zero-padding masks, one per tap (center = all ones).
    ph, pw = np.divmod(np.arange(HW), W)
    mlist = []
    for dy in (-1, 0, 1):
        for dx in (-1, 0, 1):
            valid = ((ph + dy >= 0) & (ph + dy < H)
                     & (pw + dx >= 0) & (pw + dx < W))
            mlist.append(valid.astype(np.float32))
    masks = jnp.asarray(np.stack(mlist)[:, None, :])          # (9, 1, HW)

    # Group one-hot matrices (tiny) for the per-group reductions / broadcasts.
    G1 = (jnp.arange(c_in)[:, None] // (c_in // n_groups)
          == jnp.arange(n_groups)[None, :]).astype(jnp.float32)    # (Cin, nG)
    G2 = (jnp.arange(c_out)[:, None] // (c_out // n_groups)
          == jnp.arange(n_groups)[None, :]).astype(jnp.float32)    # (Cout, nG)
    G1t, G2t = G1.T, G2.T

    has_proj = params["shortcut_w"] is not None
    rep_args = [masks, g1, b1, w1, g2, b2, w2, cb2, G1, G1t, G2, G2t]
    if has_proj:
        scw = params["shortcut_w"][:, :, 0, 0]                      # (Cout, Cin)
        scb = params["shortcut_b"].reshape(c_out, 1)
        rep_args += [scw, scb]

    def rep_spec(a):
        nd = a.ndim
        return pl.BlockSpec(a.shape, lambda b, _nd=nd: (0,) * _nd)

    in_specs = ([pl.BlockSpec((1, c_in, HW), lambda b: (b, 0, 0)),
                 pl.BlockSpec((1, c_out, 1), lambda b: (b, 0, 0))]
                + [rep_spec(a) for a in rep_args])

    kernel = functools.partial(_residual_block_kernel, has_proj, W, HW,
                               c_in // n_groups, c_out // n_groups)

    # Size-aware VMEM request (double-buffered in/out blocks + weights + slack),
    # capped at 64 MiB so it is valid on every generation including v7x.
    est_vmem = 4 * (2 * (c_in + 2 * c_out) * HW
                    + 2 * 9 * (c_in * c_out + c_out * c_out)
                    + 12 * HW) + (4 << 20)
    vmem_limit = int(min(max(est_vmem, 32 * 1024 * 1024), 64 * 1024 * 1024))

    out = pl.pallas_call(
        kernel,
        out_shape=jax.ShapeDtypeStruct((B, c_out, HW), x_nchw.dtype),
        grid_spec=pltpu.PrefetchScalarGridSpec(
            num_scalar_prefetch=0,
            grid=(B,),
            in_specs=in_specs,
            out_specs=pl.BlockSpec((1, c_out, HW), lambda b: (b, 0, 0)),
        ),
        compiler_params=pltpu.CompilerParams(
            dimension_semantics=("parallel",),
            vmem_limit_bytes=vmem_limit,
        ),
    )(x2, ce1, *rep_args)

    # (B, Cout, H*W) -> NCHW (pure reshape, no transpose needed).
    return out.reshape(B, c_out, H, W)


# --------------------------- pure-JAX reference ---------------------------- #
def reference_forward(x, cond, params, *, n_groups):
    def gn(v, gamma, beta):
        B, C, H, W = v.shape
        vg = v.reshape(B, n_groups, C // n_groups, H, W)
        mean = vg.mean(axis=(2, 3, 4), keepdims=True)
        var = vg.var(axis=(2, 3, 4), keepdims=True)
        vh = ((vg - mean) / jnp.sqrt(var + EPS)).reshape(B, C, H, W)
        return vh * gamma.reshape(1, C, 1, 1) + beta.reshape(1, C, 1, 1)

    def swish(v):
        return v * jax.nn.sigmoid(v)

    def conv(v, w, b, pad):
        out = lax.conv_general_dilated(
            v, w, (1, 1), [(pad, pad), (pad, pad)],
            dimension_numbers=("NCHW", "OIHW", "NCHW"))
        return out + b.reshape(1, -1, 1, 1)

    h = conv(swish(gn(x, params["gn1_gamma"], params["gn1_beta"])),
             params["conv1_w"], params["conv1_b"], 1)
    ce = cond @ params["cond_w"].T + params["cond_b"]
    h = h + ce[:, :, None, None]
    h = conv(swish(gn(h, params["gn2_gamma"], params["gn2_beta"])),
             params["conv2_w"], params["conv2_b"], 1)
    if params["shortcut_w"] is None:
        sc = x
    else:
        sc = conv(x, params["shortcut_w"], params["shortcut_b"], 0)
    return h + sc


# ---------------------------------- main ----------------------------------- #
if __name__ == "__main__":
    B, c_in, c_out, H, W = 2, 4, 8, 16, 16
    n_cond, n_groups = 8, 2

    key = jax.random.PRNGKey(0)
    ks = jax.random.split(key, 14)
    params = {
        "gn1_gamma": 1.0 + 0.1 * jax.random.normal(ks[0], (c_in,), jnp.float32),
        "gn1_beta": 0.1 * jax.random.normal(ks[1], (c_in,), jnp.float32),
        "conv1_w": 0.3 * jax.random.normal(ks[2], (c_out, c_in, 3, 3), jnp.float32),
        "conv1_b": 0.1 * jax.random.normal(ks[3], (c_out,), jnp.float32),
        "cond_w": 0.3 * jax.random.normal(ks[4], (c_out, n_cond), jnp.float32),
        "cond_b": 0.1 * jax.random.normal(ks[5], (c_out,), jnp.float32),
        "gn2_gamma": 1.0 + 0.1 * jax.random.normal(ks[6], (c_out,), jnp.float32),
        "gn2_beta": 0.1 * jax.random.normal(ks[7], (c_out,), jnp.float32),
        "conv2_w": 0.3 * jax.random.normal(ks[8], (c_out, c_out, 3, 3), jnp.float32),
        "conv2_b": 0.1 * jax.random.normal(ks[9], (c_out,), jnp.float32),
        "shortcut_w": (0.3 * jax.random.normal(ks[10], (c_out, c_in, 1, 1), jnp.float32)
                       if c_in != c_out else None),
        "shortcut_b": (0.1 * jax.random.normal(ks[11], (c_out,), jnp.float32)
                       if c_in != c_out else None),
    }

    x = jax.random.normal(ks[12], (B, c_in, H, W), jnp.float32)
    cond = jax.random.normal(ks[13], (B, n_cond), jnp.float32)

    out = residual_block_pallas(x, cond, params, n_groups=n_groups)
    out = jax.block_until_ready(out)

    ref = reference_forward(x, cond, params, n_groups=n_groups)
    assert out.shape == (B, c_out, H, W)
    np.testing.assert_allclose(np.asarray(out), np.asarray(ref),
                               atol=2e-3, rtol=2e-3)
    print("KERNEL_OK")
</pallas_src>

<mosaic_0001>
module attributes {stable_mosaic.version = 11 : i64} {
  func.func @_residual_block_kernel(%arg0: i32, %arg1: memref<1x4x256xf32, #tpu.memory_space<vmem>>, %arg2: memref<1x8x1xf32, #tpu.memory_space<vmem>>, %arg3: memref<9x1x256xf32, #tpu.memory_space<vmem>>, %arg4: memref<4x1xf32, #tpu.memory_space<vmem>>, %arg5: memref<4x1xf32, #tpu.memory_space<vmem>>, %arg6: memref<9x8x4xf32, #tpu.memory_space<vmem>>, %arg7: memref<8x1xf32, #tpu.memory_space<vmem>>, %arg8: memref<8x1xf32, #tpu.memory_space<vmem>>, %arg9: memref<9x8x8xf32, #tpu.memory_space<vmem>>, %arg10: memref<8x1xf32, #tpu.memory_space<vmem>>, %arg11: memref<4x2xf32, #tpu.memory_space<vmem>>, %arg12: memref<2x4xf32, #tpu.memory_space<vmem>>, %arg13: memref<8x2xf32, #tpu.memory_space<vmem>>, %arg14: memref<2x8xf32, #tpu.memory_space<vmem>>, %arg15: memref<8x4xf32, #tpu.memory_space<vmem>>, %arg16: memref<8x1xf32, #tpu.memory_space<vmem>>, %arg17: memref<1x8x256xf32, #tpu.memory_space<vmem>>) attributes {dimension_semantics = [#tpu.dimension_semantics<parallel>], iteration_bounds = array<i64: 2>, scalar_prefetch = 0 : i64, scratch_operands = 0 : i64, tpu.core_type = #tpu.core_type<tc>, window_params = [{transform_indices = @transform_0, window_bounds = array<i64: 1, 4, 256>}, {transform_indices = @transform_1, window_bounds = array<i64: 1, 8, 1>}, {pipeline_mode = #tpu.pipeline_mode<synchronous>, transform_indices = @transform_2, window_bounds = array<i64: 9, 1, 256>}, {pipeline_mode = #tpu.pipeline_mode<synchronous>, transform_indices = @transform_3, window_bounds = array<i64: 4, 1>}, {pipeline_mode = #tpu.pipeline_mode<synchronous>, transform_indices = @transform_4, window_bounds = array<i64: 4, 1>}, {pipeline_mode = #tpu.pipeline_mode<synchronous>, transform_indices = @transform_5, window_bounds = array<i64: 9, 8, 4>}, {pipeline_mode = #tpu.pipeline_mode<synchronous>, transform_indices = @transform_6, window_bounds = array<i64: 8, 1>}, {pipeline_mode = #tpu.pipeline_mode<synchronous>, transform_indices = @transform_7, window_bounds = array<i64: 8, 1>}, {pipeline_mode = #tpu.pipeline_mode<synchronous>, transform_indices = @transform_8, window_bounds = array<i64: 9, 8, 8>}, {pipeline_mode = #tpu.pipeline_mode<synchronous>, transform_indices = @transform_9, window_bounds = array<i64: 8, 1>}, {pipeline_mode = #tpu.pipeline_mode<synchronous>, transform_indices = @transform_10, window_bounds = array<i64: 4, 2>}, {pipeline_mode = #tpu.pipeline_mode<synchronous>, transform_indices = @transform_11, window_bounds = array<i64: 2, 4>}, {pipeline_mode = #tpu.pipeline_mode<synchronous>, transform_indices = @transform_12, window_bounds = array<i64: 8, 2>}, {pipeline_mode = #tpu.pipeline_mode<synchronous>, transform_indices = @transform_13, window_bounds = array<i64: 2, 8>}, {pipeline_mode = #tpu.pipeline_mode<synchronous>, transform_indices = @transform_14, window_bounds = array<i64: 8, 4>}, {pipeline_mode = #tpu.pipeline_mode<synchronous>, transform_indices = @transform_15, window_bounds = array<i64: 8, 1>}, {transform_indices = @transform_16, window_bounds = array<i64: 1, 8, 256>}]} {
    %c0 = arith.constant 0 : index
    %c0_0 = arith.constant 0 : index
    %c0_1 = arith.constant 0 : index
    %0 = vector.load %arg1[%c0, %c0_0, %c0_1] : memref<1x4x256xf32, #tpu.memory_space<vmem>>, vector<1x4x256xf32>
    %1 = vector.shape_cast %0 : vector<1x4x256xf32> to vector<4x256xf32>
    %cst = arith.constant dense<0.000000e+00> : vector<4xf32>
    %2 = vector.multi_reduction <add>, %1, %cst [1] : vector<4x256xf32> to vector<4xf32>
    %3 = vector.shape_cast %2 : vector<4xf32> to vector<4x1xf32>
    %c0_2 = arith.constant 0 : index
    %c0_3 = arith.constant 0 : index
    %4 = vector.load %arg12[%c0_2, %c0_3] : memref<2x4xf32, #tpu.memory_space<vmem>>, vector<2x4xf32>
    %cst_4 = arith.constant dense<0.000000e+00> : vector<2x1xf32>
    %5 = tpu.matmul %4, %3, %cst_4 {dimension_numbers = #tpu.dot_dimension_numbers<[1], [0], [0], [1], [0, 0, 1, 1], [], []>} : vector<2x4xf32>, vector<4x1xf32>, vector<2x1xf32> -> vector<2x1xf32>
    %cst_5 = arith.constant 5.120000e+02 : f32
    %6 = vector.broadcast %cst_5 : f32 to vector<2x1xf32>
    %7 = arith.divf %5, %6 : vector<2x1xf32>
    %c0_6 = arith.constant 0 : index
    %c0_7 = arith.constant 0 : index
    %8 = vector.load %arg11[%c0_6, %c0_7] : memref<4x2xf32, #tpu.memory_space<vmem>>, vector<4x2xf32>
    %cst_8 = arith.constant dense<0.000000e+00> : vector<4x1xf32>
    %9 = tpu.matmul %8, %7, %cst_8 {dimension_numbers = #tpu.dot_dimension_numbers<[1], [0], [0], [1], [0, 0, 1, 1], [], []>} : vector<4x2xf32>, vector<2x1xf32>, vector<4x1xf32> -> vector<4x1xf32>
    %10 = vector.broadcast %9 : vector<4x1xf32> to vector<4x256xf32>
    %11 = arith.subf %1, %10 : vector<4x256xf32>
    %12 = arith.mulf %11, %11 : vector<4x256xf32>
    %cst_9 = arith.constant dense<0.000000e+00> : vector<4xf32>
    %13 = vector.multi_reduction <add>, %12, %cst_9 [1] : vector<4x256xf32> to vector<4xf32>
    %14 = vector.shape_cast %13 : vector<4xf32> to vector<4x1xf32>
    %c0_10 = arith.constant 0 : index
    %c0_11 = arith.constant 0 : index
    %15 = vector.load %arg12[%c0_10, %c0_11] : memref<2x4xf32, #tpu.memory_space<vmem>>, vector<2x4xf32>
    %cst_12 = arith.constant dense<0.000000e+00> : vector<2x1xf32>
    %16 = tpu.matmul %15, %14, %cst_12 {dimension_numbers = #tpu.dot_dimension_numbers<[1], [0], [0], [1], [0, 0, 1, 1], [], []>} : vector<2x4xf32>, vector<4x1xf32>, vector<2x1xf32> -> vector<2x1xf32>
    %cst_13 = arith.constant 5.120000e+02 : f32
    %17 = vector.broadcast %cst_13 : f32 to vector<2x1xf32>
    %18 = arith.divf %16, %17 : vector<2x1xf32>
    %c0_14 = arith.constant 0 : index
    %c0_15 = arith.constant 0 : index
    %19 = vector.load %arg11[%c0_14, %c0_15] : memref<4x2xf32, #tpu.memory_space<vmem>>, vector<4x2xf32>
    %cst_16 = arith.constant dense<0.000000e+00> : vector<4x1xf32>
    %20 = tpu.matmul %19, %18, %cst_16 {dimension_numbers = #tpu.dot_dimension_numbers<[1], [0], [0], [1], [0, 0, 1, 1], [], []>} : vector<4x2xf32>, vector<2x1xf32>, vector<4x1xf32> -> vector<4x1xf32>
    %cst_17 = arith.constant 9.99999974E-6 : f32
    %21 = vector.broadcast %cst_17 : f32 to vector<4x1xf32>
    %22 = arith.addf %20, %21 : vector<4x1xf32>
    %23 = math.rsqrt %22 : vector<4x1xf32>
    %c0_18 = arith.constant 0 : index
    %c0_19 = arith.constant 0 : index
    %24 = vector.load %arg4[%c0_18, %c0_19] : memref<4x1xf32, #tpu.memory_space<vmem>>, vector<4x1xf32>
    %25 = arith.mulf %23, %24 : vector<4x1xf32>
    %26 = vector.broadcast %25 : vector<4x1xf32> to vector<4x256xf32>
    %27 = arith.mulf %11, %26 : vector<4x256xf32>
    %c0_20 = arith.constant 0 : index
    %c0_21 = arith.constant 0 : index
    %28 = vector.load %arg5[%c0_20, %c0_21] : memref<4x1xf32, #tpu.memory_space<vmem>>, vector<4x1xf32>
    %29 = vector.broadcast %28 : vector<4x1xf32> to vector<4x256xf32>
    %30 = arith.addf %27, %29 : vector<4x256xf32>
    %31 = arith.negf %30 : vector<4x256xf32>
    %32 = math.exp %31 : vector<4x256xf32>
    %cst_22 = arith.constant 1.000000e+00 : f32
    %33 = vector.broadcast %cst_22 : f32 to vector<4x256xf32>
    %34 = arith.addf %33, %32 : vector<4x256xf32>
    %35 = arith.divf %33, %34 : vector<4x256xf32>
    %36 = arith.mulf %30, %35 : vector<4x256xf32>
    %cst_23 = arith.constant 0.000000e+00 : f32
    %37 = vector.broadcast %cst_23 : f32 to vector<8x256xf32>
    %c17_i32 = arith.constant 17 : i32
    %38 = tpu.dynamic_rotate %36 by %c17_i32 dim 1 : vector<4x256xf32>, i32 -> vector<4x256xf32>
    %c0_24 = arith.constant 0 : index
    %c0_25 = arith.constant 0 : index
    %c0_26 = arith.constant 0 : index
    %39 = vector.load %arg6[%c0_24, %c0_25, %c0_26] : memref<9x8x4xf32, #tpu.memory_space<vmem>>, vector<1x8x4xf32>
    %40 = vector.shape_cast %39 : vector<1x8x4xf32> to vector<8x4xf32>
    %c0_27 = arith.constant 0 : index
    %c0_28 = arith.constant 0 : index
    %c0_29 = arith.constant 0 : index
    %41 = vector.load %arg3[%c0_27, %c0_28, %c0_29] : memref<9x1x256xf32, #tpu.memory_space<vmem>>, vector<1x1x256xf32>
    %42 = vector.shape_cast %41 : vector<1x1x256xf32> to vector<1x256xf32>
    %43 = vector.broadcast %42 : vector<1x256xf32> to vector<4x256xf32>
    %44 = arith.mulf %43, %38 : vector<4x256xf32>
    %cst_30 = arith.constant dense<0.000000e+00> : vector<8x256xf32>
    %45 = tpu.matmul %40, %44, %cst_30 {dimension_numbers = #tpu.dot_dimension_numbers<[1], [0], [0], [1], [0, 0, 1, 1], [], []>} : vector<8x4xf32>, vector<4x256xf32>, vector<8x256xf32> -> vector<8x256xf32>
    %46 = arith.addf %37, %45 : vector<8x256xf32>
    %c16_i32 = arith.constant 16 : i32
    %47 = tpu.dynamic_rotate %36 by %c16_i32 dim 1 : vector<4x256xf32>, i32 -> vector<4x256xf32>
    %c1 = arith.constant 1 : index
    %c0_31 = arith.constant 0 : index
    %c0_32 = arith.constant 0 : index
    %48 = vector.load %arg6[%c1, %c0_31, %c0_32] : memref<9x8x4xf32, #tpu.memory_space<vmem>>, vector<1x8x4xf32>
    %49 = vector.shape_cast %48 : vector<1x8x4xf32> to vector<8x4xf32>
    %c1_33 = arith.constant 1 : index
    %c0_34 = arith.constant 0 : index
    %c0_35 = arith.constant 0 : index
    %50 = vector.load %arg3[%c1_33, %c0_34, %c0_35] : memref<9x1x256xf32, #tpu.memory_space<vmem>>, vector<1x1x256xf32>
    %51 = vector.shape_cast %50 : vector<1x1x256xf32> to vector<1x256xf32>
    %52 = vector.broadcast %51 : vector<1x256xf32> to vector<4x256xf32>
    %53 = arith.mulf %52, %47 : vector<4x256xf32>
    %cst_36 = arith.constant dense<0.000000e+00> : vector<8x256xf32>
    %54 = tpu.matmul %49, %53, %cst_36 {dimension_numbers = #tpu.dot_dimension_numbers<[1], [0], [0], [1], [0, 0, 1, 1], [], []>} : vector<8x4xf32>, vector<4x256xf32>, vector<8x256xf32> -> vector<8x256xf32>
    %55 = arith.addf %46, %54 : vector<8x256xf32>
    %c15_i32 = arith.constant 15 : i32
    %56 = tpu.dynamic_rotate %36 by %c15_i32 dim 1 : vector<4x256xf32>, i32 -> vector<4x256xf32>
    %c2 = arith.constant 2 : index
    %c0_37 = arith.constant 0 : index
    %c0_38 = arith.constant 0 : index
    %57 = vector.load %arg6[%c2, %c0_37, %c0_38] : memref<9x8x4xf32, #tpu.memory_space<vmem>>, vector<1x8x4xf32>
    %58 = vector.shape_cast %57 : vector<1x8x4xf32> to vector<8x4xf32>
    %c2_39 = arith.constant 2 : index
    %c0_40 = arith.constant 0 : index
    %c0_41 = arith.constant 0 : index
    %59 = vector.load %arg3[%c2_39, %c0_40, %c0_41] : memref<9x1x256xf32, #tpu.memory_space<vmem>>, vector<1x1x256xf32>
    %60 = vector.shape_cast %59 : vector<1x1x256xf32> to vector<1x256xf32>
    %61 = vector.broadcast %60 : vector<1x256xf32> to vector<4x256xf32>
    %62 = arith.mulf %61, %56 : vector<4x256xf32>
    %cst_42 = arith.constant dense<0.000000e+00> : vector<8x256xf32>
    %63 = tpu.matmul %58, %62, %cst_42 {dimension_numbers = #tpu.dot_dimension_numbers<[1], [0], [0], [1], [0, 0, 1, 1], [], []>} : vector<8x4xf32>, vector<4x256xf32>, vector<8x256xf32> -> vector<8x256xf32>
    %64 = arith.addf %55, %63 : vector<8x256xf32>
    %c1_i32 = arith.constant 1 : i32
    %65 = tpu.dynamic_rotate %36 by %c1_i32 dim 1 : vector<4x256xf32>, i32 -> vector<4x256xf32>
    %c3 = arith.constant 3 : index
    %c0_43 = arith.constant 0 : index
    %c0_44 = arith.constant 0 : index
    %66 = vector.load %arg6[%c3, %c0_43, %c0_44] : memref<9x8x4xf32, #tpu.memory_space<vmem>>, vector<1x8x4xf32>
    %67 = vector.shape_cast %66 : vector<1x8x4xf32> to vector<8x4xf32>
    %c3_45 = arith.constant 3 : index
    %c0_46 = arith.constant 0 : index
    %c0_47 = arith.constant 0 : index
    %68 = vector.load %arg3[%c3_45, %c0_46, %c0_47] : memref<9x1x256xf32, #tpu.memory_space<vmem>>, vector<1x1x256xf32>
    %69 = vector.shape_cast %68 : vector<1x1x256xf32> to vector<1x256xf32>
    %70 = vector.broadcast %69 : vector<1x256xf32> to vector<4x256xf32>
    %71 = arith.mulf %70, %65 : vector<4x256xf32>
    %cst_48 = arith.constant dense<0.000000e+00> : vector<8x256xf32>
    %72 = tpu.matmul %67, %71, %cst_48 {dimension_numbers = #tpu.dot_dimension_numbers<[1], [0], [0], [1], [0, 0, 1, 1], [], []>} : vector<8x4xf32>, vector<4x256xf32>, vector<8x256xf32> -> vector<8x256xf32>
    %73 = arith.addf %64, %72 : vector<8x256xf32>
    %c4 = arith.constant 4 : index
    %c0_49 = arith.constant 0 : index
    %c0_50 = arith.constant 0 : index
    %74 = vector.load %arg6[%c4, %c0_49, %c0_50] : memref<9x8x4xf32, #tpu.memory_space<vmem>>, vector<1x8x4xf32>
    %75 = vector.shape_cast %74 : vector<1x8x4xf32> to vector<8x4xf32>
    %cst_51 = arith.constant dense<0.000000e+00> : vector<8x256xf32>
    %76 = tpu.matmul %75, %36, %cst_51 {dimension_numbers = #tpu.dot_dimension_numbers<[1], [0], [0], [1], [0, 0, 1, 1], [], []>} : vector<8x4xf32>, vector<4x256xf32>, vector<8x256xf32> -> vector<8x256xf32>
    %77 = arith.addf %73, %76 : vector<8x256xf32>
    %c255_i32 = arith.constant 255 : i32
    %78 = tpu.dynamic_rotate %36 by %c255_i32 dim 1 : vector<4x256xf32>, i32 -> vector<4x256xf32>
    %c5 = arith.constant 5 : index
    %c0_52 = arith.constant 0 : index
    %c0_53 = arith.constant 0 : index
    %79 = vector.load %arg6[%c5, %c0_52, %c0_53] : memref<9x8x4xf32, #tpu.memory_space<vmem>>, vector<1x8x4xf32>
    %80 = vector.shape_cast %79 : vector<1x8x4xf32> to vector<8x4xf32>
    %c5_54 = arith.constant 5 : index
    %c0_55 = arith.constant 0 : index
    %c0_56 = arith.constant 0 : index
    %81 = vector.load %arg3[%c5_54, %c0_55, %c0_56] : memref<9x1x256xf32, #tpu.memory_space<vmem>>, vector<1x1x256xf32>
    %82 = vector.shape_cast %81 : vector<1x1x256xf32> to vector<1x256xf32>
    %83 = vector.broadcast %82 : vector<1x256xf32> to vector<4x256xf32>
    %84 = arith.mulf %83, %78 : vector<4x256xf32>
    %cst_57 = arith.constant dense<0.000000e+00> : vector<8x256xf32>
    %85 = tpu.matmul %80, %84, %cst_57 {dimension_numbers = #tpu.dot_dimension_numbers<[1], [0], [0], [1], [0, 0, 1, 1], [], []>} : vector<8x4xf32>, vector<4x256xf32>, vector<8x256xf32> -> vector<8x256xf32>
    %86 = arith.addf %77, %85 : vector<8x256xf32>
    %c241_i32 = arith.constant 241 : i32
    %87 = tpu.dynamic_rotate %36 by %c241_i32 dim 1 : vector<4x256xf32>, i32 -> vector<4x256xf32>
    %c6 = arith.constant 6 : index
    %c0_58 = arith.constant 0 : index
    %c0_59 = arith.constant 0 : index
    %88 = vector.load %arg6[%c6, %c0_58, %c0_59] : memref<9x8x4xf32, #tpu.memory_space<vmem>>, vector<1x8x4xf32>
    %89 = vector.shape_cast %88 : vector<1x8x4xf32> to vector<8x4xf32>
    %c6_60 = arith.constant 6 : index
    %c0_61 = arith.constant 0 : index
    %c0_62 = arith.constant 0 : index
    %90 = vector.load %arg3[%c6_60, %c0_61, %c0_62] : memref<9x1x256xf32, #tpu.memory_space<vmem>>, vector<1x1x256xf32>
    %91 = vector.shape_cast %90 : vector<1x1x256xf32> to vector<1x256xf32>
    %92 = vector.broadcast %91 : vector<1x256xf32> to vector<4x256xf32>
    %93 = arith.mulf %92, %87 : vector<4x256xf32>
    %cst_63 = arith.constant dense<0.000000e+00> : vector<8x256xf32>
    %94 = tpu.matmul %89, %93, %cst_63 {dimension_numbers = #tpu.dot_dimension_numbers<[1], [0], [0], [1], [0, 0, 1, 1], [], []>} : vector<8x4xf32>, vector<4x256xf32>, vector<8x256xf32> -> vector<8x256xf32>
    %95 = arith.addf %86, %94 : vector<8x256xf32>
    %c240_i32 = arith.constant 240 : i32
    %96 = tpu.dynamic_rotate %36 by %c240_i32 dim 1 : vector<4x256xf32>, i32 -> vector<4x256xf32>
    %c7 = arith.constant 7 : index
    %c0_64 = arith.constant 0 : index
    %c0_65 = arith.constant 0 : index
    %97 = vector.load %arg6[%c7, %c0_64, %c0_65] : memref<9x8x4xf32, #tpu.memory_space<vmem>>, vector<1x8x4xf32>
    %98 = vector.shape_cast %97 : vector<1x8x4xf32> to vector<8x4xf32>
    %c7_66 = arith.constant 7 : index
    %c0_67 = arith.constant 0 : index
    %c0_68 = arith.constant 0 : index
    %99 = vector.load %arg3[%c7_66, %c0_67, %c0_68] : memref<9x1x256xf32, #tpu.memory_space<vmem>>, vector<1x1x256xf32>
    %100 = vector.shape_cast %99 : vector<1x1x256xf32> to vector<1x256xf32>
    %101 = vector.broadcast %100 : vector<1x256xf32> to vector<4x256xf32>
    %102 = arith.mulf %101, %96 : vector<4x256xf32>
    %cst_69 = arith.constant dense<0.000000e+00> : vector<8x256xf32>
    %103 = tpu.matmul %98, %102, %cst_69 {dimension_numbers = #tpu.dot_dimension_numbers<[1], [0], [0], [1], [0, 0, 1, 1], [], []>} : vector<8x4xf32>, vector<4x256xf32>, vector<8x256xf32> -> vector<8x256xf32>
    %104 = arith.addf %95, %103 : vector<8x256xf32>
    %c239_i32 = arith.constant 239 : i32
    %105 = tpu.dynamic_rotate %36 by %c239_i32 dim 1 : vector<4x256xf32>, i32 -> vector<4x256xf32>
    %c8 = arith.constant 8 : index
    %c0_70 = arith.constant 0 : index
    %c0_71 = arith.constant 0 : index
    %106 = vector.load %arg6[%c8, %c0_70, %c0_71] : memref<9x8x4xf32, #tpu.memory_space<vmem>>, vector<1x8x4xf32>
    %107 = vector.shape_cast %106 : vector<1x8x4xf32> to vector<8x4xf32>
    %c8_72 = arith.constant 8 : index
    %c0_73 = arith.constant 0 : index
    %c0_74 = arith.constant 0 : index
    %108 = vector.load %arg3[%c8_72, %c0_73, %c0_74] : memref<9x1x256xf32, #tpu.memory_space<vmem>>, vector<1x1x256xf32>
    %109 = vector.shape_cast %108 : vector<1x1x256xf32> to vector<1x256xf32>
    %110 = vector.broadcast %109 : vector<1x256xf32> to vector<4x256xf32>
    %111 = arith.mulf %110, %105 : vector<4x256xf32>
    %cst_75 = arith.constant dense<0.000000e+00> : vector<8x256xf32>
    %112 = tpu.matmul %107, %111, %cst_75 {dimension_numbers = #tpu.dot_dimension_numbers<[1], [0], [0], [1], [0, 0, 1, 1], [], []>} : vector<8x4xf32>, vector<4x256xf32>, vector<8x256xf32> -> vector<8x256xf32>
    %113 = arith.addf %104, %112 : vector<8x256xf32>
    %c0_76 = arith.constant 0 : index
    %c0_77 = arith.constant 0 : index
    %c0_78 = arith.constant 0 : index
    %114 = vector.load %arg2[%c0_76, %c0_77, %c0_78] : memref<1x8x1xf32, #tpu.memory_space<vmem>>, vector<1x8x1xf32>
    %115 = vector.shape_cast %114 : vector<1x8x1xf32> to vector<8x1xf32>
    %116 = vector.broadcast %115 : vector<8x1xf32> to vector<8x256xf32>
    %117 = arith.addf %113, %116 : vector<8x256xf32>
    %cst_79 = arith.constant dense<0.000000e+00> : vector<8xf32>
    %118 = vector.multi_reduction <add>, %117, %cst_79 [1] : vector<8x256xf32> to vector<8xf32>
    %119 = vector.shape_cast %118 : vector<8xf32> to vector<8x1xf32>
    %c0_80 = arith.constant 0 : index
    %c0_81 = arith.constant 0 : index
    %120 = vector.load %arg14[%c0_80, %c0_81] : memref<2x8xf32, #tpu.memory_space<vmem>>, vector<2x8xf32>
    %cst_82 = arith.constant dense<0.000000e+00> : vector<2x1xf32>
    %121 = tpu.matmul %120, %119, %cst_82 {dimension_numbers = #tpu.dot_dimension_numbers<[1], [0], [0], [1], [0, 0, 1, 1], [], []>} : vector<2x8xf32>, vector<8x1xf32>, vector<2x1xf32> -> vector<2x1xf32>
    %cst_83 = arith.constant 1.024000e+03 : f32
    %122 = vector.broadcast %cst_83 : f32 to vector<2x1xf32>
    %123 = arith.divf %121, %122 : vector<2x1xf32>
    %c0_84 = arith.constant 0 : index
    %c0_85 = arith.constant 0 : index
    %124 = vector.load %arg13[%c0_84, %c0_85] : memref<8x2xf32, #tpu.memory_space<vmem>>, vector<8x2xf32>
    %cst_86 = arith.constant dense<0.000000e+00> : vector<8x1xf32>
    %125 = tpu.matmul %124, %123, %cst_86 {dimension_numbers = #tpu.dot_dimension_numbers<[1], [0], [0], [1], [0, 0, 1, 1], [], []>} : vector<8x2xf32>, vector<2x1xf32>, vector<8x1xf32> -> vector<8x1xf32>
    %126 = vector.broadcast %125 : vector<8x1xf32> to vector<8x256xf32>
    %127 = arith.subf %117, %126 : vector<8x256xf32>
    %128 = arith.mulf %127, %127 : vector<8x256xf32>
    %cst_87 = arith.constant dense<0.000000e+00> : vector<8xf32>
    %129 = vector.multi_reduction <add>, %128, %cst_87 [1] : vector<8x256xf32> to vector<8xf32>
    %130 = vector.shape_cast %129 : vector<8xf32> to vector<8x1xf32>
    %c0_88 = arith.constant 0 : index
    %c0_89 = arith.constant 0 : index
    %131 = vector.load %arg14[%c0_88, %c0_89] : memref<2x8xf32, #tpu.memory_space<vmem>>, vector<2x8xf32>
    %cst_90 = arith.constant dense<0.000000e+00> : vector<2x1xf32>
    %132 = tpu.matmul %131, %130, %cst_90 {dimension_numbers = #tpu.dot_dimension_numbers<[1], [0], [0], [1], [0, 0, 1, 1], [], []>} : vector<2x8xf32>, vector<8x1xf32>, vector<2x1xf32> -> vector<2x1xf32>
    %cst_91 = arith.constant 1.024000e+03 : f32
    %133 = vector.broadcast %cst_91 : f32 to vector<2x1xf32>
    %134 = arith.divf %132, %133 : vector<2x1xf32>
    %c0_92 = arith.constant 0 : index
    %c0_93 = arith.constant 0 : index
    %135 = vector.load %arg13[%c0_92, %c0_93] : memref<8x2xf32, #tpu.memory_space<vmem>>, vector<8x2xf32>
    %cst_94 = arith.constant dense<0.000000e+00> : vector<8x1xf32>
    %136 = tpu.matmul %135, %134, %cst_94 {dimension_numbers = #tpu.dot_dimension_numbers<[1], [0], [0], [1], [0, 0, 1, 1], [], []>} : vector<8x2xf32>, vector<2x1xf32>, vector<8x1xf32> -> vector<8x1xf32>
    %cst_95 = arith.constant 9.99999974E-6 : f32
    %137 = vector.broadcast %cst_95 : f32 to vector<8x1xf32>
    %138 = arith.addf %136, %137 : vector<8x1xf32>
    %139 = math.rsqrt %138 : vector<8x1xf32>
    %c0_96 = arith.constant 0 : index
    %c0_97 = arith.constant 0 : index
    %140 = vector.load %arg7[%c0_96, %c0_97] : memref<8x1xf32, #tpu.memory_space<vmem>>, vector<8x1xf32>
    %141 = arith.mulf %139, %140 : vector<8x1xf32>
    %142 = vector.broadcast %141 : vector<8x1xf32> to vector<8x256xf32>
    %143 = arith.mulf %127, %142 : vector<8x256xf32>
    %c0_98 = arith.constant 0 : index
    %c0_99 = arith.constant 0 : index
    %144 = vector.load %arg8[%c0_98, %c0_99] : memref<8x1xf32, #tpu.memory_space<vmem>>, vector<8x1xf32>
    %145 = vector.broadcast %144 : vector<8x1xf32> to vector<8x256xf32>
    %146 = arith.addf %143, %145 : vector<8x256xf32>
    %147 = arith.negf %146 : vector<8x256xf32>
    %148 = math.exp %147 : vector<8x256xf32>
    %cst_100 = arith.constant 1.000000e+00 : f32
    %149 = vector.broadcast %cst_100 : f32 to vector<8x256xf32>
    %150 = arith.addf %149, %148 : vector<8x256xf32>
    %151 = arith.divf %149, %150 : vector<8x256xf32>
    %152 = arith.mulf %146, %151 : vector<8x256xf32>
    %cst_101 = arith.constant 0.000000e+00 : f32
    %153 = vector.broadcast %cst_101 : f32 to vector<8x256xf32>
    %c17_i32_102 = arith.constant 17 : i32
    %154 = tpu.dynamic_rotate %152 by %c17_i32_102 dim 1 : vector<8x256xf32>, i32 -> vector<8x256xf32>
    %c0_103 = arith.constant 0 : index
    %c0_104 = arith.constant 0 : index
    %c0_105 = arith.constant 0 : index
    %155 = vector.load %arg9[%c0_103, %c0_104, %c0_105] : memref<9x8x8xf32, #tpu.memory_space<vmem>>, vector<1x8x8xf32>
    %156 = vector.shape_cast %155 : vector<1x8x8xf32> to vector<8x8xf32>
    %c0_106 = arith.constant 0 : index
    %c0_107 = arith.constant 0 : index
    %c0_108 = arith.constant 0 : index
    %157 = vector.load %arg3[%c0_106, %c0_107, %c0_108] : memref<9x1x256xf32, #tpu.memory_space<vmem>>, vector<1x1x256xf32>
    %158 = vector.shape_cast %157 : vector<1x1x256xf32> to vector<1x256xf32>
    %159 = vector.broadcast %158 : vector<1x256xf32> to vector<8x256xf32>
    %160 = arith.mulf %159, %154 : vector<8x256xf32>
    %cst_109 = arith.constant dense<0.000000e+00> : vector<8x256xf32>
    %161 = tpu.matmul %156, %160, %cst_109 {dimension_numbers = #tpu.dot_dimension_numbers<[1], [0], [0], [1], [0, 0, 1, 1], [], []>} : vector<8x8xf32>, vector<8x256xf32>, vector<8x256xf32> -> vector<8x256xf32>
    %162 = arith.addf %153, %161 : vector<8x256xf32>
    %c16_i32_110 = arith.constant 16 : i32
    %163 = tpu.dynamic_rotate %152 by %c16_i32_110 dim 1 : vector<8x256xf32>, i32 -> vector<8x256xf32>
    %c1_111 = arith.constant 1 : index
    %c0_112 = arith.constant 0 : index
    %c0_113 = arith.constant 0 : index
    %164 = vector.load %arg9[%c1_111, %c0_112, %c0_113] : memref<9x8x8xf32, #tpu.memory_space<vmem>>, vector<1x8x8xf32>
    %165 = vector.shape_cast %164 : vector<1x8x8xf32> to vector<8x8xf32>
    %c1_114 = arith.constant 1 : index
    %c0_115 = arith.constant 0 : index
    %c0_116 = arith.constant 0 : index
    %166 = vector.load %arg3[%c1_114, %c0_115, %c0_116] : memref<9x1x256xf32, #tpu.memory_space<vmem>>, vector<1x1x256xf32>
    %167 = vector.shape_cast %166 : vector<1x1x256xf32> to vector<1x256xf32>
    %168 = vector.broadcast %167 : vector<1x256xf32> to vector<8x256xf32>
    %169 = arith.mulf %168, %163 : vector<8x256xf32>
    %cst_117 = arith.constant dense<0.000000e+00> : vector<8x256xf32>
    %170 = tpu.matmul %165, %169, %cst_117 {dimension_numbers = #tpu.dot_dimension_numbers<[1], [0], [0], [1], [0, 0, 1, 1], [], []>} : vector<8x8xf32>, vector<8x256xf32>, vector<8x256xf32> -> vector<8x256xf32>
    %171 = arith.addf %162, %170 : vector<8x256xf32>
    %c15_i32_118 = arith.constant 15 : i32
    %172 = tpu.dynamic_rotate %152 by %c15_i32_118 dim 1 : vector<8x256xf32>, i32 -> vector<8x256xf32>
    %c2_119 = arith.constant 2 : index
    %c0_120 = arith.constant 0 : index
    %c0_121 = arith.constant 0 : index
    %173 = vector.load %arg9[%c2_119, %c0_120, %c0_121] : memref<9x8x8xf32, #tpu.memory_space<vmem>>, vector<1x8x8xf32>
    %174 = vector.shape_cast %173 : vector<1x8x8xf32> to vector<8x8xf32>
    %c2_122 = arith.constant 2 : index
    %c0_123 = arith.constant 0 : index
    %c0_124 = arith.constant 0 : index
    %175 = vector.load %arg3[%c2_122, %c0_123, %c0_124] : memref<9x1x256xf32, #tpu.memory_space<vmem>>, vector<1x1x256xf32>
    %176 = vector.shape_cast %175 : vector<1x1x256xf32> to vector<1x256xf32>
    %177 = vector.broadcast %176 : vector<1x256xf32> to vector<8x256xf32>
    %178 = arith.mulf %177, %172 : vector<8x256xf32>
    %cst_125 = arith.constant dense<0.000000e+00> : vector<8x256xf32>
    %179 = tpu.matmul %174, %178, %cst_125 {dimension_numbers = #tpu.dot_dimension_numbers<[1], [0], [0], [1], [0, 0, 1, 1], [], []>} : vector<8x8xf32>, vector<8x256xf32>, vector<8x256xf32> -> vector<8x256xf32>
    %180 = arith.addf %171, %179 : vector<8x256xf32>
    %c1_i32_126 = arith.constant 1 : i32
    %181 = tpu.dynamic_rotate %152 by %c1_i32_126 dim 1 : vector<8x256xf32>, i32 -> vector<8x256xf32>
    %c3_127 = arith.constant 3 : index
    %c0_128 = arith.constant 0 : index
    %c0_129 = arith.constant 0 : index
    %182 = vector.load %arg9[%c3_127, %c0_128, %c0_129] : memref<9x8x8xf32, #tpu.memory_space<vmem>>, vector<1x8x8xf32>
    %183 = vector.shape_cast %182 : vector<1x8x8xf32> to vector<8x8xf32>
    %c3_130 = arith.constant 3 : index
    %c0_131 = arith.constant 0 : index
    %c0_132 = arith.constant 0 : index
    %184 = vector.load %arg3[%c3_130, %c0_131, %c0_132] : memref<9x1x256xf32, #tpu.memory_space<vmem>>, vector<1x1x256xf32>
    %185 = vector.shape_cast %184 : vector<1x1x256xf32> to vector<1x256xf32>
    %186 = vector.broadcast %185 : vector<1x256xf32> to vector<8x256xf32>
    %187 = arith.mulf %186, %181 : vector<8x256xf32>
    %cst_133 = arith.constant dense<0.000000e+00> : vector<8x256xf32>
    %188 = tpu.matmul %183, %187, %cst_133 {dimension_numbers = #tpu.dot_dimension_numbers<[1], [0], [0], [1], [0, 0, 1, 1], [], []>} : vector<8x8xf32>, vector<8x256xf32>, vector<8x256xf32> -> vector<8x256xf32>
    %189 = arith.addf %180, %188 : vector<8x256xf32>
    %c4_134 = arith.constant 4 : index
    %c0_135 = arith.constant 0 : index
    %c0_136 = arith.constant 0 : index
    %190 = vector.load %arg9[%c4_134, %c0_135, %c0_136] : memref<9x8x8xf32, #tpu.memory_space<vmem>>, vector<1x8x8xf32>
    %191 = vector.shape_cast %190 : vector<1x8x8xf32> to vector<8x8xf32>
    %cst_137 = arith.constant dense<0.000000e+00> : vector<8x256xf32>
    %192 = tpu.matmul %191, %152, %cst_137 {dimension_numbers = #tpu.dot_dimension_numbers<[1], [0], [0], [1], [0, 0, 1, 1], [], []>} : vector<8x8xf32>, vector<8x256xf32>, vector<8x256xf32> -> vector<8x256xf32>
    %193 = arith.addf %189, %192 : vector<8x256xf32>
    %c255_i32_138 = arith.constant 255 : i32
    %194 = tpu.dynamic_rotate %152 by %c255_i32_138 dim 1 : vector<8x256xf32>, i32 -> vector<8x256xf32>
    %c5_139 = arith.constant 5 : index
    %c0_140 = arith.constant 0 : index
    %c0_141 = arith.constant 0 : index
    %195 = vector.load %arg9[%c5_139, %c0_140, %c0_141] : memref<9x8x8xf32, #tpu.memory_space<vmem>>, vector<1x8x8xf32>
    %196 = vector.shape_cast %195 : vector<1x8x8xf32> to vector<8x8xf32>
    %c5_142 = arith.constant 5 : index
    %c0_143 = arith.constant 0 : index
    %c0_144 = arith.constant 0 : index
    %197 = vector.load %arg3[%c5_142, %c0_143, %c0_144] : memref<9x1x256xf32, #tpu.memory_space<vmem>>, vector<1x1x256xf32>
    %198 = vector.shape_cast %197 : vector<1x1x256xf32> to vector<1x256xf32>
    %199 = vector.broadcast %198 : vector<1x256xf32> to vector<8x256xf32>
    %200 = arith.mulf %199, %194 : vector<8x256xf32>
    %cst_145 = arith.constant dense<0.000000e+00> : vector<8x256xf32>
    %201 = tpu.matmul %196, %200, %cst_145 {dimension_numbers = #tpu.dot_dimension_numbers<[1], [0], [0], [1], [0, 0, 1, 1], [], []>} : vector<8x8xf32>, vector<8x256xf32>, vector<8x256xf32> -> vector<8x256xf32>
    %202 = arith.addf %193, %201 : vector<8x256xf32>
    %c241_i32_146 = arith.constant 241 : i32
    %203 = tpu.dynamic_rotate %152 by %c241_i32_146 dim 1 : vector<8x256xf32>, i32 -> vector<8x256xf32>
    %c6_147 = arith.constant 6 : index
    %c0_148 = arith.constant 0 : index
    %c0_149 = arith.constant 0 : index
    %204 = vector.load %arg9[%c6_147, %c0_148, %c0_149] : memref<9x8x8xf32, #tpu.memory_space<vmem>>, vector<1x8x8xf32>
    %205 = vector.shape_cast %204 : vector<1x8x8xf32> to vector<8x8xf32>
    %c6_150 = arith.constant 6 : index
    %c0_151 = arith.constant 0 : index
    %c0_152 = arith.constant 0 : index
    %206 = vector.load %arg3[%c6_150, %c0_151, %c0_152] : memref<9x1x256xf32, #tpu.memory_space<vmem>>, vector<1x1x256xf32>
    %207 = vector.shape_cast %206 : vector<1x1x256xf32> to vector<1x256xf32>
    %208 = vector.broadcast %207 : vector<1x256xf32> to vector<8x256xf32>
    %209 = arith.mulf %208, %203 : vector<8x256xf32>
    %cst_153 = arith.constant dense<0.000000e+00> : vector<8x256xf32>
    %210 = tpu.matmul %205, %209, %cst_153 {dimension_numbers = #tpu.dot_dimension_numbers<[1], [0], [0], [1], [0, 0, 1, 1], [], []>} : vector<8x8xf32>, vector<8x256xf32>, vector<8x256xf32> -> vector<8x256xf32>
    %211 = arith.addf %202, %210 : vector<8x256xf32>
    %c240_i32_154 = arith.constant 240 : i32
    %212 = tpu.dynamic_rotate %152 by %c240_i32_154 dim 1 : vector<8x256xf32>, i32 -> vector<8x256xf32>
    %c7_155 = arith.constant 7 : index
    %c0_156 = arith.constant 0 : index
    %c0_157 = arith.constant 0 : index
    %213 = vector.load %arg9[%c7_155, %c0_156, %c0_157] : memref<9x8x8xf32, #tpu.memory_space<vmem>>, vector<1x8x8xf32>
    %214 = vector.shape_cast %213 : vector<1x8x8xf32> to vector<8x8xf32>
    %c7_158 = arith.constant 7 : index
    %c0_159 = arith.constant 0 : index
    %c0_160 = arith.constant 0 : index
    %215 = vector.load %arg3[%c7_158, %c0_159, %c0_160] : memref<9x1x256xf32, #tpu.memory_space<vmem>>, vector<1x1x256xf32>
    %216 = vector.shape_cast %215 : vector<1x1x256xf32> to vector<1x256xf32>
    %217 = vector.broadcast %216 : vector<1x256xf32> to vector<8x256xf32>
    %218 = arith.mulf %217, %212 : vector<8x256xf32>
    %cst_161 = arith.constant dense<0.000000e+00> : vector<8x256xf32>
    %219 = tpu.matmul %214, %218, %cst_161 {dimension_numbers = #tpu.dot_dimension_numbers<[1], [0], [0], [1], [0, 0, 1, 1], [], []>} : vector<8x8xf32>, vector<8x256xf32>, vector<8x256xf32> -> vector<8x256xf32>
    %220 = arith.addf %211, %219 : vector<8x256xf32>
    %c239_i32_162 = arith.constant 239 : i32
    %221 = tpu.dynamic_rotate %152 by %c239_i32_162 dim 1 : vector<8x256xf32>, i32 -> vector<8x256xf32>
    %c8_163 = arith.constant 8 : index
    %c0_164 = arith.constant 0 : index
    %c0_165 = arith.constant 0 : index
    %222 = vector.load %arg9[%c8_163, %c0_164, %c0_165] : memref<9x8x8xf32, #tpu.memory_space<vmem>>, vector<1x8x8xf32>
    %223 = vector.shape_cast %222 : vector<1x8x8xf32> to vector<8x8xf32>
    %c8_166 = arith.constant 8 : index
    %c0_167 = arith.constant 0 : index
    %c0_168 = arith.constant 0 : index
    %224 = vector.load %arg3[%c8_166, %c0_167, %c0_168] : memref<9x1x256xf32, #tpu.memory_space<vmem>>, vector<1x1x256xf32>
    %225 = vector.shape_cast %224 : vector<1x1x256xf32> to vector<1x256xf32>
    %226 = vector.broadcast %225 : vector<1x256xf32> to vector<8x256xf32>
    %227 = arith.mulf %226, %221 : vector<8x256xf32>
    %cst_169 = arith.constant dense<0.000000e+00> : vector<8x256xf32>
    %228 = tpu.matmul %223, %227, %cst_169 {dimension_numbers = #tpu.dot_dimension_numbers<[1], [0], [0], [1], [0, 0, 1, 1], [], []>} : vector<8x8xf32>, vector<8x256xf32>, vector<8x256xf32> -> vector<8x256xf32>
    %229 = arith.addf %220, %228 : vector<8x256xf32>
    %c0_170 = arith.constant 0 : index
    %c0_171 = arith.constant 0 : index
    %230 = vector.load %arg10[%c0_170, %c0_171] : memref<8x1xf32, #tpu.memory_space<vmem>>, vector<8x1xf32>
    %231 = vector.broadcast %230 : vector<8x1xf32> to vector<8x256xf32>
    %232 = arith.addf %229, %231 : vector<8x256xf32>
    %c0_172 = arith.constant 0 : index
    %c0_173 = arith.constant 0 : index
    %233 = vector.load %arg15[%c0_172, %c0_173] : memref<8x4xf32, #tpu.memory_space<vmem>>, vector<8x4xf32>
    %cst_174 = arith.constant dense<0.000000e+00> : vector<8x256xf32>
    %234 = tpu.matmul %233, %1, %cst_174 {dimension_numbers = #tpu.dot_dimension_numbers<[1], [0], [0], [1], [0, 0, 1, 1], [], []>} : vector<8x4xf32>, vector<4x256xf32>, vector<8x256xf32> -> vector<8x256xf32>
    %c0_175 = arith.constant 0 : index
    %c0_176 = arith.constant 0 : index
    %235 = vector.load %arg16[%c0_175, %c0_176] : memref<8x1xf32, #tpu.memory_space<vmem>>, vector<8x1xf32>
    %236 = vector.broadcast %235 : vector<8x1xf32> to vector<8x256xf32>
    %237 = arith.addf %234, %236 : vector<8x256xf32>
    %238 = arith.addf %232, %237 : vector<8x256xf32>
    %c0_177 = arith.constant 0 : index
    %c0_178 = arith.constant 0 : index
    %c0_179 = arith.constant 0 : index
    %239 = vector.load %arg17[%c0_177, %c0_178, %c0_179] : memref<1x8x256xf32, #tpu.memory_space<vmem>>, vector<1x8x256xf32>
    %240 = vector.shape_cast %239 : vector<1x8x256xf32> to vector<8x256xf32>
    %241 = vector.shape_cast %238 : vector<8x256xf32> to vector<1x8x256xf32>
    tpu.vector_store %arg17[%c0_177, %c0_178, %c0_179], %241 {strides = array<i32>} : memref<1x8x256xf32, #tpu.memory_space<vmem>>, vector<1x8x256xf32>,
    return
  }
  func.func @transform_0(%arg0: i32) -> (i32, i32, i32) {
    %c0_i32 = arith.constant 0 : i32
    %c0_i32_0 = arith.constant 0 : i32
    %c0_i32_1 = arith.constant 0 : i32
    return %arg0, %c0_i32, %c0_i32_0 : i32, i32, i32
  }
  func.func @transform_1(%arg0: i32) -> (i32, i32, i32) {
    %c0_i32 = arith.constant 0 : i32
    %c0_i32_0 = arith.constant 0 : i32
    %c0_i32_1 = arith.constant 0 : i32
    return %arg0, %c0_i32, %c0_i32_0 : i32, i32, i32
  }
  func.func @transform_2(%arg0: i32) -> (i32, i32, i32) {
    %c0_i32 = arith.constant 0 : i32
    %c0_i32_0 = arith.constant 0 : i32
    %c0_i32_1 = arith.constant 0 : i32
    %c0_i32_2 = arith.constant 0 : i32
    return %c0_i32, %c0_i32_0, %c0_i32_1 : i32, i32, i32
  }
  func.func @transform_3(%arg0: i32) -> (i32, i32) {
    %c0_i32 = arith.constant 0 : i32
    %c0_i32_0 = arith.constant 0 : i32
    %c0_i32_1 = arith.constant 0 : i32
    return %c0_i32, %c0_i32_0 : i32, i32
  }
  func.func @transform_4(%arg0: i32) -> (i32, i32) {
    %c0_i32 = arith.constant 0 : i32
    %c0_i32_0 = arith.constant 0 : i32
    %c0_i32_1 = arith.constant 0 : i32
    return %c0_i32, %c0_i32_0 : i32, i32
  }
  func.func @transform_5(%arg0: i32) -> (i32, i32, i32) {
    %c0_i32 = arith.constant 0 : i32
    %c0_i32_0 = arith.constant 0 : i32
    %c0_i32_1 = arith.constant 0 : i32
    %c0_i32_2 = arith.constant 0 : i32
    return %c0_i32, %c0_i32_0, %c0_i32_1 : i32, i32, i32
  }
  func.func @transform_6(%arg0: i32) -> (i32, i32) {
    %c0_i32 = arith.constant 0 : i32
    %c0_i32_0 = arith.constant 0 : i32
    %c0_i32_1 = arith.constant 0 : i32
    return %c0_i32, %c0_i32_0 : i32, i32
  }
  func.func @transform_7(%arg0: i32) -> (i32, i32) {
    %c0_i32 = arith.constant 0 : i32
    %c0_i32_0 = arith.constant 0 : i32
    %c0_i32_1 = arith.constant 0 : i32
    return %c0_i32, %c0_i32_0 : i32, i32
  }
  func.func @transform_8(%arg0: i32) -> (i32, i32, i32) {
    %c0_i32 = arith.constant 0 : i32
    %c0_i32_0 = arith.constant 0 : i32
    %c0_i32_1 = arith.constant 0 : i32
    %c0_i32_2 = arith.constant 0 : i32
    return %c0_i32, %c0_i32_0, %c0_i32_1 : i32, i32, i32
  }
  func.func @transform_9(%arg0: i32) -> (i32, i32) {
    %c0_i32 = arith.constant 0 : i32
    %c0_i32_0 = arith.constant 0 : i32
    %c0_i32_1 = arith.constant 0 : i32
    return %c0_i32, %c0_i32_0 : i32, i32
  }
  func.func @transform_10(%arg0: i32) -> (i32, i32) {
    %c0_i32 = arith.constant 0 : i32
    %c0_i32_0 = arith.constant 0 : i32
    %c0_i32_1 = arith.constant 0 : i32
    return %c0_i32, %c0_i32_0 : i32, i32
  }
  func.func @transform_11(%arg0: i32) -> (i32, i32) {
    %c0_i32 = arith.constant 0 : i32
    %c0_i32_0 = arith.constant 0 : i32
    %c0_i32_1 = arith.constant 0 : i32
    return %c0_i32, %c0_i32_0 : i32, i32
  }
  func.func @transform_12(%arg0: i32) -> (i32, i32) {
    %c0_i32 = arith.constant 0 : i32
    %c0_i32_0 = arith.constant 0 : i32
    %c0_i32_1 = arith.constant 0 : i32
    return %c0_i32, %c0_i32_0 : i32, i32
  }
  func.func @transform_13(%arg0: i32) -> (i32, i32) {
    %c0_i32 = arith.constant 0 : i32
    %c0_i32_0 = arith.constant 0 : i32
    %c0_i32_1 = arith.constant 0 : i32
    return %c0_i32, %c0_i32_0 : i32, i32
  }
  func.func @transform_14(%arg0: i32) -> (i32, i32) {
    %c0_i32 = arith.constant 0 : i32
    %c0_i32_0 = arith.constant 0 : i32
    %c0_i32_1 = arith.constant 0 : i32
    return %c0_i32, %c0_i32_0 : i32, i32
  }
  func.func @transform_15(%arg0: i32) -> (i32, i32) {
    %c0_i32 = arith.constant 0 : i32
    %c0_i32_0 = arith.constant 0 : i32
    %c0_i32_1 = arith.constant 0 : i32
    return %c0_i32, %c0_i32_0 : i32, i32
  }
  func.func @transform_16(%arg0: i32) -> (i32, i32, i32) {
    %c0_i32 = arith.constant 0 : i32
    %c0_i32_0 = arith.constant 0 : i32
    %c0_i32_1 = arith.constant 0 : i32
    return %arg0, %c0_i32, %c0_i32_0 : i32, i32, i32
  }
}

</mosaic_0001>

<llo_original>
// kernel: tpu_custom_call.1
$region0: #{tpu_custom_call.1}
  #allocation0 [shape = 'u32[]', space=smem, size = 0x4, offset = 0x4, fixed_abs, tag = 'smem constant byte address 0x4 - core index']
  #allocation1 [shape = 'u32[144,128]{1,0:T(1,128)}', space=vmem, size = 0x12000, scoped, tag = 'internal scratch']
  %s0 = inlined_call_operand.vmem [shape: f32[2,4,256], index: 0, kind: input, shape index: {}]
  %s1 = inlined_call_operand.vmem [shape: f32[2,8,1], index: 1, kind: input, shape index: {}]
  %s2 = inlined_call_operand.vmem [shape: f32[9,1,256], index: 2, kind: input, shape index: {}]
  %s3 = inlined_call_operand.vmem [shape: f32[4,1], index: 3, kind: input, shape index: {}]
  %s4 = inlined_call_operand.vmem [shape: f32[4,1], index: 4, kind: input, shape index: {}]
  %s5 = inlined_call_operand.vmem [shape: f32[9,8,4], index: 5, kind: input, shape index: {}]
  %s6 = inlined_call_operand.vmem [shape: f32[8,1], index: 6, kind: input, shape index: {}]
  %s7 = inlined_call_operand.vmem [shape: f32[8,1], index: 7, kind: input, shape index: {}]
  %s8 = inlined_call_operand.vmem [shape: f32[9,8,8], index: 8, kind: input, shape index: {}]
  %s9 = inlined_call_operand.vmem [shape: f32[8,1], index: 9, kind: input, shape index: {}]
  %s10 = inlined_call_operand.vmem [shape: f32[4,2], index: 10, kind: input, shape index: {}]
  %s11 = inlined_call_operand.vmem [shape: f32[2,4], index: 11, kind: input, shape index: {}]
  %s12 = inlined_call_operand.vmem [shape: f32[8,2], index: 12, kind: input, shape index: {}]
  %s13 = inlined_call_operand.vmem [shape: f32[2,8], index: 13, kind: input, shape index: {}]
  %s14 = inlined_call_operand.vmem [shape: f32[8,4], index: 14, kind: input, shape index: {}]
  %s15 = inlined_call_operand.vmem [shape: f32[8,1], index: 15, kind: input, shape index: {}]
  %s16 = inlined_call_operand.hbm [shape: f32[2,8,256], index: 16, kind: output, shape index: {}]
  %s17 = sld [smem:[#allocation0]]
  $region97: #{tpu_custom_call.1} parent=0
    _
  %s19 = ssub.s32 1, %s17
  %s20 = scalar_select 0, %s19, %s17
  $region1: #{tpu_custom_call.1} parent=0
    #allocation2 [shape = 'u8[16384]{0}', space=vmem, size = 0x4000, scoped, tag = 'output window, operand 0']
    #allocation3 [shape = 's32[2]{0}', space=sflag, size = 0x8, scoped, tag = 'scoped memory for tpu_custom_call.1']
    %21 = vsyncpa [#allocation3], 0
    %s22 = scalar_lea.sflag [#allocation3], 1
    %23 = vsyncpa %s22, 0
    loop: start=0, step=1, limit=4
    $region2: #{tpu_custom_call.1} parent=1 // loop_pre_header
      _
    $region3: #{tpu_custom_call.1} parent=1 // loop_header
      %s25 = sphi 0, %s29
      %p26 = scmp.ge.s32.totalorder %s25, 4
      %s35 = sphi 0, %s37
      %s38 = sphi 0, %s35
      %s39 = sphi 0, %s38
      %s55 = sphi 0, %s39
      %s61 = sphi 0, %s63
      %s64 = sphi 0, %s61
      %s65 = sphi 0, %s64
      %s81 = sphi 0, %s65
      %s85 = sphi 0, %s85
      %s87 = sphi 0, %s85
      %s88 = sphi 0, %s87
      %s102 = sphi 0, %s88
      %s106 = sphi 0, %s106
      %s108 = sphi 0, %s106
      %s109 = sphi 0, %s108
      %s123 = sphi 0, %s109
      %s127 = sphi 0, %s127
      %s129 = sphi 0, %s127
      %s130 = sphi 0, %s129
      %s144 = sphi 0, %s130
      %s148 = sphi 0, %s148
      %s150 = sphi 0, %s148
      %s151 = sphi 0, %s150
      %s165 = sphi 0, %s151
      %s169 = sphi 0, %s169
      %s171 = sphi 0, %s169
      %s172 = sphi 0, %s171
      %s186 = sphi 0, %s172
      %s190 = sphi 0, %s190
      %s192 = sphi 0, %s190
      %s193 = sphi 0, %s192
      %s207 = sphi 0, %s193
      %s211 = sphi 0, %s211
      %s213 = sphi 0, %s211
      %s214 = sphi 0, %s213
      %s228 = sphi 0, %s214
      %s232 = sphi 0, %s232
      %s234 = sphi 0, %s232
      %s235 = sphi 0, %s234
      %s249 = sphi 0, %s235
      %s253 = sphi 0, %s253
      %s255 = sphi 0, %s253
      %s256 = sphi 0, %s255
      %s270 = sphi 0, %s256
      %s274 = sphi 0, %s274
      %s276 = sphi 0, %s274
      %s277 = sphi 0, %s276
      %s291 = sphi 0, %s277
      %s295 = sphi 0, %s295
      %s297 = sphi 0, %s295
      %s298 = sphi 0, %s297
      %s312 = sphi 0, %s298
      %s316 = sphi 0, %s316
      %s318 = sphi 0, %s316
      %s319 = sphi 0, %s318
      %s333 = sphi 0, %s319
      %s337 = sphi 0, %s337
      %s339 = sphi 0, %s337
      %s340 = sphi 0, %s339
      %s354 = sphi 0, %s340
      %s358 = sphi 0, %s358
      %s360 = sphi 0, %s358
      %s361 = sphi 0, %s360
      %s375 = sphi 0, %s361
      %s381 = sphi 0, %s383
      %s384 = sphi 0, %s381
      %s385 = sphi 0, %s384
      %s401 = sphi 0, %s385
    $region4: #{tpu_custom_call.1} parent=1 // loop_header_branch
      %28 = sbr.rel (%p26) target = $region8
    $region5: #{tpu_custom_call.1} parent=1 // loop_body
      %s30 = ssub.s32 %s25, 1
      %s31 = ssub.s32 %s25, 2
      %s32 = sadd.s32 %s25, 1
      %s33 = ssub.s32 %s25, %s32
      %p34 = scmp.eq.s32.totalorder %s33, 0
      %s36 = sadd.s32 %s35, 1
      %s37 = scalar_select %p34, %s35, %s36
      %p40 = pneg %p34
      %p41 = scmp.eq.s32.totalorder %s25, 1
      %p42 = por %p40, %p41
      %p43 = scmp.ne.s32.totalorder %s35, %s38
      %p44 = scmp.eq.s32.totalorder %s25, 0
      %p45 = por %p43, %p44
      %p46 = scmp.ne.s32.totalorder %s35, %s38
      %p47 = scmp.eq.s32.totalorder %s30, 1
      %p48 = por %p46, %p47
      %p49 = scmp.ne.s32.totalorder %s38, %s39
      %p50 = scmp.eq.s32.totalorder %s30, 0
      %p51 = por %p49, %p50
      %p52 = scmp.ne.s32.totalorder %s38, %s39
      %p53 = scmp.eq.s32.totalorder %s31, 1
      %p54 = por %p52, %p53
      %p56 = scmp.ne.s32.totalorder %s39, %s55
      %p57 = scmp.eq.s32.totalorder %s31, 0
      %p58 = por %p56, %p57
      %s59 = ssub.s32 %s25, %s32
      %p60 = scmp.eq.s32.totalorder %s59, 0
      %s62 = sadd.s32 %s61, 1
      %s63 = scalar_select %p60, %s61, %s62
      %p66 = pneg %p60
      %p67 = scmp.eq.s32.totalorder %s25, 1
      %p68 = por %p66, %p67
      %p69 = scmp.ne.s32.totalorder %s61, %s64
      %p70 = scmp.eq.s32.totalorder %s25, 0
      %p71 = por %p69, %p70
      %p72 = scmp.ne.s32.totalorder %s61, %s64
      %p73 = scmp.eq.s32.totalorder %s30, 1
      %p74 = por %p72, %p73
      %p75 = scmp.ne.s32.totalorder %s64, %s65
      %p76 = scmp.eq.s32.totalorder %s30, 0
      %p77 = por %p75, %p76
      %p78 = scmp.ne.s32.totalorder %s64, %s65
      %p79 = scmp.eq.s32.totalorder %s31, 1
      %p80 = por %p78, %p79
      %p82 = scmp.ne.s32.totalorder %s65, %s81
      %p83 = scmp.eq.s32.totalorder %s31, 0
      %p84 = por %p82, %p83
      %s86 = sadd.s32 %s85, 1
      %p89 = scmp.eq.s32.totalorder %s25, 1
      %p90 = scmp.ne.s32.totalorder %s85, %s87
      %p91 = scmp.eq.s32.totalorder %s25, 0
      %p92 = por %p90, %p91
      %p93 = scmp.ne.s32.totalorder %s85, %s87
      %p94 = scmp.eq.s32.totalorder %s30, 1
      %p95 = por %p93, %p94
      %p96 = scmp.ne.s32.totalorder %s87, %s88
      %p97 = scmp.eq.s32.totalorder %s30, 0
      %p98 = por %p96, %p97
      %p99 = scmp.ne.s32.totalorder %s87, %s88
      %p100 = scmp.eq.s32.totalorder %s31, 1
      %p101 = por %p99, %p100
      %p103 = scmp.ne.s32.totalorder %s88, %s102
      %p104 = scmp.eq.s32.totalorder %s31, 0
      %p105 = por %p103, %p104
      %s107 = sadd.s32 %s106, 1
      %p110 = scmp.eq.s32.totalorder %s25, 1
      %p111 = scmp.ne.s32.totalorder %s106, %s108
      %p112 = scmp.eq.s32.totalorder %s25, 0
      %p113 = por %p111, %p112
      %p114 = scmp.ne.s32.totalorder %s106, %s108
      %p115 = scmp.eq.s32.totalorder %s30, 1
      %p116 = por %p114, %p115
      %p117 = scmp.ne.s32.totalorder %s108, %s109
      %p118 = scmp.eq.s32.totalorder %s30, 0
      %p119 = por %p117, %p118
      %p120 = scmp.ne.s32.totalorder %s108, %s109
      %p121 = scmp.eq.s32.totalorder %s31, 1
      %p122 = por %p120, %p121
      %p124 = scmp.ne.s32.totalorder %s109, %s123
      %p125 = scmp.eq.s32.totalorder %s31, 0
      %p126 = por %p124, %p125
      %s128 = sadd.s32 %s127, 1
      %p131 = scmp.eq.s32.totalorder %s25, 1
      %p132 = scmp.ne.s32.totalorder %s127, %s129
      %p133 = scmp.eq.s32.totalorder %s25, 0
      %p134 = por %p132, %p133
      %p135 = scmp.ne.s32.totalorder %s127, %s129
      %p136 = scmp.eq.s32.totalorder %s30, 1
      %p137 = por %p135, %p136
      %p138 = scmp.ne.s32.totalorder %s129, %s130
      %p139 = scmp.eq.s32.totalorder %s30, 0
      %p140 = por %p138, %p139
      %p141 = scmp.ne.s32.totalorder %s129, %s130
      %p142 = scmp.eq.s32.totalorder %s31, 1
      %p143 = por %p141, %p142
      %p145 = scmp.ne.s32.totalorder %s130, %s144
      %p146 = scmp.eq.s32.totalorder %s31, 0
      %p147 = por %p145, %p146
      %s149 = sadd.s32 %s148, 1
      %p152 = scmp.eq.s32.totalorder %s25, 1
      %p153 = scmp.ne.s32.totalorder %s148, %s150
      %p154 = scmp.eq.s32.totalorder %s25, 0
      %p155 = por %p153, %p154
      %p156 = scmp.ne.s32.totalorder %s148, %s150
      %p157 = scmp.eq.s32.totalorder %s30, 1
      %p158 = por %p156, %p157
      %p159 = scmp.ne.s32.totalorder %s150, %s151
      %p160 = scmp.eq.s32.totalorder %s30, 0
      %p161 = por %p159, %p160
      %p162 = scmp.ne.s32.totalorder %s150, %s151
      %p163 = scmp.eq.s32.totalorder %s31, 1
      %p164 = por %p162, %p163
      %p166 = scmp.ne.s32.totalorder %s151, %s165
      %p167 = scmp.eq.s32.totalorder %s31, 0
      %p168 = por %p166, %p167
      %s170 = sadd.s32 %s169, 1
      %p173 = scmp.eq.s32.totalorder %s25, 1
      %p174 = scmp.ne.s32.totalorder %s169, %s171
      %p175 = scmp.eq.s32.totalorder %s25, 0
      %p176 = por %p174, %p175
      %p177 = scmp.ne.s32.totalorder %s169, %s171
      %p178 = scmp.eq.s32.totalorder %s30, 1
      %p179 = por %p177, %p178
      %p180 = scmp.ne.s32.totalorder %s171, %s172
      %p181 = scmp.eq.s32.totalorder %s30, 0
      %p182 = por %p180, %p181
      %p183 = scmp.ne.s32.totalorder %s171, %s172
      %p184 = scmp.eq.s32.totalorder %s31, 1
      %p185 = por %p183, %p184
      %p187 = scmp.ne.s32.totalorder %s172, %s186
      %p188 = scmp.eq.s32.totalorder %s31, 0
      %p189 = por %p187, %p188
      %s191 = sadd.s32 %s190, 1
      %p194 = scmp.eq.s32.totalorder %s25, 1
      %p195 = scmp.ne.s32.totalorder %s190, %s192
      %p196 = scmp.eq.s32.totalorder %s25, 0
      %p197 = por %p195, %p196
      %p198 = scmp.ne.s32.totalorder %s190, %s192
      %p199 = scmp.eq.s32.totalorder %s30, 1
      %p200 = por %p198, %p199
      %p201 = scmp.ne.s32.totalorder %s192, %s193
      %p202 = scmp.eq.s32.totalorder %s30, 0
      %p203 = por %p201, %p202
      %p204 = scmp.ne.s32.totalorder %s192, %s193
      %p205 = scmp.eq.s32.totalorder %s31, 1
      %p206 = por %p204, %p205
      %p208 = scmp.ne.s32.totalorder %s193, %s207
      %p209 = scmp.eq.s32.totalorder %s31, 0
      %p210 = por %p208, %p209
      %s212 = sadd.s32 %s211, 1
      %p215 = scmp.eq.s32.totalorder %s25, 1
      %p216 = scmp.ne.s32.totalorder %s211, %s213
      %p217 = scmp.eq.s32.totalorder %s25, 0
      %p218 = por %p216, %p217
      %p219 = scmp.ne.s32.totalorder %s211, %s213
      %p220 = scmp.eq.s32.totalorder %s30, 1
      %p221 = por %p219, %p220
      %p222 = scmp.ne.s32.totalorder %s213, %s214
      %p223 = scmp.eq.s32.totalorder %s30, 0
      %p224 = por %p222, %p223
      %p225 = scmp.ne.s32.totalorder %s213, %s214
      %p226 = scmp.eq.s32.totalorder %s31, 1
      %p227 = por %p225, %p226
      %p229 = scmp.ne.s32.totalorder %s214, %s228
      %p230 = scmp.eq.s32.totalorder %s31, 0
      %p231 = por %p229, %p230
      %s233 = sadd.s32 %s232, 1
      %p236 = scmp.eq.s32.totalorder %s25, 1
      %p237 = scmp.ne.s32.totalorder %s232, %s234
      %p238 = scmp.eq.s32.totalorder %s25, 0
      %p239 = por %p237, %p238
      %p240 = scmp.ne.s32.totalorder %s232, %s234
      %p241 = scmp.eq.s32.totalorder %s30, 1
      %p242 = por %p240, %p241
      %p243 = scmp.ne.s32.totalorder %s234, %s235
      %p244 = scmp.eq.s32.totalorder %s30, 0
      %p245 = por %p243, %p244
      %p246 = scmp.ne.s32.totalorder %s234, %s235
      %p247 = scmp.eq.s32.totalorder %s31, 1
      %p248 = por %p246, %p247
      %p250 = scmp.ne.s32.totalorder %s235, %s249
      %p251 = scmp.eq.s32.totalorder %s31, 0
      %p252 = por %p250, %p251
      %s254 = sadd.s32 %s253, 1
      %p257 = scmp.eq.s32.totalorder %s25, 1
      %p258 = scmp.ne.s32.totalorder %s253, %s255
      %p259 = scmp.eq.s32.totalorder %s25, 0
      %p260 = por %p258, %p259
      %p261 = scmp.ne.s32.totalorder %s253, %s255
      %p262 = scmp.eq.s32.totalorder %s30, 1
      %p263 = por %p261, %p262
      %p264 = scmp.ne.s32.totalorder %s255, %s256
      %p265 = scmp.eq.s32.totalorder %s30, 0
      %p266 = por %p264, %p265
      %p267 = scmp.ne.s32.totalorder %s255, %s256
      %p268 = scmp.eq.s32.totalorder %s31, 1
      %p269 = por %p267, %p268
      %p271 = scmp.ne.s32.totalorder %s256, %s270
      %p272 = scmp.eq.s32.totalorder %s31, 0
      %p273 = por %p271, %p272
      %s275 = sadd.s32 %s274, 1
      %p278 = scmp.eq.s32.totalorder %s25, 1
      %p279 = scmp.ne.s32.totalorder %s274, %s276
      %p280 = scmp.eq.s32.totalorder %s25, 0
      %p281 = por %p279, %p280
      %p282 = scmp.ne.s32.totalorder %s274, %s276
      %p283 = scmp.eq.s32.totalorder %s30, 1
      %p284 = por %p282, %p283
      %p285 = scmp.ne.s32.totalorder %s276, %s277
      %p286 = scmp.eq.s32.totalorder %s30, 0
      %p287 = por %p285, %p286
      %p288 = scmp.ne.s32.totalorder %s276, %s277
      %p289 = scmp.eq.s32.totalorder %s31, 1
      %p290 = por %p288, %p289
      %p292 = scmp.ne.s32.totalorder %s277, %s291
      %p293 = scmp.eq.s32.totalorder %s31, 0
      %p294 = por %p292, %p293
      %s296 = sadd.s32 %s295, 1
      %p299 = scmp.eq.s32.totalorder %s25, 1
      %p300 = scmp.ne.s32.totalorder %s295, %s297
      %p301 = scmp.eq.s32.totalorder %s25, 0
      %p302 = por %p300, %p301
      %p303 = scmp.ne.s32.totalorder %s295, %s297
      %p304 = scmp.eq.s32.totalorder %s30, 1
      %p305 = por %p303, %p304
      %p306 = scmp.ne.s32.totalorder %s297, %s298
      %p307 = scmp.eq.s32.totalorder %s30, 0
      %p308 = por %p306, %p307
      %p309 = scmp.ne.s32.totalorder %s297, %s298
      %p310 = scmp.eq.s32.totalorder %s31, 1
      %p311 = por %p309, %p310
      %p313 = scmp.ne.s32.totalorder %s298, %s312
      %p314 = scmp.eq.s32.totalorder %s31, 0
      %p315 = por %p313, %p314
      %s317 = sadd.s32 %s316, 1
      %p320 = scmp.eq.s32.totalorder %s25, 1
      %p321 = scmp.ne.s32.totalorder %s316, %s318
      %p322 = scmp.eq.s32.totalorder %s25, 0
      %p323 = por %p321, %p322
      %p324 = scmp.ne.s32.totalorder %s316, %s318
      %p325 = scmp.eq.s32.totalorder %s30, 1
      %p326 = por %p324, %p325
      %p327 = scmp.ne.s32.totalorder %s318, %s319
      %p328 = scmp.eq.s32.totalorder %s30, 0
      %p329 = por %p327, %p328
      %p330 = scmp.ne.s32.totalorder %s318, %s319
      %p331 = scmp.eq.s32.totalorder %s31, 1
      %p332 = por %p330, %p331
      %p334 = scmp.ne.s32.totalorder %s319, %s333
      %p335 = scmp.eq.s32.totalorder %s31, 0
      %p336 = por %p334, %p335
      %s338 = sadd.s32 %s337, 1
      %p341 = scmp.eq.s32.totalorder %s25, 1
      %p342 = scmp.ne.s32.totalorder %s337, %s339
      %p343 = scmp.eq.s32.totalorder %s25, 0
      %p344 = por %p342, %p343
      %p345 = scmp.ne.s32.totalorder %s337, %s339
      %p346 = scmp.eq.s32.totalorder %s30, 1
      %p347 = por %p345, %p346
      %p348 = scmp.ne.s32.totalorder %s339, %s340
      %p349 = scmp.eq.s32.totalorder %s30, 0
      %p350 = por %p348, %p349
      %p351 = scmp.ne.s32.totalorder %s339, %s340
      %p352 = scmp.eq.s32.totalorder %s31, 1
      %p353 = por %p351, %p352
      %p355 = scmp.ne.s32.totalorder %s340, %s354
      %p356 = scmp.eq.s32.totalorder %s31, 0
      %p357 = por %p355, %p356
      %s359 = sadd.s32 %s358, 1
      %p362 = scmp.eq.s32.totalorder %s25, 1
      %p363 = scmp.ne.s32.totalorder %s358, %s360
      %p364 = scmp.eq.s32.totalorder %s25, 0
      %p365 = por %p363, %p364
      %p366 = scmp.ne.s32.totalorder %s358, %s360
      %p367 = scmp.eq.s32.totalorder %s30, 1
      %p368 = por %p366, %p367
      %p369 = scmp.ne.s32.totalorder %s360, %s361
      %p370 = scmp.eq.s32.totalorder %s30, 0
      %p371 = por %p369, %p370
      %p372 = scmp.ne.s32.totalorder %s360, %s361
      %p373 = scmp.eq.s32.totalorder %s31, 1
      %p374 = por %p372, %p373
      %p376 = scmp.ne.s32.totalorder %s361, %s375
      %p377 = scmp.eq.s32.totalorder %s31, 0
      %p378 = por %p376, %p377
      %s379 = ssub.s32 %s25, %s32
      %p380 = scmp.eq.s32.totalorder %s379, 0
      %s382 = sadd.s32 %s381, 1
      %s383 = scalar_select %p380, %s381, %s382
      %p386 = pneg %p380
      %p387 = scmp.eq.s32.totalorder %s25, 1
      %p388 = por %p386, %p387
      %p389 = scmp.ne.s32.totalorder %s381, %s384
      %p390 = scmp.eq.s32.totalorder %s25, 0
      %p391 = por %p389, %p390
      %p392 = scmp.ne.s32.totalorder %s381, %s384
      %p393 = scmp.eq.s32.totalorder %s30, 1
      %p394 = por %p392, %p393
      %p395 = scmp.ne.s32.totalorder %s384, %s385
      %p396 = scmp.eq.s32.totalorder %s30, 0
      %p397 = por %p395, %p396
      %p398 = scmp.ne.s32.totalorder %s384, %s385
      %p399 = scmp.eq.s32.totalorder %s31, 1
      %p400 = por %p398, %p399
      %p402 = scmp.ne.s32.totalorder %s385, %s401
      %p403 = scmp.eq.s32.totalorder %s31, 0
      %p404 = por %p402, %p403
      %p405 = scmp.le.s32.totalorder 1, %s25
      %p406 = scmp.lt.s32.totalorder %s25, 3
      %p407 = pnand %p405, %p406
      %p408 = pneg %p407
      // Predicated region
      $region9: #{tpu_custom_call.1} parent=5 // pred_check
        _
      $region10: #{tpu_custom_call.1} parent=5 // pred_check_branch
        %410 = sbr.rel (%p407) target = $region12
      $region11: #{tpu_custom_call.1} parent=5 // pred_region
        %s411 = ssub.s32 %s25, 1
        // Predicated region
        $region13: #{tpu_custom_call.1} parent=11 // pred_check
          %p412 = pneg %p98
        $region14: #{tpu_custom_call.1} parent=11 // pred_check_branch
          %414 = sbr.rel (%p412) target = $region16
        $region15: #{tpu_custom_call.1} parent=11 // pred_region
          _
        $region16: #{tpu_custom_call.1} parent=11 // pred_fallthru
          _
        // Predicated region
        $region17: #{tpu_custom_call.1} parent=11 // pred_check
          %p415 = pneg %p119
        $region18: #{tpu_custom_call.1} parent=11 // pred_check_branch
          %417 = sbr.rel (%p415) target = $region20
        $region19: #{tpu_custom_call.1} parent=11 // pred_region
          _
        $region20: #{tpu_custom_call.1} parent=11 // pred_fallthru
          _
        // Predicated region
        $region21: #{tpu_custom_call.1} parent=11 // pred_check
          %p418 = pneg %p140
        $region22: #{tpu_custom_call.1} parent=11 // pred_check_branch
          %420 = sbr.rel (%p418) target = $region24
        $region23: #{tpu_custom_call.1} parent=11 // pred_region
          _
        $region24: #{tpu_custom_call.1} parent=11 // pred_fallthru
          _
        // Predicated region
        $region25: #{tpu_custom_call.1} parent=11 // pred_check
          %p421 = pneg %p161
        $region26: #{tpu_custom_call.1} parent=11 // pred_check_branch
          %423 = sbr.rel (%p421) target = $region28
        $region27: #{tpu_custom_call.1} parent=11 // pred_region
          _
        $region28: #{tpu_custom_call.1} parent=11 // pred_fallthru
          _
        // Predicated region
        $region29: #{tpu_custom_call.1} parent=11 // pred_check
          %p424 = pneg %p182
        $region30: #{tpu_custom_call.1} parent=11 // pred_check_branch
          %426 = sbr.rel (%p424) target = $region32
        $region31: #{tpu_custom_call.1} parent=11 // pred_region
          _
        $region32: #{tpu_custom_call.1} parent=11 // pred_fallthru
          _
        // Predicated region
        $region33: #{tpu_custom_call.1} parent=11 // pred_check
          %p427 = pneg %p203
        $region34: #{tpu_custom_call.1} parent=11 // pred_check_branch
          %429 = sbr.rel (%p427) target = $region36
        $region35: #{tpu_custom_call.1} parent=11 // pred_region
          _
        $region36: #{tpu_custom_call.1} parent=11 // pred_fallthru
          _
        // Predicated region
        $region37: #{tpu_custom_call.1} parent=11 // pred_check
          %p430 = pneg %p224
        $region38: #{tpu_custom_call.1} parent=11 // pred_check_branch
          %432 = sbr.rel (%p430) target = $region40
        $region39: #{tpu_custom_call.1} parent=11 // pred_region
          _
        $region40: #{tpu_custom_call.1} parent=11 // pred_fallthru
          _
        // Predicated region
        $region41: #{tpu_custom_call.1} parent=11 // pred_check
          %p433 = pneg %p245
        $region42: #{tpu_custom_call.1} parent=11 // pred_check_branch
          %435 = sbr.rel (%p433) target = $region44
        $region43: #{tpu_custom_call.1} parent=11 // pred_region
          _
        $region44: #{tpu_custom_call.1} parent=11 // pred_fallthru
          _
        // Predicated region
        $region45: #{tpu_custom_call.1} parent=11 // pred_check
          %p436 = pneg %p266
        $region46: #{tpu_custom_call.1} parent=11 // pred_check_branch
          %438 = sbr.rel (%p436) target = $region48
        $region47: #{tpu_custom_call.1} parent=11 // pred_region
          _
        $region48: #{tpu_custom_call.1} parent=11 // pred_fallthru
          _
        // Predicated region
        $region49: #{tpu_custom_call.1} parent=11 // pred_check
          %p439 = pneg %p287
        $region50: #{tpu_custom_call.1} parent=11 // pred_check_branch
          %441 = sbr.rel (%p439) target = $region52
        $region51: #{tpu_custom_call.1} parent=11 // pred_region
          _
        $region52: #{tpu_custom_call.1} parent=11 // pred_fallthru
          _
        // Predicated region
        $region53: #{tpu_custom_call.1} parent=11 // pred_check
          %p442 = pneg %p308
        $region54: #{tpu_custom_call.1} parent=11 // pred_check_branch
          %444 = sbr.rel (%p442) target = $region56
        $region55: #{tpu_custom_call.1} parent=11 // pred_region
          _
        $region56: #{tpu_custom_call.1} parent=11 // pred_fallthru
          _
        // Predicated region
        $region57: #{tpu_custom_call.1} parent=11 // pred_check
          %p445 = pneg %p329
        $region58: #{tpu_custom_call.1} parent=11 // pred_check_branch
          %447 = sbr.rel (%p445) target = $region60
        $region59: #{tpu_custom_call.1} parent=11 // pred_region
          _
        $region60: #{tpu_custom_call.1} parent=11 // pred_fallthru
          _
        // Predicated region
        $region61: #{tpu_custom_call.1} parent=11 // pred_check
          %p448 = pneg %p350
        $region62: #{tpu_custom_call.1} parent=11 // pred_check_branch
          %450 = sbr.rel (%p448) target = $region64
        $region63: #{tpu_custom_call.1} parent=11 // pred_region
          _
        $region64: #{tpu_custom_call.1} parent=11 // pred_fallthru
          _
        // Predicated region
        $region65: #{tpu_custom_call.1} parent=11 // pred_check
          %p451 = pneg %p371
        $region66: #{tpu_custom_call.1} parent=11 // pred_check_branch
          %453 = sbr.rel (%p451) target = $region68
        $region67: #{tpu_custom_call.1} parent=11 // pred_region
          _
        $region68: #{tpu_custom_call.1} parent=11 // pred_fallthru
          _
      $region12: #{tpu_custom_call.1} parent=5 // pred_fallthru
        _
      %p454 = scmp.lt.s32.totalorder %s25, 2
      // Predicated region
      $region69: #{tpu_custom_call.1} parent=5 // pred_check
        %p455 = pneg %p454
      $region70: #{tpu_custom_call.1} parent=5 // pred_check_branch
        %457 = sbr.rel (%p455) target = $region72
      $region71: #{tpu_custom_call.1} parent=5 // pred_region
        // Predicated region
        $region73: #{tpu_custom_call.1} parent=71 // pred_check
          %p458 = pneg %p45
        $region74: #{tpu_custom_call.1} parent=71 // pred_check_branch
          %460 = sbr.rel (%p458) target = $region76
        $region75: #{tpu_custom_call.1} parent=71 // pred_region
          %p461 = scmp.lt.s32.totalorder %s25, 1
          %s462 = scalar_select %p461, %s25, 1
          %s463 = smul.addr %s462, 2
          %s464 = smul.addr %s463, 4
          %s465 = scalar_lea.vmem %s0, %s464
        $region76: #{tpu_custom_call.1} parent=71 // pred_fallthru
          _
        // Predicated region
        $region77: #{tpu_custom_call.1} parent=71 // pred_check
          %p466 = pneg %p71
        $region78: #{tpu_custom_call.1} parent=71 // pred_check_branch
          %468 = sbr.rel (%p466) target = $region80
        $region79: #{tpu_custom_call.1} parent=71 // pred_region
          %p469 = scmp.lt.s32.totalorder %s25, 1
          %s470 = scalar_select %p469, %s25, 1
          %s471 = smul.addr %s470, 8
          %s472 = scalar_lea.vmem %s1, %s471
        $region80: #{tpu_custom_call.1} parent=71 // pred_fallthru
          _
      $region72: #{tpu_custom_call.1} parent=5 // pred_fallthru
        _
      %p473 = scmp.le.s32.totalorder 1, %s25
      %p474 = scmp.lt.s32.totalorder %s25, 3
      %p475 = pnand %p473, %p474
      %p476 = pneg %p475
      // Predicated region
      $region81: #{tpu_custom_call.1} parent=5 // pred_check
        _
      $region82: #{tpu_custom_call.1} parent=5 // pred_check_branch
        %478 = sbr.rel (%p475) target = $region84
      $region83: #{tpu_custom_call.1} parent=5 // pred_region
        %s479 = ssub.s32 %s25, 1
        %p480 = scmp.lt.s32.totalorder %s30, 1
        %s481 = scalar_select %p480, %s30, 1
        %s482 = smul.addr %s481, 2
        %s483 = smul.addr %s482, 4
        %s484 = scalar_lea.vmem %s0, %s483
        %p485 = pneg %p51
        %p486 = pneg %p48
        %p487 = scmp.lt.s32.totalorder %s30, 1
        %s488 = scalar_select %p487, %s30, 1
        %s489 = smul.addr %s488, 8
        %s490 = scalar_lea.vmem %s1, %s489
        %p491 = pneg %p77
        %p492 = pneg %p74
        %p493 = pneg %p98
        %p494 = pneg %p95
        %p495 = pneg %p119
        %p496 = pneg %p116
        %p497 = pneg %p140
        %p498 = pneg %p137
        %p499 = pneg %p161
        %p500 = pneg %p158
        %p501 = pneg %p182
        %p502 = pneg %p179
        %p503 = pneg %p203
        %p504 = pneg %p200
        %p505 = pneg %p224
        %p506 = pneg %p221
        %p507 = pneg %p245
        %p508 = pneg %p242
        %p509 = pneg %p266
        %p510 = pneg %p263
        %p511 = pneg %p287
        %p512 = pneg %p284
        %p513 = pneg %p308
        %p514 = pneg %p305
        %p515 = pneg %p329
        %p516 = pneg %p326
        %p517 = pneg %p350
        %p518 = pneg %p347
        %p519 = pneg %p371
        %p520 = pneg %p368
        %p521 = pneg %p397
        %p522 = pneg %p394
        %s523 = sand.u32 %s384, 1
        %s524 = scalar_lea.sflag [#allocation3], %s523
        %s525 = sand.u32 %s384, 1
        %s526 = smul.addr %s525, 16
        %s527 = scalar_lea.vmem [#allocation2], %s526
        %p528 = scmp.lt.s32.totalorder %s30, 1
        %s529 = scalar_select %p528, %s30, 1
        %s530 = smul.addr %s529, 2
        %s531 = smul.addr %s530, 4
        %s532 = scalar_lea.vmem %s0, %s531
        %p533 = scmp.lt.s32.totalorder %s30, 1
        %s534 = scalar_select %p533, %s30, 1
        %s535 = smul.addr %s534, 8
        %s536 = scalar_lea.vmem %s1, %s535
        %v537 = vld [vmem:[%s532] sm:$0xff]
        %v539 = vcombine.high %v537, %v537
        %vm541 = vcmask 1043456
        %v542 = vsel %vm541, %v537, 0.0
        %v543 = vsel %vm541, %v539, 0.0
        %v544 = vadd.f32 %v542, %v543
        %545 = vadd.xlane.f32.xlu0 %v544
        %v546 = vpop.xlane.xlu0 %545
        %v547 = vld [vmem:[%s11] sm:$0x3]
        %vm548 = vcmask 31744
        %v550 = vsel %vm548, %v547, 0
        %v553 = vsel %vm541, %v546, 0
        %555 = vmatprep.subr.mxu0 0.0
        %556 = vmatpush1.msra.mxu0 %v553
        %557 = vmatprep.subr.mxu0 0.0
        %558 = vmatpush1.msra.mxu0 0.0
        %559 = vmatprep.subr.mxu0 0.0
        %560 = vmatpush1.msra.mxu0 0.0
        %561 = vmatprep.subr.mxu0 0.0
        %562 = vmatpush1.msra.mxu0 0.0
        %563 = vmatprep.subr.mxu0 0.0
        %564 = vmatpush1.msra.mxu0 0.0
        %565 = vmatprep.subr.mxu0 0.0
        %566 = vmatpush1.msra.mxu0 0.0
        %567 = vmatprep.subr.mxu0 0.0
        %568 = vmatpush1.msra.mxu0 0.0
        %569 = vmatprep.subr.mxu0 0.0
        %570 = vmatpush1.msra.mxu0 0.0
        %571 = vmatprep.subr.mxu0 0.0
        %572 = vmatpush1.msra.mxu0 0.0
        %573 = vmatprep.subr.mxu0 0.0
        %574 = vmatpush1.msra.mxu0 0.0
        %575 = vmatprep.subr.mxu0 0.0
        %576 = vmatpush1.msra.mxu0 0.0
        %577 = vmatprep.subr.mxu0 0.0
        %578 = vmatpush1.msra.mxu0 0.0
        %579 = vmatprep.subr.mxu0 0.0
        %580 = vmatpush1.msra.mxu0 0.0
        %581 = vmatprep.subr.mxu0 0.0
        %582 = vmatpush1.msra.mxu0 0.0
        %583 = vmatprep.subr.mxu0 0.0
        %584 = vmatpush1.msra.mxu0 0.0
        %585 = vmatprep.subr.mxu0 0.0
        %586 = vmatpush1.msra.mxu0 0.0
        %587 = vmatprep.subr.mxu0 0.0
        %588 = vmatpush1.msra.mxu0 0.0
        %589 = vmatprep.subr.mxu0 0.0
        %590 = vmatpush1.msra.mxu0 0.0
        %591 = vmatprep.subr.mxu0 0.0
        %592 = vmatpush1.msra.mxu0 0.0
        %593 = vmatprep.subr.mxu0 0.0
        %594 = vmatpush1.msra.mxu0 0.0
        %595 = vmatprep.subr.mxu0 0.0
        %596 = vmatpush1.msra.mxu0 0.0
        %597 = vmatprep.subr.mxu0 0.0
        %598 = vmatpush1.msra.mxu0 0.0
        %599 = vmatprep.subr.mxu0 0.0
        %600 = vmatpush1.msra.mxu0 0.0
        %601 = vmatprep.subr.mxu0 0.0
        %602 = vmatpush1.msra.mxu0 0.0
        %603 = vmatprep.subr.mxu0 0.0
        %604 = vmatpush1.msra.mxu0 0.0
        %605 = vmatprep.subr.mxu0 0.0
        %606 = vmatpush1.msra.mxu0 0.0
        %607 = vmatprep.subr.mxu0 0.0
        %608 = vmatpush1.msra.mxu0 0.0
        %609 = vmatprep.subr.mxu0 0.0
        %610 = vmatpush1.msra.mxu0 0.0
        %611 = vmatprep.subr.mxu0 0.0
        %612 = vmatpush1.msra.mxu0 0.0
        %613 = vmatprep.subr.mxu0 0.0
        %614 = vmatpush1.msra.mxu0 0.0
        %615 = vmatprep.subr.mxu0 0.0
        %616 = vmatpush1.msra.mxu0 0.0
        %617 = vmatprep.subr.mxu0 0.0
        %618 = vmatpush1.msra.mxu0 0.0
        %619 = vmatprep.mubr.f32.mxu0 0.0
        %620 = vmatmul.mubr.f32.gmra.mrb[0].mxu0 %v550
        %v621 = vpop.f32.mrb[0].mxu0
        %v622 = vadd.f32 0.0, %v621
        %v623 = vpop.f32.mrb[0].mxu0
        %624 = vdwg.mxu0
        %v625 = vrcp.pop 512.0
        %v626 = vmul.f32 %v622, %v625
        %v627 = vld [vmem:[%s10] sm:$0xf]
        %vm628 = vcmask 15360
        %v630 = vsel %vm628, %v627, 0
        %vm632 = vcmask 1041408
        %v634 = vsel %vm632, %v626, 0
        %636 = vmatprep.subr.mxu0 0.0
        %637 = vmatpush1.msra.mxu0 %v634
        %638 = vmatprep.subr.mxu0 0.0
        %639 = vmatpush1.msra.mxu0 0.0
        %640 = vmatprep.subr.mxu0 0.0
        %641 = vmatpush1.msra.mxu0 0.0
        %642 = vmatprep.subr.mxu0 0.0
        %643 = vmatpush1.msra.mxu0 0.0
        %644 = vmatprep.subr.mxu0 0.0
        %645 = vmatpush1.msra.mxu0 0.0
        %646 = vmatprep.subr.mxu0 0.0
        %647 = vmatpush1.msra.mxu0 0.0
        %648 = vmatprep.subr.mxu0 0.0
        %649 = vmatpush1.msra.mxu0 0.0
        %650 = vmatprep.subr.mxu0 0.0
        %651 = vmatpush1.msra.mxu0 0.0
        %652 = vmatprep.subr.mxu0 0.0
        %653 = vmatpush1.msra.mxu0 0.0
        %654 = vmatprep.subr.mxu0 0.0
        %655 = vmatpush1.msra.mxu0 0.0
        %656 = vmatprep.subr.mxu0 0.0
        %657 = vmatpush1.msra.mxu0 0.0
        %658 = vmatprep.subr.mxu0 0.0
        %659 = vmatpush1.msra.mxu0 0.0
        %660 = vmatprep.subr.mxu0 0.0
        %661 = vmatpush1.msra.mxu0 0.0
        %662 = vmatprep.subr.mxu0 0.0
        %663 = vmatpush1.msra.mxu0 0.0
        %664 = vmatprep.subr.mxu0 0.0
        %665 = vmatpush1.msra.mxu0 0.0
        %666 = vmatprep.subr.mxu0 0.0
        %667 = vmatpush1.msra.mxu0 0.0
        %668 = vmatprep.subr.mxu0 0.0
        %669 = vmatpush1.msra.mxu0 0.0
        %670 = vmatprep.subr.mxu0 0.0
        %671 = vmatpush1.msra.mxu0 0.0
        %672 = vmatprep.subr.mxu0 0.0
        %673 = vmatpush1.msra.mxu0 0.0
        %674 = vmatprep.subr.mxu0 0.0
        %675 = vmatpush1.msra.mxu0 0.0
        %676 = vmatprep.subr.mxu0 0.0
        %677 = vmatpush1.msra.mxu0 0.0
        %678 = vmatprep.subr.mxu0 0.0
        %679 = vmatpush1.msra.mxu0 0.0
        %680 = vmatprep.subr.mxu0 0.0
        %681 = vmatpush1.msra.mxu0 0.0
        %682 = vmatprep.subr.mxu0 0.0
        %683 = vmatpush1.msra.mxu0 0.0
        %684 = vmatprep.subr.mxu0 0.0
        %685 = vmatpush1.msra.mxu0 0.0
        %686 = vmatprep.subr.mxu0 0.0
        %687 = vmatpush1.msra.mxu0 0.0
        %688 = vmatprep.subr.mxu0 0.0
        %689 = vmatpush1.msra.mxu0 0.0
        %690 = vmatprep.subr.mxu0 0.0
        %691 = vmatpush1.msra.mxu0 0.0
        %692 = vmatprep.subr.mxu0 0.0
        %693 = vmatpush1.msra.mxu0 0.0
        %694 = vmatprep.subr.mxu0 0.0
        %695 = vmatpush1.msra.mxu0 0.0
        %696 = vmatprep.subr.mxu0 0.0
        %697 = vmatpush1.msra.mxu0 0.0
        %698 = vmatprep.subr.mxu0 0.0
        %699 = vmatpush1.msra.mxu0 0.0
        %700 = vmatprep.mubr.f32.mxu0 0.0
        %701 = vmatmul.mubr.f32.gmra.mrb[0].mxu0 %v630
        %v702 = vpop.f32.mrb[0].mxu0
        %v703 = vadd.f32 0.0, %v702
        %v704 = vpop.f32.mrb[0].mxu0
        %705 = vdwg.mxu0
        %707 = vset.pattern.permute.xlu0 0
        %708 = vperm.xlu0 %707, %v703
        %v709 = vpop.permute.xlu0 %708
        %v711 = vunpack.c.l.s4 839922192
        %v712 = vunpack.c.0.s8 %v711
        %v713 = vlaneseq
        %v714 = vshrl.u32 %v713, 7
        %v715 = vsub.s32 %v712, %v714
        %v716 = vrot.slane %v709, %v715
        %v718 = vsub.f32 %v537, %v716
        %v719 = vmul.f32 %v718, %v718
        %v721 = vcombine.high %v719, %v719
        %v723 = vsel %vm541, %v719, 0.0
        %v724 = vsel %vm541, %v721, 0.0
        %v725 = vadd.f32 %v723, %v724
        %726 = vadd.xlane.f32.xlu0 %v725
        %v727 = vpop.xlane.xlu0 %726
        %v729 = vsel %vm541, %v727, 0
        %731 = vmatprep.subr.mxu0 0.0
        %732 = vmatpush1.msra.mxu0 %v729
        %733 = vmatprep.subr.mxu0 0.0
        %734 = vmatpush1.msra.mxu0 0.0
        %735 = vmatprep.subr.mxu0 0.0
        %736 = vmatpush1.msra.mxu0 0.0
        %737 = vmatprep.subr.mxu0 0.0
        %738 = vmatpush1.msra.mxu0 0.0
        %739 = vmatprep.subr.mxu0 0.0
        %740 = vmatpush1.msra.mxu0 0.0
        %741 = vmatprep.subr.mxu0 0.0
        %742 = vmatpush1.msra.mxu0 0.0
        %743 = vmatprep.subr.mxu0 0.0
        %744 = vmatpush1.msra.mxu0 0.0
        %745 = vmatprep.subr.mxu0 0.0
        %746 = vmatpush1.msra.mxu0 0.0
        %747 = vmatprep.subr.mxu0 0.0
        %748 = vmatpush1.msra.mxu0 0.0
        %749 = vmatprep.subr.mxu0 0.0
        %750 = vmatpush1.msra.mxu0 0.0
        %751 = vmatprep.subr.mxu0 0.0
        %752 = vmatpush1.msra.mxu0 0.0
        %753 = vmatprep.subr.mxu0 0.0
        %754 = vmatpush1.msra.mxu0 0.0
        %755 = vmatprep.subr.mxu0 0.0
        %756 = vmatpush1.msra.mxu0 0.0
        %757 = vmatprep.subr.mxu0 0.0
        %758 = vmatpush1.msra.mxu0 0.0
        %759 = vmatprep.subr.mxu0 0.0
        %760 = vmatpush1.msra.mxu0 0.0
        %761 = vmatprep.subr.mxu0 0.0
        %762 = vmatpush1.msra.mxu0 0.0
        %763 = vmatprep.subr.mxu0 0.0
        %764 = vmatpush1.msra.mxu0 0.0
        %765 = vmatprep.subr.mxu0 0.0
        %766 = vmatpush1.msra.mxu0 0.0
        %767 = vmatprep.subr.mxu0 0.0
        %768 = vmatpush1.msra.mxu0 0.0
        %769 = vmatprep.subr.mxu0 0.0
        %770 = vmatpush1.msra.mxu0 0.0
        %771 = vmatprep.subr.mxu0 0.0
        %772 = vmatpush1.msra.mxu0 0.0
        %773 = vmatprep.subr.mxu0 0.0
        %774 = vmatpush1.msra.mxu0 0.0
        %775 = vmatprep.subr.mxu0 0.0
        %776 = vmatpush1.msra.mxu0 0.0
        %777 = vmatprep.subr.mxu0 0.0
        %778 = vmatpush1.msra.mxu0 0.0
        %779 = vmatprep.subr.mxu0 0.0
        %780 = vmatpush1.msra.mxu0 0.0
        %781 = vmatprep.subr.mxu0 0.0
        %782 = vmatpush1.msra.mxu0 0.0
        %783 = vmatprep.subr.mxu0 0.0
        %784 = vmatpush1.msra.mxu0 0.0
        %785 = vmatprep.subr.mxu0 0.0
        %786 = vmatpush1.msra.mxu0 0.0
        %787 = vmatprep.subr.mxu0 0.0
        %788 = vmatpush1.msra.mxu0 0.0
        %789 = vmatprep.subr.mxu0 0.0
        %790 = vmatpush1.msra.mxu0 0.0
        %791 = vmatprep.subr.mxu0 0.0
        %792 = vmatpush1.msra.mxu0 0.0
        %793 = vmatprep.subr.mxu0 0.0
        %794 = vmatpush1.msra.mxu0 0.0
        %795 = vmatprep.mubr.f32.mxu0 0.0
        %796 = vmatmul.mubr.f32.gmra.mrb[0].mxu0 %v550
        %v797 = vpop.f32.mrb[0].mxu0
        %v798 = vadd.f32 0.0, %v797
        %v799 = vpop.f32.mrb[0].mxu0
        %800 = vdwg.mxu0
        %v801 = vmul.f32 %v798, %v625
        %v803 = vsel %vm632, %v801, 0
        %805 = vmatprep.subr.mxu0 0.0
        %806 = vmatpush1.msra.mxu0 %v803
        %807 = vmatprep.subr.mxu0 0.0
        %808 = vmatpush1.msra.mxu0 0.0
        %809 = vmatprep.subr.mxu0 0.0
        %810 = vmatpush1.msra.mxu0 0.0
        %811 = vmatprep.subr.mxu0 0.0
        %812 = vmatpush1.msra.mxu0 0.0
        %813 = vmatprep.subr.mxu0 0.0
        %814 = vmatpush1.msra.mxu0 0.0
        %815 = vmatprep.subr.mxu0 0.0
        %816 = vmatpush1.msra.mxu0 0.0
        %817 = vmatprep.subr.mxu0 0.0
        %818 = vmatpush1.msra.mxu0 0.0
        %819 = vmatprep.subr.mxu0 0.0
        %820 = vmatpush1.msra.mxu0 0.0
        %821 = vmatprep.subr.mxu0 0.0
        %822 = vmatpush1.msra.mxu0 0.0
        %823 = vmatprep.subr.mxu0 0.0
        %824 = vmatpush1.msra.mxu0 0.0
        %825 = vmatprep.subr.mxu0 0.0
        %826 = vmatpush1.msra.mxu0 0.0
        %827 = vmatprep.subr.mxu0 0.0
        %828 = vmatpush1.msra.mxu0 0.0
        %829 = vmatprep.subr.mxu0 0.0
        %830 = vmatpush1.msra.mxu0 0.0
        %831 = vmatprep.subr.mxu0 0.0
        %832 = vmatpush1.msra.mxu0 0.0
        %833 = vmatprep.subr.mxu0 0.0
        %834 = vmatpush1.msra.mxu0 0.0
        %835 = vmatprep.subr.mxu0 0.0
        %836 = vmatpush1.msra.mxu0 0.0
        %837 = vmatprep.subr.mxu0 0.0
        %838 = vmatpush1.msra.mxu0 0.0
        %839 = vmatprep.subr.mxu0 0.0
        %840 = vmatpush1.msra.mxu0 0.0
        %841 = vmatprep.subr.mxu0 0.0
        %842 = vmatpush1.msra.mxu0 0.0
        %843 = vmatprep.subr.mxu0 0.0
        %844 = vmatpush1.msra.mxu0 0.0
        %845 = vmatprep.subr.mxu0 0.0
        %846 = vmatpush1.msra.mxu0 0.0
        %847 = vmatprep.subr.mxu0 0.0
        %848 = vmatpush1.msra.mxu0 0.0
        %849 = vmatprep.subr.mxu0 0.0
        %850 = vmatpush1.msra.mxu0 0.0
        %851 = vmatprep.subr.mxu0 0.0
        %852 = vmatpush1.msra.mxu0 0.0
        %853 = vmatprep.subr.mxu0 0.0
        %854 = vmatpush1.msra.mxu0 0.0
        %855 = vmatprep.subr.mxu0 0.0
        %856 = vmatpush1.msra.mxu0 0.0
        %857 = vmatprep.subr.mxu0 0.0
        %858 = vmatpush1.msra.mxu0 0.0
        %859 = vmatprep.subr.mxu0 0.0
        %860 = vmatpush1.msra.mxu0 0.0
        %861 = vmatprep.subr.mxu0 0.0
        %862 = vmatpush1.msra.mxu0 0.0
        %863 = vmatprep.subr.mxu0 0.0
        %864 = vmatpush1.msra.mxu0 0.0
        %865 = vmatprep.subr.mxu0 0.0
        %866 = vmatpush1.msra.mxu0 0.0
        %867 = vmatprep.subr.mxu0 0.0
        %868 = vmatpush1.msra.mxu0 0.0
        %869 = vmatprep.mubr.f32.mxu0 0.0
        %870 = vmatmul.mubr.f32.gmra.mrb[0].mxu0 %v630
        %v871 = vpop.f32.mrb[0].mxu0
        %v872 = vadd.f32 1e-05, %v871
        %v873 = vpop.f32.mrb[0].mxu0
        %874 = vdwg.mxu0
        %v875 = vrsqrt.pop %v872
        %v876 = vld [vmem:[%s3] sm:$0xf]
        %v877 = vmul.f32 %v875, %v876
        %879 = vset.pattern.permute.xlu0 0
        %880 = vperm.xlu0 %879, %v877
        %v881 = vpop.permute.xlu0 %880
        %v883 = vunpack.c.l.s4 839922192
        %v884 = vunpack.c.0.s8 %v883
        %v885 = vlaneseq
        %v886 = vshrl.u32 %v885, 7
        %v887 = vsub.s32 %v884, %v886
        %v888 = vrot.slane %v881, %v887
        %v890 = vmul.f32 %v718, %v888
        %v891 = vld [vmem:[%s4] sm:$0xf]
        %893 = vset.pattern.permute.xlu0 0
        %894 = vperm.xlu0 %893, %v891
        %v895 = vpop.permute.xlu0 %894
        %v897 = vunpack.c.l.s4 839922192
        %v898 = vunpack.c.0.s8 %v897
        %v899 = vlaneseq
        %v900 = vshrl.u32 %v899, 7
        %v901 = vsub.s32 %v898, %v900
        %v902 = vrot.slane %v895, %v901
        %v904 = vadd.f32 %v890, %v902
        %v905 = vxor.u32 %v904, 2147483648
        %v906 = vmul.f32 %v905, 1.442695
        %v907 = vpow.pop %v906
        %v908 = vadd.f32 %v907, 1.0
        %v909 = vrcp.pop %v908
        %v910 = vmul.f32 1.0, %v909
        %v911 = vmul.f32 %v904, %v910
        %v913 = vcombine.high %v911, %v911
        %915 = vrot.lane.b32.xlu0 %v911, 17
        %v916 = vpop.permute.xlu0 %915
        %917 = vrot.lane.b32.xlu0 %v913, 17
        %v918 = vpop.permute.xlu0 %917
        %v919 = vlaneseq
        %v920 = vand.u32 %v919, 127
        %vm921 = vcmp.lt.s32.totalorder %v920, 17
        %v922 = vsel %vm921, %v916, %v918
        %v923 = vsel %vm921, %v918, %v916
        %v924 = vld [vmem:[%s5] sm:$0xff]
        %v925 = vld [vmem:[%s2] sm:$0x3]
        %v927 = vlaneseq
        %v928 = vshrl.u32 %v927, 7
        %v929 = vsub.s32 0, %v928
        %v930 = vrot.slane %v925, %v929
        %v931 = vlaneseq
        %v932 = vshrl.u32 %v931, 7
        %v933 = vsub.s32 1, %v932
        %v934 = vrot.slane %v925, %v933
        %v937 = vmul.f32 %v930, %v923
        %v938 = vmul.f32 %v934, %v922
        %939 = vrot.lane.b32.xlu0 %v911, 16
        %v940 = vpop.permute.xlu0 %939
        %941 = vrot.lane.b32.xlu0 %v913, 16
        %v942 = vpop.permute.xlu0 %941
        %vm943 = vcmp.lt.s32.totalorder %v920, 16
        %v944 = vsel %vm943, %v940, %v942
        %v945 = vsel %vm943, %v942, %v940
        %s946 = scalar_lea.vmem %s5, 8
        %v947 = vld [vmem:[%s946] sm:$0xff]
        %s948 = scalar_lea.vmem %s2, 2
        %v949 = vld [vmem:[%s948] sm:$0x3]
        %v951 = vlaneseq
        %v952 = vshrl.u32 %v951, 7
        %v953 = vsub.s32 0, %v952
        %v954 = vrot.slane %v949, %v953
        %v955 = vlaneseq
        %v956 = vshrl.u32 %v955, 7
        %v957 = vsub.s32 1, %v956
        %v958 = vrot.slane %v949, %v957
        %v961 = vmul.f32 %v954, %v945
        %v962 = vmul.f32 %v958, %v944
        %v964 = vsel %vm548, %v947, 0
        %v967 = vsel %vm541, %v961, 0
        %v970 = vsel %vm541, %v962, 0
        %972 = vmatprep.subr.mxu0 %v970
        %973 = vmatpush1.msra.mxu0 %v967
        %974 = vmatprep.subr.mxu0 0.0
        %975 = vmatpush1.msra.mxu0 0.0
        %976 = vmatprep.subr.mxu0 0.0
        %977 = vmatpush1.msra.mxu0 0.0
        %978 = vmatprep.subr.mxu0 0.0
        %979 = vmatpush1.msra.mxu0 0.0
        %980 = vmatprep.subr.mxu0 0.0
        %981 = vmatpush1.msra.mxu0 0.0
        %982 = vmatprep.subr.mxu0 0.0
        %983 = vmatpush1.msra.mxu0 0.0
        %984 = vmatprep.subr.mxu0 0.0
        %985 = vmatpush1.msra.mxu0 0.0
        %986 = vmatprep.subr.mxu0 0.0
        %987 = vmatpush1.msra.mxu0 0.0
        %988 = vmatprep.subr.mxu0 0.0
        %989 = vmatpush1.msra.mxu0 0.0
        %990 = vmatprep.subr.mxu0 0.0
        %991 = vmatpush1.msra.mxu0 0.0
        %992 = vmatprep.subr.mxu0 0.0
        %993 = vmatpush1.msra.mxu0 0.0
        %994 = vmatprep.subr.mxu0 0.0
        %995 = vmatpush1.msra.mxu0 0.0
        %996 = vmatprep.subr.mxu0 0.0
        %997 = vmatpush1.msra.mxu0 0.0
        %998 = vmatprep.subr.mxu0 0.0
        %999 = vmatpush1.msra.mxu0 0.0
        %1000 = vmatprep.subr.mxu0 0.0
        %1001 = vmatpush1.msra.mxu0 0.0
        %1002 = vmatprep.subr.mxu0 0.0
        %1003 = vmatpush1.msra.mxu0 0.0
        %1004 = vmatprep.subr.mxu0 0.0
        %1005 = vmatpush1.msra.mxu0 0.0
        %1006 = vmatprep.subr.mxu0 0.0
        %1007 = vmatpush1.msra.mxu0 0.0
        %1008 = vmatprep.subr.mxu0 0.0
        %1009 = vmatpush1.msra.mxu0 0.0
        %1010 = vmatprep.subr.mxu0 0.0
        %1011 = vmatpush1.msra.mxu0 0.0
        %1012 = vmatprep.subr.mxu0 0.0
        %1013 = vmatpush1.msra.mxu0 0.0
        %1014 = vmatprep.subr.mxu0 0.0
        %1015 = vmatpush1.msra.mxu0 0.0
        %1016 = vmatprep.subr.mxu0 0.0
        %1017 = vmatpush1.msra.mxu0 0.0
        %1018 = vmatprep.subr.mxu0 0.0
        %1019 = vmatpush1.msra.mxu0 0.0
        %1020 = vmatprep.subr.mxu0 0.0
        %1021 = vmatpush1.msra.mxu0 0.0
        %1022 = vmatprep.subr.mxu0 0.0
        %1023 = vmatpush1.msra.mxu0 0.0
        %1024 = vmatprep.subr.mxu0 0.0
        %1025 = vmatpush1.msra.mxu0 0.0
        %1026 = vmatprep.subr.mxu0 0.0
        %1027 = vmatpush1.msra.mxu0 0.0
        %1028 = vmatprep.subr.mxu0 0.0
        %1029 = vmatpush1.msra.mxu0 0.0
        %1030 = vmatprep.subr.mxu0 0.0
        %1031 = vmatpush1.msra.mxu0 0.0
        %1032 = vmatprep.subr.mxu0 0.0
        %1033 = vmatpush1.msra.mxu0 0.0
        %1034 = vmatprep.subr.mxu0 0.0
        %1035 = vmatpush1.msra.mxu0 0.0
        %1036 = vmatprep.mubr.f32.mxu0 0.0
        %1037 = vmatmul.mubr.f32.gmra.mrb[0].mxu0 %v964
        %v1038 = vpop.f32.mrb[0].mxu0
        %v1039 = vadd.f32 0.0, %v1038
        %v1040 = vpop.f32.mrb[0].mxu0
        %v1041 = vadd.f32 0.0, %v1040
        %1042 = vdwg.mxu0
        %v1044 = vsel %vm548, %v924, 0
        %v1047 = vsel %vm541, %v937, 0
        %v1050 = vsel %vm541, %v938, 0
        %1052 = vmatprep.subr.mxu0 %v1050
        %1053 = vmatpush1.msra.mxu0 %v1047
        %1054 = vmatprep.subr.mxu0 0.0
        %1055 = vmatpush1.msra.mxu0 0.0
        %1056 = vmatprep.subr.mxu0 0.0
        %1057 = vmatpush1.msra.mxu0 0.0
        %1058 = vmatprep.subr.mxu0 0.0
        %1059 = vmatpush1.msra.mxu0 0.0
        %1060 = vmatprep.subr.mxu0 0.0
        %1061 = vmatpush1.msra.mxu0 0.0
        %1062 = vmatprep.subr.mxu0 0.0
        %1063 = vmatpush1.msra.mxu0 0.0
        %1064 = vmatprep.subr.mxu0 0.0
        %1065 = vmatpush1.msra.mxu0 0.0
        %1066 = vmatprep.subr.mxu0 0.0
        %1067 = vmatpush1.msra.mxu0 0.0
        %1068 = vmatprep.subr.mxu0 0.0
        %1069 = vmatpush1.msra.mxu0 0.0
        %1070 = vmatprep.subr.mxu0 0.0
        %1071 = vmatpush1.msra.mxu0 0.0
        %1072 = vmatprep.subr.mxu0 0.0
        %1073 = vmatpush1.msra.mxu0 0.0
        %1074 = vmatprep.subr.mxu0 0.0
        %1075 = vmatpush1.msra.mxu0 0.0
        %1076 = vmatprep.subr.mxu0 0.0
        %1077 = vmatpush1.msra.mxu0 0.0
        %1078 = vmatprep.subr.mxu0 0.0
        %1079 = vmatpush1.msra.mxu0 0.0
        %1080 = vmatprep.subr.mxu0 0.0
        %1081 = vmatpush1.msra.mxu0 0.0
        %1082 = vmatprep.subr.mxu0 0.0
        %1083 = vmatpush1.msra.mxu0 0.0
        %1084 = vmatprep.subr.mxu0 0.0
        %1085 = vmatpush1.msra.mxu0 0.0
        %1086 = vmatprep.subr.mxu0 0.0
        %1087 = vmatpush1.msra.mxu0 0.0
        %1088 = vmatprep.subr.mxu0 0.0
        %1089 = vmatpush1.msra.mxu0 0.0
        %1090 = vmatprep.subr.mxu0 0.0
        %1091 = vmatpush1.msra.mxu0 0.0
        %1092 = vmatprep.subr.mxu0 0.0
        %1093 = vmatpush1.msra.mxu0 0.0
        %1094 = vmatprep.subr.mxu0 0.0
        %1095 = vmatpush1.msra.mxu0 0.0
        %1096 = vmatprep.subr.mxu0 0.0
        %1097 = vmatpush1.msra.mxu0 0.0
        %1098 = vmatprep.subr.mxu0 0.0
        %1099 = vmatpush1.msra.mxu0 0.0
        %1100 = vmatprep.subr.mxu0 0.0
        %1101 = vmatpush1.msra.mxu0 0.0
        %1102 = vmatprep.subr.mxu0 0.0
        %1103 = vmatpush1.msra.mxu0 0.0
        %1104 = vmatprep.subr.mxu0 0.0
        %1105 = vmatpush1.msra.mxu0 0.0
        %1106 = vmatprep.subr.mxu0 0.0
        %1107 = vmatpush1.msra.mxu0 0.0
        %1108 = vmatprep.subr.mxu0 0.0
        %1109 = vmatpush1.msra.mxu0 0.0
        %1110 = vmatprep.subr.mxu0 0.0
        %1111 = vmatpush1.msra.mxu0 0.0
        %1112 = vmatprep.subr.mxu0 0.0
        %1113 = vmatpush1.msra.mxu0 0.0
        %1114 = vmatprep.subr.mxu0 0.0
        %1115 = vmatpush1.msra.mxu0 0.0
        %1116 = vmatprep.mubr.f32.mxu0 0.0
        %1117 = vmatmul.mubr.f32.gmra.mrb[0].mxu0 %v1044
        %v1118 = vpop.f32.mrb[0].mxu0
        %v1119 = vadd.f32 %v1039, %v1118
        %v1120 = vpop.f32.mrb[0].mxu0
        %v1121 = vadd.f32 %v1041, %v1120
        %1122 = vdwg.mxu0
        %1123 = vrot.lane.b32.xlu0 %v911, 15
        %v1124 = vpop.permute.xlu0 %1123
        %1125 = vrot.lane.b32.xlu0 %v913, 15
        %v1126 = vpop.permute.xlu0 %1125
        %vm1127 = vcmp.lt.s32.totalorder %v920, 15
        %v1128 = vsel %vm1127, %v1124, %v1126
        %v1129 = vsel %vm1127, %v1126, %v1124
        %s1130 = scalar_lea.vmem %s5, 16
        %v1131 = vld [vmem:[%s1130] sm:$0xff]
        %s1132 = scalar_lea.vmem %s2, 4
        %v1133 = vld [vmem:[%s1132] sm:$0x3]
        %v1135 = vlaneseq
        %v1136 = vshrl.u32 %v1135, 7
        %v1137 = vsub.s32 0, %v1136
        %v1138 = vrot.slane %v1133, %v1137
        %v1139 = vlaneseq
        %v1140 = vshrl.u32 %v1139, 7
        %v1141 = vsub.s32 1, %v1140
        %v1142 = vrot.slane %v1133, %v1141
        %v1145 = vmul.f32 %v1138, %v1129
        %v1146 = vmul.f32 %v1142, %v1128
        %v1148 = vsel %vm548, %v1131, 0
        %v1151 = vsel %vm541, %v1145, 0
        %v1154 = vsel %vm541, %v1146, 0
        %1156 = vmatprep.subr.mxu0 %v1154
        %1157 = vmatpush1.msra.mxu0 %v1151
        %1158 = vmatprep.subr.mxu0 0.0
        %1159 = vmatpush1.msra.mxu0 0.0
        %1160 = vmatprep.subr.mxu0 0.0
        %1161 = vmatpush1.msra.mxu0 0.0
        %1162 = vmatprep.subr.mxu0 0.0
        %1163 = vmatpush1.msra.mxu0 0.0
        %1164 = vmatprep.subr.mxu0 0.0
        %1165 = vmatpush1.msra.mxu0 0.0
        %1166 = vmatprep.subr.mxu0 0.0
        %1167 = vmatpush1.msra.mxu0 0.0
        %1168 = vmatprep.subr.mxu0 0.0
        %1169 = vmatpush1.msra.mxu0 0.0
        %1170 = vmatprep.subr.mxu0 0.0
        %1171 = vmatpush1.msra.mxu0 0.0
        %1172 = vmatprep.subr.mxu0 0.0
        %1173 = vmatpush1.msra.mxu0 0.0
        %1174 = vmatprep.subr.mxu0 0.0
        %1175 = vmatpush1.msra.mxu0 0.0
        %1176 = vmatprep.subr.mxu0 0.0
        %1177 = vmatpush1.msra.mxu0 0.0
        %1178 = vmatprep.subr.mxu0 0.0
        %1179 = vmatpush1.msra.mxu0 0.0
        %1180 = vmatprep.subr.mxu0 0.0
        %1181 = vmatpush1.msra.mxu0 0.0
        %1182 = vmatprep.subr.mxu0 0.0
        %1183 = vmatpush1.msra.mxu0 0.0
        %1184 = vmatprep.subr.mxu0 0.0
        %1185 = vmatpush1.msra.mxu0 0.0
        %1186 = vmatprep.subr.mxu0 0.0
        %1187 = vmatpush1.msra.mxu0 0.0
        %1188 = vmatprep.subr.mxu0 0.0
        %1189 = vmatpush1.msra.mxu0 0.0
        %1190 = vmatprep.subr.mxu0 0.0
        %1191 = vmatpush1.msra.mxu0 0.0
        %1192 = vmatprep.subr.mxu0 0.0
        %1193 = vmatpush1.msra.mxu0 0.0
        %1194 = vmatprep.subr.mxu0 0.0
        %1195 = vmatpush1.msra.mxu0 0.0
        %1196 = vmatprep.subr.mxu0 0.0
        %1197 = vmatpush1.msra.mxu0 0.0
        %1198 = vmatprep.subr.mxu0 0.0
        %1199 = vmatpush1.msra.mxu0 0.0
        %1200 = vmatprep.subr.mxu0 0.0
        %1201 = vmatpush1.msra.mxu0 0.0
        %1202 = vmatprep.subr.mxu0 0.0
        %1203 = vmatpush1.msra.mxu0 0.0
        %1204 = vmatprep.subr.mxu0 0.0
        %1205 = vmatpush1.msra.mxu0 0.0
        %1206 = vmatprep.subr.mxu0 0.0
        %1207 = vmatpush1.msra.mxu0 0.0
        %1208 = vmatprep.subr.mxu0 0.0
        %1209 = vmatpush1.msra.mxu0 0.0
        %1210 = vmatprep.subr.mxu0 0.0
        %1211 = vmatpush1.msra.mxu0 0.0
        %1212 = vmatprep.subr.mxu0 0.0
        %1213 = vmatpush1.msra.mxu0 0.0
        %1214 = vmatprep.subr.mxu0 0.0
        %1215 = vmatpush1.msra.mxu0 0.0
        %1216 = vmatprep.subr.mxu0 0.0
        %1217 = vmatpush1.msra.mxu0 0.0
        %1218 = vmatprep.subr.mxu0 0.0
        %1219 = vmatpush1.msra.mxu0 0.0
        %1220 = vmatprep.mubr.f32.mxu0 0.0
        %1221 = vmatmul.mubr.f32.gmra.mrb[0].mxu0 %v1148
        %v1222 = vpop.f32.mrb[0].mxu0
        %v1223 = vadd.f32 0.0, %v1222
        %v1224 = vpop.f32.mrb[0].mxu0
        %v1225 = vadd.f32 0.0, %v1224
        %1226 = vdwg.mxu0
        %v1227 = vadd.f32 %v1119, %v1223
        %v1228 = vadd.f32 %v1121, %v1225
        %1229 = vrot.lane.b32.xlu0 %v911, 1
        %v1230 = vpop.permute.xlu0 %1229
        %1231 = vrot.lane.b32.xlu0 %v913, 1
        %v1232 = vpop.permute.xlu0 %1231
        %vm1233 = vcmp.lt.s32.totalorder %v920, 1
        %v1234 = vsel %vm1233, %v1230, %v1232
        %v1235 = vsel %vm1233, %v1232, %v1230
        %s1236 = scalar_lea.vmem %s5, 24
        %v1237 = vld [vmem:[%s1236] sm:$0xff]
        %s1238 = scalar_lea.vmem %s2, 6
        %v1239 = vld [vmem:[%s1238] sm:$0x3]
        %v1241 = vlaneseq
        %v1242 = vshrl.u32 %v1241, 7
        %v1243 = vsub.s32 0, %v1242
        %v1244 = vrot.slane %v1239, %v1243
        %v1245 = vlaneseq
        %v1246 = vshrl.u32 %v1245, 7
        %v1247 = vsub.s32 1, %v1246
        %v1248 = vrot.slane %v1239, %v1247
        %v1251 = vmul.f32 %v1244, %v1235
        %v1252 = vmul.f32 %v1248, %v1234
        %v1254 = vsel %vm548, %v1237, 0
        %v1257 = vsel %vm541, %v1251, 0
        %v1260 = vsel %vm541, %v1252, 0
        %1262 = vmatprep.subr.mxu0 %v1260
        %1263 = vmatpush1.msra.mxu0 %v1257
        %1264 = vmatprep.subr.mxu0 0.0
        %1265 = vmatpush1.msra.mxu0 0.0
        %1266 = vmatprep.subr.mxu0 0.0
        %1267 = vmatpush1.msra.mxu0 0.0
        %1268 = vmatprep.subr.mxu0 0.0
        %1269 = vmatpush1.msra.mxu0 0.0
        %1270 = vmatprep.subr.mxu0 0.0
        %1271 = vmatpush1.msra.mxu0 0.0
        %1272 = vmatprep.subr.mxu0 0.0
        %1273 = vmatpush1.msra.mxu0 0.0
        %1274 = vmatprep.subr.mxu0 0.0
        %1275 = vmatpush1.msra.mxu0 0.0
        %1276 = vmatprep.subr.mxu0 0.0
        %1277 = vmatpush1.msra.mxu0 0.0
        %1278 = vmatprep.subr.mxu0 0.0
        %1279 = vmatpush1.msra.mxu0 0.0
        %1280 = vmatprep.subr.mxu0 0.0
        %1281 = vmatpush1.msra.mxu0 0.0
        %1282 = vmatprep.subr.mxu0 0.0
        %1283 = vmatpush1.msra.mxu0 0.0
        %1284 = vmatprep.subr.mxu0 0.0
        %1285 = vmatpush1.msra.mxu0 0.0
        %1286 = vmatprep.subr.mxu0 0.0
        %1287 = vmatpush1.msra.mxu0 0.0
        %1288 = vmatprep.subr.mxu0 0.0
        %1289 = vmatpush1.msra.mxu0 0.0
        %1290 = vmatprep.subr.mxu0 0.0
        %1291 = vmatpush1.msra.mxu0 0.0
        %1292 = vmatprep.subr.mxu0 0.0
        %1293 = vmatpush1.msra.mxu0 0.0
        %1294 = vmatprep.subr.mxu0 0.0
        %1295 = vmatpush1.msra.mxu0 0.0
        %1296 = vmatprep.subr.mxu0 0.0
        %1297 = vmatpush1.msra.mxu0 0.0
        %1298 = vmatprep.subr.mxu0 0.0
        %1299 = vmatpush1.msra.mxu0 0.0
        %1300 = vmatprep.subr.mxu0 0.0
        %1301 = vmatpush1.msra.mxu0 0.0
        %1302 = vmatprep.subr.mxu0 0.0
        %1303 = vmatpush1.msra.mxu0 0.0
        %1304 = vmatprep.subr.mxu0 0.0
        %1305 = vmatpush1.msra.mxu0 0.0
        %1306 = vmatprep.subr.mxu0 0.0
        %1307 = vmatpush1.msra.mxu0 0.0
        %1308 = vmatprep.subr.mxu0 0.0
        %1309 = vmatpush1.msra.mxu0 0.0
        %1310 = vmatprep.subr.mxu0 0.0
        %1311 = vmatpush1.msra.mxu0 0.0
        %1312 = vmatprep.subr.mxu0 0.0
        %1313 = vmatpush1.msra.mxu0 0.0
        %1314 = vmatprep.subr.mxu0 0.0
        %1315 = vmatpush1.msra.mxu0 0.0
        %1316 = vmatprep.subr.mxu0 0.0
        %1317 = vmatpush1.msra.mxu0 0.0
        %1318 = vmatprep.subr.mxu0 0.0
        %1319 = vmatpush1.msra.mxu0 0.0
        %1320 = vmatprep.subr.mxu0 0.0
        %1321 = vmatpush1.msra.mxu0 0.0
        %1322 = vmatprep.subr.mxu0 0.0
        %1323 = vmatpush1.msra.mxu0 0.0
        %1324 = vmatprep.subr.mxu0 0.0
        %1325 = vmatpush1.msra.mxu0 0.0
        %1326 = vmatprep.mubr.f32.mxu0 0.0
        %1327 = vmatmul.mubr.f32.gmra.mrb[0].mxu0 %v1254
        %v1328 = vpop.f32.mrb[0].mxu0
        %v1329 = vadd.f32 0.0, %v1328
        %v1330 = vpop.f32.mrb[0].mxu0
        %v1331 = vadd.f32 0.0, %v1330
        %1332 = vdwg.mxu0
        %v1333 = vadd.f32 %v1227, %v1329
        %v1334 = vadd.f32 %v1228, %v1331
        %s1335 = scalar_lea.vmem %s5, 32
        %v1336 = vld [vmem:[%s1335] sm:$0xff]
        %v1338 = vsel %vm548, %v1336, 0
        %v1340 = vsel %vm541, %v911, 0
        %v1342 = vsel %vm541, %v913, 0
        %1344 = vmatprep.subr.mxu0 %v1342
        %1345 = vmatpush1.msra.mxu0 %v1340
        %1346 = vmatprep.subr.mxu0 0.0
        %1347 = vmatpush1.msra.mxu0 0.0
        %1348 = vmatprep.subr.mxu0 0.0
        %1349 = vmatpush1.msra.mxu0 0.0
        %1350 = vmatprep.subr.mxu0 0.0
        %1351 = vmatpush1.msra.mxu0 0.0
        %1352 = vmatprep.subr.mxu0 0.0
        %1353 = vmatpush1.msra.mxu0 0.0
        %1354 = vmatprep.subr.mxu0 0.0
        %1355 = vmatpush1.msra.mxu0 0.0
        %1356 = vmatprep.subr.mxu0 0.0
        %1357 = vmatpush1.msra.mxu0 0.0
        %1358 = vmatprep.subr.mxu0 0.0
        %1359 = vmatpush1.msra.mxu0 0.0
        %1360 = vmatprep.subr.mxu0 0.0
        %1361 = vmatpush1.msra.mxu0 0.0
        %1362 = vmatprep.subr.mxu0 0.0
        %1363 = vmatpush1.msra.mxu0 0.0
        %1364 = vmatprep.subr.mxu0 0.0
        %1365 = vmatpush1.msra.mxu0 0.0
        %1366 = vmatprep.subr.mxu0 0.0
        %1367 = vmatpush1.msra.mxu0 0.0
        %1368 = vmatprep.subr.mxu0 0.0
        %1369 = vmatpush1.msra.mxu0 0.0
        %1370 = vmatprep.subr.mxu0 0.0
        %1371 = vmatpush1.msra.mxu0 0.0
        %1372 = vmatprep.subr.mxu0 0.0
        %1373 = vmatpush1.msra.mxu0 0.0
        %1374 = vmatprep.subr.mxu0 0.0
        %1375 = vmatpush1.msra.mxu0 0.0
        %1376 = vmatprep.subr.mxu0 0.0
        %1377 = vmatpush1.msra.mxu0 0.0
        %1378 = vmatprep.subr.mxu0 0.0
        %1379 = vmatpush1.msra.mxu0 0.0
        %1380 = vmatprep.subr.mxu0 0.0
        %1381 = vmatpush1.msra.mxu0 0.0
        %1382 = vmatprep.subr.mxu0 0.0
        %1383 = vmatpush1.msra.mxu0 0.0
        %1384 = vmatprep.subr.mxu0 0.0
        %1385 = vmatpush1.msra.mxu0 0.0
        %1386 = vmatprep.subr.mxu0 0.0
        %1387 = vmatpush1.msra.mxu0 0.0
        %1388 = vmatprep.subr.mxu0 0.0
        %1389 = vmatpush1.msra.mxu0 0.0
        %1390 = vmatprep.subr.mxu0 0.0
        %1391 = vmatpush1.msra.mxu0 0.0
        %1392 = vmatprep.subr.mxu0 0.0
        %1393 = vmatpush1.msra.mxu0 0.0
        %1394 = vmatprep.subr.mxu0 0.0
        %1395 = vmatpush1.msra.mxu0 0.0
        %1396 = vmatprep.subr.mxu0 0.0
        %1397 = vmatpush1.msra.mxu0 0.0
        %1398 = vmatprep.subr.mxu0 0.0
        %1399 = vmatpush1.msra.mxu0 0.0
        %1400 = vmatprep.subr.mxu0 0.0
        %1401 = vmatpush1.msra.mxu0 0.0
        %1402 = vmatprep.subr.mxu0 0.0
        %1403 = vmatpush1.msra.mxu0 0.0
        %1404 = vmatprep.subr.mxu0 0.0
        %1405 = vmatpush1.msra.mxu0 0.0
        %1406 = vmatprep.subr.mxu0 0.0
        %1407 = vmatpush1.msra.mxu0 0.0
        %1408 = vmatprep.mubr.f32.mxu0 0.0
        %1409 = vmatmul.mubr.f32.gmra.mrb[0].mxu0 %v1338
        %v1410 = vpop.f32.mrb[0].mxu0
        %v1411 = vadd.f32 0.0, %v1410
        %v1412 = vpop.f32.mrb[0].mxu0
        %v1413 = vadd.f32 0.0, %v1412
        %1414 = vdwg.mxu0
        %v1415 = vadd.f32 %v1333, %v1411
        %v1416 = vadd.f32 %v1334, %v1413
        %1417 = vrot.lane.b32.xlu0 %v911, 127
        %v1418 = vpop.permute.xlu0 %1417
        %1419 = vrot.lane.b32.xlu0 %v913, 127
        %v1420 = vpop.permute.xlu0 %1419
        %vm1421 = vcmp.lt.s32.totalorder %v920, 127
        %v1422 = vsel %vm1421, %v1418, %v1420
        %v1423 = vsel %vm1421, %v1420, %v1418
        %s1424 = scalar_lea.vmem %s5, 40
        %v1425 = vld [vmem:[%s1424] sm:$0xff]
        %s1426 = scalar_lea.vmem %s2, 10
        %v1427 = vld [vmem:[%s1426] sm:$0x3]
        %v1429 = vlaneseq
        %v1430 = vshrl.u32 %v1429, 7
        %v1431 = vsub.s32 0, %v1430
        %v1432 = vrot.slane %v1427, %v1431
        %v1433 = vlaneseq
        %v1434 = vshrl.u32 %v1433, 7
        %v1435 = vsub.s32 1, %v1434
        %v1436 = vrot.slane %v1427, %v1435
        %v1439 = vmul.f32 %v1432, %v1422
        %v1440 = vmul.f32 %v1436, %v1423
        %v1442 = vsel %vm548, %v1425, 0
        %v1445 = vsel %vm541, %v1439, 0
        %v1448 = vsel %vm541, %v1440, 0
        %1450 = vmatprep.subr.mxu0 %v1448
        %1451 = vmatpush1.msra.mxu0 %v1445
        %1452 = vmatprep.subr.mxu0 0.0
        %1453 = vmatpush1.msra.mxu0 0.0
        %1454 = vmatprep.subr.mxu0 0.0
        %1455 = vmatpush1.msra.mxu0 0.0
        %1456 = vmatprep.subr.mxu0 0.0
        %1457 = vmatpush1.msra.mxu0 0.0
        %1458 = vmatprep.subr.mxu0 0.0
        %1459 = vmatpush1.msra.mxu0 0.0
        %1460 = vmatprep.subr.mxu0 0.0
        %1461 = vmatpush1.msra.mxu0 0.0
        %1462 = vmatprep.subr.mxu0 0.0
        %1463 = vmatpush1.msra.mxu0 0.0
        %1464 = vmatprep.subr.mxu0 0.0
        %1465 = vmatpush1.msra.mxu0 0.0
        %1466 = vmatprep.subr.mxu0 0.0
        %1467 = vmatpush1.msra.mxu0 0.0
        %1468 = vmatprep.subr.mxu0 0.0
        %1469 = vmatpush1.msra.mxu0 0.0
        %1470 = vmatprep.subr.mxu0 0.0
        %1471 = vmatpush1.msra.mxu0 0.0
        %1472 = vmatprep.subr.mxu0 0.0
        %1473 = vmatpush1.msra.mxu0 0.0
        %1474 = vmatprep.subr.mxu0 0.0
        %1475 = vmatpush1.msra.mxu0 0.0
        %1476 = vmatprep.subr.mxu0 0.0
        %1477 = vmatpush1.msra.mxu0 0.0
        %1478 = vmatprep.subr.mxu0 0.0
        %1479 = vmatpush1.msra.mxu0 0.0
        %1480 = vmatprep.subr.mxu0 0.0
        %1481 = vmatpush1.msra.mxu0 0.0
        %1482 = vmatprep.subr.mxu0 0.0
        %1483 = vmatpush1.msra.mxu0 0.0
        %1484 = vmatprep.subr.mxu0 0.0
        %1485 = vmatpush1.msra.mxu0 0.0
        %1486 = vmatprep.subr.mxu0 0.0
        %1487 = vmatpush1.msra.mxu0 0.0
        %1488 = vmatprep.subr.mxu0 0.0
        %1489 = vmatpush1.msra.mxu0 0.0
        %1490 = vmatprep.subr.mxu0 0.0
        %1491 = vmatpush1.msra.mxu0 0.0
        %1492 = vmatprep.subr.mxu0 0.0
        %1493 = vmatpush1.msra.mxu0 0.0
        %1494 = vmatprep.subr.mxu0 0.0
        %1495 = vmatpush1.msra.mxu0 0.0
        %1496 = vmatprep.subr.mxu0 0.0
        %1497 = vmatpush1.msra.mxu0 0.0
        %1498 = vmatprep.subr.mxu0 0.0
        %1499 = vmatpush1.msra.mxu0 0.0
        %1500 = vmatprep.subr.mxu0 0.0
        %1501 = vmatpush1.msra.mxu0 0.0
        %1502 = vmatprep.subr.mxu0 0.0
        %1503 = vmatpush1.msra.mxu0 0.0
        %1504 = vmatprep.subr.mxu0 0.0
        %1505 = vmatpush1.msra.mxu0 0.0
        %1506 = vmatprep.subr.mxu0 0.0
        %1507 = vmatpush1.msra.mxu0 0.0
        %1508 = vmatprep.subr.mxu0 0.0
        %1509 = vmatpush1.msra.mxu0 0.0
        %1510 = vmatprep.subr.mxu0 0.0
        %1511 = vmatpush1.msra.mxu0 0.0
        %1512 = vmatprep.subr.mxu0 0.0
        %1513 = vmatpush1.msra.mxu0 0.0
        %1514 = vmatprep.mubr.f32.mxu0 0.0
        %1515 = vmatmul.mubr.f32.gmra.mrb[0].mxu0 %v1442
        %v1516 = vpop.f32.mrb[0].mxu0
        %v1517 = vadd.f32 0.0, %v1516
        %v1518 = vpop.f32.mrb[0].mxu0
        %v1519 = vadd.f32 0.0, %v1518
        %1520 = vdwg.mxu0
        %v1521 = vadd.f32 %v1415, %v1517
        %v1522 = vadd.f32 %v1416, %v1519
        %1523 = vrot.lane.b32.xlu0 %v911, 113
        %v1524 = vpop.permute.xlu0 %1523
        %1525 = vrot.lane.b32.xlu0 %v913, 113
        %v1526 = vpop.permute.xlu0 %1525
        %vm1527 = vcmp.lt.s32.totalorder %v920, 113
        %v1528 = vsel %vm1527, %v1524, %v1526
        %v1529 = vsel %vm1527, %v1526, %v1524
        %s1530 = scalar_lea.vmem %s5, 48
        %v1531 = vld [vmem:[%s1530] sm:$0xff]
        %s1532 = scalar_lea.vmem %s2, 12
        %v1533 = vld [vmem:[%s1532] sm:$0x3]
        %v1535 = vlaneseq
        %v1536 = vshrl.u32 %v1535, 7
        %v1537 = vsub.s32 0, %v1536
        %v1538 = vrot.slane %v1533, %v1537
        %v1539 = vlaneseq
        %v1540 = vshrl.u32 %v1539, 7
        %v1541 = vsub.s32 1, %v1540
        %v1542 = vrot.slane %v1533, %v1541
        %v1545 = vmul.f32 %v1538, %v1528
        %v1546 = vmul.f32 %v1542, %v1529
        %v1548 = vsel %vm548, %v1531, 0
        %v1551 = vsel %vm541, %v1545, 0
        %v1554 = vsel %vm541, %v1546, 0
        %1556 = vmatprep.subr.mxu0 %v1554
        %1557 = vmatpush1.msra.mxu0 %v1551
        %1558 = vmatprep.subr.mxu0 0.0
        %1559 = vmatpush1.msra.mxu0 0.0
        %1560 = vmatprep.subr.mxu0 0.0
        %1561 = vmatpush1.msra.mxu0 0.0
        %1562 = vmatprep.subr.mxu0 0.0
        %1563 = vmatpush1.msra.mxu0 0.0
        %1564 = vmatprep.subr.mxu0 0.0
        %1565 = vmatpush1.msra.mxu0 0.0
        %1566 = vmatprep.subr.mxu0 0.0
        %1567 = vmatpush1.msra.mxu0 0.0
        %1568 = vmatprep.subr.mxu0 0.0
        %1569 = vmatpush1.msra.mxu0 0.0
        %1570 = vmatprep.subr.mxu0 0.0
        %1571 = vmatpush1.msra.mxu0 0.0
        %1572 = vmatprep.subr.mxu0 0.0
        %1573 = vmatpush1.msra.mxu0 0.0
        %1574 = vmatprep.subr.mxu0 0.0
        %1575 = vmatpush1.msra.mxu0 0.0
        %1576 = vmatprep.subr.mxu0 0.0
        %1577 = vmatpush1.msra.mxu0 0.0
        %1578 = vmatprep.subr.mxu0 0.0
        %1579 = vmatpush1.msra.mxu0 0.0
        %1580 = vmatprep.subr.mxu0 0.0
        %1581 = vmatpush1.msra.mxu0 0.0
        %1582 = vmatprep.subr.mxu0 0.0
        %1583 = vmatpush1.msra.mxu0 0.0
        %1584 = vmatprep.subr.mxu0 0.0
        %1585 = vmatpush1.msra.mxu0 0.0
        %1586 = vmatprep.subr.mxu0 0.0
        %1587 = vmatpush1.msra.mxu0 0.0
        %1588 = vmatprep.subr.mxu0 0.0
        %1589 = vmatpush1.msra.mxu0 0.0
        %1590 = vmatprep.subr.mxu0 0.0
        %1591 = vmatpush1.msra.mxu0 0.0
        %1592 = vmatprep.subr.mxu0 0.0
        %1593 = vmatpush1.msra.mxu0 0.0
        %1594 = vmatprep.subr.mxu0 0.0
        %1595 = vmatpush1.msra.mxu0 0.0
        %1596 = vmatprep.subr.mxu0 0.0
        %1597 = vmatpush1.msra.mxu0 0.0
        %1598 = vmatprep.subr.mxu0 0.0
        %1599 = vmatpush1.msra.mxu0 0.0
        %1600 = vmatprep.subr.mxu0 0.0
        %1601 = vmatpush1.msra.mxu0 0.0
        %1602 = vmatprep.subr.mxu0 0.0
        %1603 = vmatpush1.msra.mxu0 0.0
        %1604 = vmatprep.subr.mxu0 0.0
        %1605 = vmatpush1.msra.mxu0 0.0
        %1606 = vmatprep.subr.mxu0 0.0
        %1607 = vmatpush1.msra.mxu0 0.0
        %1608 = vmatprep.subr.mxu0 0.0
        %1609 = vmatpush1.msra.mxu0 0.0
        %1610 = vmatprep.subr.mxu0 0.0
        %1611 = vmatpush1.msra.mxu0 0.0
        %1612 = vmatprep.subr.mxu0 0.0
        %1613 = vmatpush1.msra.mxu0 0.0
        %1614 = vmatprep.subr.mxu0 0.0
        %1615 = vmatpush1.msra.mxu0 0.0
        %1616 = vmatprep.subr.mxu0 0.0
        %1617 = vmatpush1.msra.mxu0 0.0
        %1618 = vmatprep.subr.mxu0 0.0
        %1619 = vmatpush1.msra.mxu0 0.0
        %1620 = vmatprep.mubr.f32.mxu0 0.0
        %1621 = vmatmul.mubr.f32.gmra.mrb[0].mxu0 %v1548
        %v1622 = vpop.f32.mrb[0].mxu0
        %v1623 = vadd.f32 0.0, %v1622
        %v1624 = vpop.f32.mrb[0].mxu0
        %v1625 = vadd.f32 0.0, %v1624
        %1626 = vdwg.mxu0
        %v1627 = vadd.f32 %v1521, %v1623
        %v1628 = vadd.f32 %v1522, %v1625
        %1629 = vrot.lane.b32.xlu0 %v911, 112
        %v1630 = vpop.permute.xlu0 %1629
        %1631 = vrot.lane.b32.xlu0 %v913, 112
        %v1632 = vpop.permute.xlu0 %1631
        %vm1633 = vcmp.lt.s32.totalorder %v920, 112
        %v1634 = vsel %vm1633, %v1630, %v1632
        %v1635 = vsel %vm1633, %v1632, %v1630
        %s1636 = scalar_lea.vmem %s5, 56
        %v1637 = vld [vmem:[%s1636] sm:$0xff]
        %s1638 = scalar_lea.vmem %s2, 14
        %v1639 = vld [vmem:[%s1638] sm:$0x3]
        %v1641 = vlaneseq
        %v1642 = vshrl.u32 %v1641, 7
        %v1643 = vsub.s32 0, %v1642
        %v1644 = vrot.slane %v1639, %v1643
        %v1645 = vlaneseq
        %v1646 = vshrl.u32 %v1645, 7
        %v1647 = vsub.s32 1, %v1646
        %v1648 = vrot.slane %v1639, %v1647
        %v1651 = vmul.f32 %v1644, %v1634
        %v1652 = vmul.f32 %v1648, %v1635
        %v1654 = vsel %vm548, %v1637, 0
        %v1657 = vsel %vm541, %v1651, 0
        %v1660 = vsel %vm541, %v1652, 0
        %1662 = vmatprep.subr.mxu0 %v1660
        %1663 = vmatpush1.msra.mxu0 %v1657
        %1664 = vmatprep.subr.mxu0 0.0
        %1665 = vmatpush1.msra.mxu0 0.0
        %1666 = vmatprep.subr.mxu0 0.0
        %1667 = vmatpush1.msra.mxu0 0.0
        %1668 = vmatprep.subr.mxu0 0.0
        %1669 = vmatpush1.msra.mxu0 0.0
        %1670 = vmatprep.subr.mxu0 0.0
        %1671 = vmatpush1.msra.mxu0 0.0
        %1672 = vmatprep.subr.mxu0 0.0
        %1673 = vmatpush1.msra.mxu0 0.0
        %1674 = vmatprep.subr.mxu0 0.0
        %1675 = vmatpush1.msra.mxu0 0.0
        %1676 = vmatprep.subr.mxu0 0.0
        %1677 = vmatpush1.msra.mxu0 0.0
        %1678 = vmatprep.subr.mxu0 0.0
        %1679 = vmatpush1.msra.mxu0 0.0
        %1680 = vmatprep.subr.mxu0 0.0
        %1681 = vmatpush1.msra.mxu0 0.0
        %1682 = vmatprep.subr.mxu0 0.0
        %1683 = vmatpush1.msra.mxu0 0.0
        %1684 = vmatprep.subr.mxu0 0.0
        %1685 = vmatpush1.msra.mxu0 0.0
        %1686 = vmatprep.subr.mxu0 0.0
        %1687 = vmatpush1.msra.mxu0 0.0
        %1688 = vmatprep.subr.mxu0 0.0
        %1689 = vmatpush1.msra.mxu0 0.0
        %1690 = vmatprep.subr.mxu0 0.0
        %1691 = vmatpush1.msra.mxu0 0.0
        %1692 = vmatprep.subr.mxu0 0.0
        %1693 = vmatpush1.msra.mxu0 0.0
        %1694 = vmatprep.subr.mxu0 0.0
        %1695 = vmatpush1.msra.mxu0 0.0
        %1696 = vmatprep.subr.mxu0 0.0
        %1697 = vmatpush1.msra.mxu0 0.0
        %1698 = vmatprep.subr.mxu0 0.0
        %1699 = vmatpush1.msra.mxu0 0.0
        %1700 = vmatprep.subr.mxu0 0.0
        %1701 = vmatpush1.msra.mxu0 0.0
        %1702 = vmatprep.subr.mxu0 0.0
        %1703 = vmatpush1.msra.mxu0 0.0
        %1704 = vmatprep.subr.mxu0 0.0
        %1705 = vmatpush1.msra.mxu0 0.0
        %1706 = vmatprep.subr.mxu0 0.0
        %1707 = vmatpush1.msra.mxu0 0.0
        %1708 = vmatprep.subr.mxu0 0.0
        %1709 = vmatpush1.msra.mxu0 0.0
        %1710 = vmatprep.subr.mxu0 0.0
        %1711 = vmatpush1.msra.mxu0 0.0
        %1712 = vmatprep.subr.mxu0 0.0
        %1713 = vmatpush1.msra.mxu0 0.0
        %1714 = vmatprep.subr.mxu0 0.0
        %1715 = vmatpush1.msra.mxu0 0.0
        %1716 = vmatprep.subr.mxu0 0.0
        %1717 = vmatpush1.msra.mxu0 0.0
        %1718 = vmatprep.subr.mxu0 0.0
        %1719 = vmatpush1.msra.mxu0 0.0
        %1720 = vmatprep.subr.mxu0 0.0
        %1721 = vmatpush1.msra.mxu0 0.0
        %1722 = vmatprep.subr.mxu0 0.0
        %1723 = vmatpush1.msra.mxu0 0.0
        %1724 = vmatprep.subr.mxu0 0.0
        %1725 = vmatpush1.msra.mxu0 0.0
        %1726 = vmatprep.mubr.f32.mxu0 0.0
        %1727 = vmatmul.mubr.f32.gmra.mrb[0].mxu0 %v1654
        %v1728 = vpop.f32.mrb[0].mxu0
        %v1729 = vadd.f32 0.0, %v1728
        %v1730 = vpop.f32.mrb[0].mxu0
        %v1731 = vadd.f32 0.0, %v1730
        %1732 = vdwg.mxu0
        %v1733 = vadd.f32 %v1627, %v1729
        %v1734 = vadd.f32 %v1628, %v1731
        %1735 = vrot.lane.b32.xlu0 %v911, 111
        %v1736 = vpop.permute.xlu0 %1735
        %1737 = vrot.lane.b32.xlu0 %v913, 111
        %v1738 = vpop.permute.xlu0 %1737
        %vm1739 = vcmp.lt.s32.totalorder %v920, 111
        %v1740 = vsel %vm1739, %v1736, %v1738
        %v1741 = vsel %vm1739, %v1738, %v1736
        %s1742 = scalar_lea.vmem %s5, 64
        %v1743 = vld [vmem:[%s1742] sm:$0xff]
        %s1744 = scalar_lea.vmem %s2, 16
        %v1745 = vld [vmem:[%s1744] sm:$0x3]
        %v1747 = vlaneseq
        %v1748 = vshrl.u32 %v1747, 7
        %v1749 = vsub.s32 0, %v1748
        %v1750 = vrot.slane %v1745, %v1749
        %v1751 = vlaneseq
        %v1752 = vshrl.u32 %v1751, 7
        %v1753 = vsub.s32 1, %v1752
        %v1754 = vrot.slane %v1745, %v1753
        %v1757 = vmul.f32 %v1750, %v1740
        %v1758 = vmul.f32 %v1754, %v1741
        %v1760 = vsel %vm548, %v1743, 0
        %v1763 = vsel %vm541, %v1757, 0
        %v1766 = vsel %vm541, %v1758, 0
        %1768 = vmatprep.subr.mxu0 %v1766
        %1769 = vmatpush1.msra.mxu0 %v1763
        %1770 = vmatprep.subr.mxu0 0.0
        %1771 = vmatpush1.msra.mxu0 0.0
        %1772 = vmatprep.subr.mxu0 0.0
        %1773 = vmatpush1.msra.mxu0 0.0
        %1774 = vmatprep.subr.mxu0 0.0
        %1775 = vmatpush1.msra.mxu0 0.0
        %1776 = vmatprep.subr.mxu0 0.0
        %1777 = vmatpush1.msra.mxu0 0.0
        %1778 = vmatprep.subr.mxu0 0.0
        %1779 = vmatpush1.msra.mxu0 0.0
        %1780 = vmatprep.subr.mxu0 0.0
        %1781 = vmatpush1.msra.mxu0 0.0
        %1782 = vmatprep.subr.mxu0 0.0
        %1783 = vmatpush1.msra.mxu0 0.0
        %1784 = vmatprep.subr.mxu0 0.0
        %1785 = vmatpush1.msra.mxu0 0.0
        %1786 = vmatprep.subr.mxu0 0.0
        %1787 = vmatpush1.msra.mxu0 0.0
        %1788 = vmatprep.subr.mxu0 0.0
        %1789 = vmatpush1.msra.mxu0 0.0
        %1790 = vmatprep.subr.mxu0 0.0
        %1791 = vmatpush1.msra.mxu0 0.0
        %1792 = vmatprep.subr.mxu0 0.0
        %1793 = vmatpush1.msra.mxu0 0.0
        %1794 = vmatprep.subr.mxu0 0.0
        %1795 = vmatpush1.msra.mxu0 0.0
        %1796 = vmatprep.subr.mxu0 0.0
        %1797 = vmatpush1.msra.mxu0 0.0
        %1798 = vmatprep.subr.mxu0 0.0
        %1799 = vmatpush1.msra.mxu0 0.0
        %1800 = vmatprep.subr.mxu0 0.0
        %1801 = vmatpush1.msra.mxu0 0.0
        %1802 = vmatprep.subr.mxu0 0.0
        %1803 = vmatpush1.msra.mxu0 0.0
        %1804 = vmatprep.subr.mxu0 0.0
        %1805 = vmatpush1.msra.mxu0 0.0
        %1806 = vmatprep.subr.mxu0 0.0
        %1807 = vmatpush1.msra.mxu0 0.0
        %1808 = vmatprep.subr.mxu0 0.0
        %1809 = vmatpush1.msra.mxu0 0.0
        %1810 = vmatprep.subr.mxu0 0.0
        %1811 = vmatpush1.msra.mxu0 0.0
        %1812 = vmatprep.subr.mxu0 0.0
        %1813 = vmatpush1.msra.mxu0 0.0
        %1814 = vmatprep.subr.mxu0 0.0
        %1815 = vmatpush1.msra.mxu0 0.0
        %1816 = vmatprep.subr.mxu0 0.0
        %1817 = vmatpush1.msra.mxu0 0.0
        %1818 = vmatprep.subr.mxu0 0.0
        %1819 = vmatpush1.msra.mxu0 0.0
        %1820 = vmatprep.subr.mxu0 0.0
        %1821 = vmatpush1.msra.mxu0 0.0
        %1822 = vmatprep.subr.mxu0 0.0
        %1823 = vmatpush1.msra.mxu0 0.0
        %1824 = vmatprep.subr.mxu0 0.0
        %1825 = vmatpush1.msra.mxu0 0.0
        %1826 = vmatprep.subr.mxu0 0.0
        %1827 = vmatpush1.msra.mxu0 0.0
        %1828 = vmatprep.subr.mxu0 0.0
        %1829 = vmatpush1.msra.mxu0 0.0
        %1830 = vmatprep.subr.mxu0 0.0
        %1831 = vmatpush1.msra.mxu0 0.0
        %1832 = vmatprep.mubr.f32.mxu0 0.0
        %1833 = vmatmul.mubr.f32.gmra.mrb[0].mxu0 %v1760
        %v1834 = vpop.f32.mrb[0].mxu0
        %v1835 = vadd.f32 0.0, %v1834
        %v1836 = vpop.f32.mrb[0].mxu0
        %v1837 = vadd.f32 0.0, %v1836
        %1838 = vdwg.mxu0
        %v1839 = vadd.f32 %v1733, %v1835
        %v1840 = vadd.f32 %v1734, %v1837
        %v1841 = vld [vmem:[%s536] sm:$0xff]
        %1843 = vset.pattern.permute.xlu0 0
        %1844 = vperm.xlu0 %1843, %v1841
        %v1845 = vpop.permute.xlu0 %1844
        %v1847 = vadd.f32 %v1839, %v1845
        %v1848 = vadd.f32 %v1840, %v1845
        %v1849 = vadd.f32 %v1847, %v1848
        %1850 = vadd.xlane.f32.xlu0 %v1849
        %v1851 = vpop.xlane.xlu0 %1850
        %v1852 = vld [vmem:[%s13] sm:$0x3]
        %vm1853 = vcmask 64512
        %v1855 = vsel %vm1853, %v1852, 0
        %1857 = vmatprep.subr.mxu0 0.0
        %1858 = vmatpush1.msra.mxu0 %v1851
        %1859 = vmatprep.subr.mxu0 0.0
        %1860 = vmatpush1.msra.mxu0 0.0
        %1861 = vmatprep.subr.mxu0 0.0
        %1862 = vmatpush1.msra.mxu0 0.0
        %1863 = vmatprep.subr.mxu0 0.0
        %1864 = vmatpush1.msra.mxu0 0.0
        %1865 = vmatprep.subr.mxu0 0.0
        %1866 = vmatpush1.msra.mxu0 0.0
        %1867 = vmatprep.subr.mxu0 0.0
        %1868 = vmatpush1.msra.mxu0 0.0
        %1869 = vmatprep.subr.mxu0 0.0
        %1870 = vmatpush1.msra.mxu0 0.0
        %1871 = vmatprep.subr.mxu0 0.0
        %1872 = vmatpush1.msra.mxu0 0.0
        %1873 = vmatprep.subr.mxu0 0.0
        %1874 = vmatpush1.msra.mxu0 0.0
        %1875 = vmatprep.subr.mxu0 0.0
        %1876 = vmatpush1.msra.mxu0 0.0
        %1877 = vmatprep.subr.mxu0 0.0
        %1878 = vmatpush1.msra.mxu0 0.0
        %1879 = vmatprep.subr.mxu0 0.0
        %1880 = vmatpush1.msra.mxu0 0.0
        %1881 = vmatprep.subr.mxu0 0.0
        %1882 = vmatpush1.msra.mxu0 0.0
        %1883 = vmatprep.subr.mxu0 0.0
        %1884 = vmatpush1.msra.mxu0 0.0
        %1885 = vmatprep.subr.mxu0 0.0
        %1886 = vmatpush1.msra.mxu0 0.0
        %1887 = vmatprep.subr.mxu0 0.0
        %1888 = vmatpush1.msra.mxu0 0.0
        %1889 = vmatprep.subr.mxu0 0.0
        %1890 = vmatpush1.msra.mxu0 0.0
        %1891 = vmatprep.subr.mxu0 0.0
        %1892 = vmatpush1.msra.mxu0 0.0
        %1893 = vmatprep.subr.mxu0 0.0
        %1894 = vmatpush1.msra.mxu0 0.0
        %1895 = vmatprep.subr.mxu0 0.0
        %1896 = vmatpush1.msra.mxu0 0.0
        %1897 = vmatprep.subr.mxu0 0.0
        %1898 = vmatpush1.msra.mxu0 0.0
        %1899 = vmatprep.subr.mxu0 0.0
        %1900 = vmatpush1.msra.mxu0 0.0
        %1901 = vmatprep.subr.mxu0 0.0
        %1902 = vmatpush1.msra.mxu0 0.0
        %1903 = vmatprep.subr.mxu0 0.0
        %1904 = vmatpush1.msra.mxu0 0.0
        %1905 = vmatprep.subr.mxu0 0.0
        %1906 = vmatpush1.msra.mxu0 0.0
        %1907 = vmatprep.subr.mxu0 0.0
        %1908 = vmatpush1.msra.mxu0 0.0
        %1909 = vmatprep.subr.mxu0 0.0
        %1910 = vmatpush1.msra.mxu0 0.0
        %1911 = vmatprep.subr.mxu0 0.0
        %1912 = vmatpush1.msra.mxu0 0.0
        %1913 = vmatprep.subr.mxu0 0.0
        %1914 = vmatpush1.msra.mxu0 0.0
        %1915 = vmatprep.subr.mxu0 0.0
        %1916 = vmatpush1.msra.mxu0 0.0
        %1917 = vmatprep.subr.mxu0 0.0
        %1918 = vmatpush1.msra.mxu0 0.0
        %1919 = vmatprep.subr.mxu0 0.0
        %1920 = vmatpush1.msra.mxu0 0.0
        %1921 = vmatprep.mubr.f32.mxu0 0.0
        %1922 = vmatmul.mubr.f32.gmra.mrb[0].mxu0 %v1855
        %v1923 = vpop.f32.mrb[0].mxu0
        %v1924 = vadd.f32 0.0, %v1923
        %v1925 = vpop.f32.mrb[0].mxu0
        %1926 = vdwg.mxu0
        %v1927 = vrcp.pop 1024.0
        %v1928 = vmul.f32 %v1924, %v1927
        %v1929 = vld [vmem:[%s12] sm:$0xff]
        %v1931 = vsel %vm628, %v1929, 0
        %v1934 = vsel %vm632, %v1928, 0
        %1936 = vmatprep.subr.mxu0 0.0
        %1937 = vmatpush1.msra.mxu0 %v1934
        %1938 = vmatprep.subr.mxu0 0.0
        %1939 = vmatpush1.msra.mxu0 0.0
        %1940 = vmatprep.subr.mxu0 0.0
        %1941 = vmatpush1.msra.mxu0 0.0
        %1942 = vmatprep.subr.mxu0 0.0
        %1943 = vmatpush1.msra.mxu0 0.0
        %1944 = vmatprep.subr.mxu0 0.0
        %1945 = vmatpush1.msra.mxu0 0.0
        %1946 = vmatprep.subr.mxu0 0.0
        %1947 = vmatpush1.msra.mxu0 0.0
        %1948 = vmatprep.subr.mxu0 0.0
        %1949 = vmatpush1.msra.mxu0 0.0
        %1950 = vmatprep.subr.mxu0 0.0
        %1951 = vmatpush1.msra.mxu0 0.0
        %1952 = vmatprep.subr.mxu0 0.0
        %1953 = vmatpush1.msra.mxu0 0.0
        %1954 = vmatprep.subr.mxu0 0.0
        %1955 = vmatpush1.msra.mxu0 0.0
        %1956 = vmatprep.subr.mxu0 0.0
        %1957 = vmatpush1.msra.mxu0 0.0
        %1958 = vmatprep.subr.mxu0 0.0
        %1959 = vmatpush1.msra.mxu0 0.0
        %1960 = vmatprep.subr.mxu0 0.0
        %1961 = vmatpush1.msra.mxu0 0.0
        %1962 = vmatprep.subr.mxu0 0.0
        %1963 = vmatpush1.msra.mxu0 0.0
        %1964 = vmatprep.subr.mxu0 0.0
        %1965 = vmatpush1.msra.mxu0 0.0
        %1966 = vmatprep.subr.mxu0 0.0
        %1967 = vmatpush1.msra.mxu0 0.0
        %1968 = vmatprep.subr.mxu0 0.0
        %1969 = vmatpush1.msra.mxu0 0.0
        %1970 = vmatprep.subr.mxu0 0.0
        %1971 = vmatpush1.msra.mxu0 0.0
        %1972 = vmatprep.subr.mxu0 0.0
        %1973 = vmatpush1.msra.mxu0 0.0
        %1974 = vmatprep.subr.mxu0 0.0
        %1975 = vmatpush1.msra.mxu0 0.0
        %1976 = vmatprep.subr.mxu0 0.0
        %1977 = vmatpush1.msra.mxu0 0.0
        %1978 = vmatprep.subr.mxu0 0.0
        %1979 = vmatpush1.msra.mxu0 0.0
        %1980 = vmatprep.subr.mxu0 0.0
        %1981 = vmatpush1.msra.mxu0 0.0
        %1982 = vmatprep.subr.mxu0 0.0
        %1983 = vmatpush1.msra.mxu0 0.0
        %1984 = vmatprep.subr.mxu0 0.0
        %1985 = vmatpush1.msra.mxu0 0.0
        %1986 = vmatprep.subr.mxu0 0.0
        %1987 = vmatpush1.msra.mxu0 0.0
        %1988 = vmatprep.subr.mxu0 0.0
        %1989 = vmatpush1.msra.mxu0 0.0
        %1990 = vmatprep.subr.mxu0 0.0
        %1991 = vmatpush1.msra.mxu0 0.0
        %1992 = vmatprep.subr.mxu0 0.0
        %1993 = vmatpush1.msra.mxu0 0.0
        %1994 = vmatprep.subr.mxu0 0.0
        %1995 = vmatpush1.msra.mxu0 0.0
        %1996 = vmatprep.subr.mxu0 0.0
        %1997 = vmatpush1.msra.mxu0 0.0
        %1998 = vmatprep.subr.mxu0 0.0
        %1999 = vmatpush1.msra.mxu0 0.0
        %2000 = vmatprep.mubr.f32.mxu0 0.0
        %2001 = vmatmul.mubr.f32.gmra.mrb[0].mxu0 %v1931
        %v2002 = vpop.f32.mrb[0].mxu0
        %v2003 = vadd.f32 0.0, %v2002
        %v2004 = vpop.f32.mrb[0].mxu0
        %2005 = vdwg.mxu0
        %2007 = vset.pattern.permute.xlu0 0
        %2008 = vperm.xlu0 %2007, %v2003
        %v2009 = vpop.permute.xlu0 %2008
        %v2011 = vsub.f32 %v1847, %v2009
        %v2012 = vsub.f32 %v1848, %v2009
        %v2013 = vmul.f32 %v2011, %v2011
        %v2014 = vmul.f32 %v2012, %v2012
        %v2015 = vadd.f32 %v2013, %v2014
        %2016 = vadd.xlane.f32.xlu0 %v2015
        %v2017 = vpop.xlane.xlu0 %2016
        %2018 = vmatprep.subr.mxu0 0.0
        %2019 = vmatpush1.msra.mxu0 %v2017
        %2020 = vmatprep.subr.mxu0 0.0
        %2021 = vmatpush1.msra.mxu0 0.0
        %2022 = vmatprep.subr.mxu0 0.0
        %2023 = vmatpush1.msra.mxu0 0.0
        %2024 = vmatprep.subr.mxu0 0.0
        %2025 = vmatpush1.msra.mxu0 0.0
        %2026 = vmatprep.subr.mxu0 0.0
        %2027 = vmatpush1.msra.mxu0 0.0
        %2028 = vmatprep.subr.mxu0 0.0
        %2029 = vmatpush1.msra.mxu0 0.0
        %2030 = vmatprep.subr.mxu0 0.0
        %2031 = vmatpush1.msra.mxu0 0.0
        %2032 = vmatprep.subr.mxu0 0.0
        %2033 = vmatpush1.msra.mxu0 0.0
        %2034 = vmatprep.subr.mxu0 0.0
        %2035 = vmatpush1.msra.mxu0 0.0
        %2036 = vmatprep.subr.mxu0 0.0
        %2037 = vmatpush1.msra.mxu0 0.0
        %2038 = vmatprep.subr.mxu0 0.0
        %2039 = vmatpush1.msra.mxu0 0.0
        %2040 = vmatprep.subr.mxu0 0.0
        %2041 = vmatpush1.msra.mxu0 0.0
        %2042 = vmatprep.subr.mxu0 0.0
        %2043 = vmatpush1.msra.mxu0 0.0
        %2044 = vmatprep.subr.mxu0 0.0
        %2045 = vmatpush1.msra.mxu0 0.0
        %2046 = vmatprep.subr.mxu0 0.0
        %2047 = vmatpush1.msra.mxu0 0.0
        %2048 = vmatprep.subr.mxu0 0.0
        %2049 = vmatpush1.msra.mxu0 0.0
        %2050 = vmatprep.subr.mxu0 0.0
        %2051 = vmatpush1.msra.mxu0 0.0
        %2052 = vmatprep.subr.mxu0 0.0
        %2053 = vmatpush1.msra.mxu0 0.0
        %2054 = vmatprep.subr.mxu0 0.0
        %2055 = vmatpush1.msra.mxu0 0.0
        %2056 = vmatprep.subr.mxu0 0.0
        %2057 = vmatpush1.msra.mxu0 0.0
        %2058 = vmatprep.subr.mxu0 0.0
        %2059 = vmatpush1.msra.mxu0 0.0
        %2060 = vmatprep.subr.mxu0 0.0
        %2061 = vmatpush1.msra.mxu0 0.0
        %2062 = vmatprep.subr.mxu0 0.0
        %2063 = vmatpush1.msra.mxu0 0.0
        %2064 = vmatprep.subr.mxu0 0.0
        %2065 = vmatpush1.msra.mxu0 0.0
        %2066 = vmatprep.subr.mxu0 0.0
        %2067 = vmatpush1.msra.mxu0 0.0
        %2068 = vmatprep.subr.mxu0 0.0
        %2069 = vmatpush1.msra.mxu0 0.0
        %2070 = vmatprep.subr.mxu0 0.0
        %2071 = vmatpush1.msra.mxu0 0.0
        %2072 = vmatprep.subr.mxu0 0.0
        %2073 = vmatpush1.msra.mxu0 0.0
        %2074 = vmatprep.subr.mxu0 0.0
        %2075 = vmatpush1.msra.mxu0 0.0
        %2076 = vmatprep.subr.mxu0 0.0
        %2077 = vmatpush1.msra.mxu0 0.0
        %2078 = vmatprep.subr.mxu0 0.0
        %2079 = vmatpush1.msra.mxu0 0.0
        %2080 = vmatprep.subr.mxu0 0.0
        %2081 = vmatpush1.msra.mxu0 0.0
        %2082 = vmatprep.mubr.f32.mxu0 0.0
        %2083 = vmatmul.mubr.f32.gmra.mrb[0].mxu0 %v1855
        %v2084 = vpop.f32.mrb[0].mxu0
        %v2085 = vadd.f32 0.0, %v2084
        %v2086 = vpop.f32.mrb[0].mxu0
        %2087 = vdwg.mxu0
        %v2088 = vmul.f32 %v2085, %v1927
        %v2090 = vsel %vm632, %v2088, 0
        %2092 = vmatprep.subr.mxu0 0.0
        %2093 = vmatpush1.msra.mxu0 %v2090
        %2094 = vmatprep.subr.mxu0 0.0
        %2095 = vmatpush1.msra.mxu0 0.0
        %2096 = vmatprep.subr.mxu0 0.0
        %2097 = vmatpush1.msra.mxu0 0.0
        %2098 = vmatprep.subr.mxu0 0.0
        %2099 = vmatpush1.msra.mxu0 0.0
        %2100 = vmatprep.subr.mxu0 0.0
        %2101 = vmatpush1.msra.mxu0 0.0
        %2102 = vmatprep.subr.mxu0 0.0
        %2103 = vmatpush1.msra.mxu0 0.0
        %2104 = vmatprep.subr.mxu0 0.0
        %2105 = vmatpush1.msra.mxu0 0.0
        %2106 = vmatprep.subr.mxu0 0.0
        %2107 = vmatpush1.msra.mxu0 0.0
        %2108 = vmatprep.subr.mxu0 0.0
        %2109 = vmatpush1.msra.mxu0 0.0
        %2110 = vmatprep.subr.mxu0 0.0
        %2111 = vmatpush1.msra.mxu0 0.0
        %2112 = vmatprep.subr.mxu0 0.0
        %2113 = vmatpush1.msra.mxu0 0.0
        %2114 = vmatprep.subr.mxu0 0.0
        %2115 = vmatpush1.msra.mxu0 0.0
        %2116 = vmatprep.subr.mxu0 0.0
        %2117 = vmatpush1.msra.mxu0 0.0
        %2118 = vmatprep.subr.mxu0 0.0
        %2119 = vmatpush1.msra.mxu0 0.0
        %2120 = vmatprep.subr.mxu0 0.0
        %2121 = vmatpush1.msra.mxu0 0.0
        %2122 = vmatprep.subr.mxu0 0.0
        %2123 = vmatpush1.msra.mxu0 0.0
        %2124 = vmatprep.subr.mxu0 0.0
        %2125 = vmatpush1.msra.mxu0 0.0
        %2126 = vmatprep.subr.mxu0 0.0
        %2127 = vmatpush1.msra.mxu0 0.0
        %2128 = vmatprep.subr.mxu0 0.0
        %2129 = vmatpush1.msra.mxu0 0.0
        %2130 = vmatprep.subr.mxu0 0.0
        %2131 = vmatpush1.msra.mxu0 0.0
        %2132 = vmatprep.subr.mxu0 0.0
        %2133 = vmatpush1.msra.mxu0 0.0
        %2134 = vmatprep.subr.mxu0 0.0
        %2135 = vmatpush1.msra.mxu0 0.0
        %2136 = vmatprep.subr.mxu0 0.0
        %2137 = vmatpush1.msra.mxu0 0.0
        %2138 = vmatprep.subr.mxu0 0.0
        %2139 = vmatpush1.msra.mxu0 0.0
        %2140 = vmatprep.subr.mxu0 0.0
        %2141 = vmatpush1.msra.mxu0 0.0
        %2142 = vmatprep.subr.mxu0 0.0
        %2143 = vmatpush1.msra.mxu0 0.0
        %2144 = vmatprep.subr.mxu0 0.0
        %2145 = vmatpush1.msra.mxu0 0.0
        %2146 = vmatprep.subr.mxu0 0.0
        %2147 = vmatpush1.msra.mxu0 0.0
        %2148 = vmatprep.subr.mxu0 0.0
        %2149 = vmatpush1.msra.mxu0 0.0
        %2150 = vmatprep.subr.mxu0 0.0
        %2151 = vmatpush1.msra.mxu0 0.0
        %2152 = vmatprep.subr.mxu0 0.0
        %2153 = vmatpush1.msra.mxu0 0.0
        %2154 = vmatprep.subr.mxu0 0.0
        %2155 = vmatpush1.msra.mxu0 0.0
        %2156 = vmatprep.mubr.f32.mxu0 0.0
        %2157 = vmatmul.mubr.f32.gmra.mrb[0].mxu0 %v1931
        %v2158 = vpop.f32.mrb[0].mxu0
        %v2159 = vadd.f32 1e-05, %v2158
        %v2160 = vpop.f32.mrb[0].mxu0
        %2161 = vdwg.mxu0
        %v2162 = vrsqrt.pop %v2159
        %v2163 = vld [vmem:[%s6] sm:$0xff]
        %v2164 = vmul.f32 %v2162, %v2163
        %2166 = vset.pattern.permute.xlu0 0
        %2167 = vperm.xlu0 %2166, %v2164
        %v2168 = vpop.permute.xlu0 %2167
        %v2170 = vmul.f32 %v2011, %v2168
        %v2171 = vmul.f32 %v2012, %v2168
        %v2172 = vld [vmem:[%s7] sm:$0xff]
        %2174 = vset.pattern.permute.xlu0 0
        %2175 = vperm.xlu0 %2174, %v2172
        %v2176 = vpop.permute.xlu0 %2175
        %v2178 = vadd.f32 %v2170, %v2176
        %v2179 = vadd.f32 %v2171, %v2176
        %v2180 = vxor.u32 %v2178, 2147483648
        %v2181 = vxor.u32 %v2179, 2147483648
        %v2182 = vmul.f32 %v2180, 1.442695
        %v2183 = vpow.pop %v2182
        %v2184 = vmul.f32 %v2181, 1.442695
        %v2185 = vpow.pop %v2184
        %v2186 = vadd.f32 %v2183, 1.0
        %v2187 = vadd.f32 %v2185, 1.0
        %v2188 = vrcp.pop %v2186
        %v2189 = vmul.f32 1.0, %v2188
        %v2190 = vrcp.pop %v2187
        %v2191 = vmul.f32 1.0, %v2190
        %v2192 = vmul.f32 %v2178, %v2189
        %v2193 = vmul.f32 %v2179, %v2191
        %2194 = vrot.lane.b32.xlu0 %v2192, 17
        %v2195 = vpop.permute.xlu0 %2194
        %2196 = vrot.lane.b32.xlu0 %v2193, 17
        %v2197 = vpop.permute.xlu0 %2196
        %v2198 = vsel %vm921, %v2195, %v2197
        %v2199 = vsel %vm921, %v2197, %v2195
        %v2200 = vld [vmem:[%s8] sm:$0xff]
        %v2201 = vmul.f32 %v930, %v2199
        %v2202 = vmul.f32 %v934, %v2198
        %2203 = vrot.lane.b32.xlu0 %v2192, 16
        %v2204 = vpop.permute.xlu0 %2203
        %2205 = vrot.lane.b32.xlu0 %v2193, 16
        %v2206 = vpop.permute.xlu0 %2205
        %v2207 = vsel %vm943, %v2204, %v2206
        %v2208 = vsel %vm943, %v2206, %v2204
        %s2209 = scalar_lea.vmem %s8, 8
        %v2210 = vld [vmem:[%s2209] sm:$0xff]
        %v2211 = vmul.f32 %v954, %v2208
        %v2212 = vmul.f32 %v958, %v2207
        %v2214 = vsel %vm1853, %v2210, 0
        %2216 = vmatprep.subr.mxu0 %v2212
        %2217 = vmatpush1.msra.mxu0 %v2211
        %2218 = vmatprep.subr.mxu0 0.0
        %2219 = vmatpush1.msra.mxu0 0.0
        %2220 = vmatprep.subr.mxu0 0.0
        %2221 = vmatpush1.msra.mxu0 0.0
        %2222 = vmatprep.subr.mxu0 0.0
        %2223 = vmatpush1.msra.mxu0 0.0
        %2224 = vmatprep.subr.mxu0 0.0
        %2225 = vmatpush1.msra.mxu0 0.0
        %2226 = vmatprep.subr.mxu0 0.0
        %2227 = vmatpush1.msra.mxu0 0.0
        %2228 = vmatprep.subr.mxu0 0.0
        %2229 = vmatpush1.msra.mxu0 0.0
        %2230 = vmatprep.subr.mxu0 0.0
        %2231 = vmatpush1.msra.mxu0 0.0
        %2232 = vmatprep.subr.mxu0 0.0
        %2233 = vmatpush1.msra.mxu0 0.0
        %2234 = vmatprep.subr.mxu0 0.0
        %2235 = vmatpush1.msra.mxu0 0.0
        %2236 = vmatprep.subr.mxu0 0.0
        %2237 = vmatpush1.msra.mxu0 0.0
        %2238 = vmatprep.subr.mxu0 0.0
        %2239 = vmatpush1.msra.mxu0 0.0
        %2240 = vmatprep.subr.mxu0 0.0
        %2241 = vmatpush1.msra.mxu0 0.0
        %2242 = vmatprep.subr.mxu0 0.0
        %2243 = vmatpush1.msra.mxu0 0.0
        %2244 = vmatprep.subr.mxu0 0.0
        %2245 = vmatpush1.msra.mxu0 0.0
        %2246 = vmatprep.subr.mxu0 0.0
        %2247 = vmatpush1.msra.mxu0 0.0
        %2248 = vmatprep.subr.mxu0 0.0
        %2249 = vmatpush1.msra.mxu0 0.0
        %2250 = vmatprep.subr.mxu0 0.0
        %2251 = vmatpush1.msra.mxu0 0.0
        %2252 = vmatprep.subr.mxu0 0.0
        %2253 = vmatpush1.msra.mxu0 0.0
        %2254 = vmatprep.subr.mxu0 0.0
        %2255 = vmatpush1.msra.mxu0 0.0
        %2256 = vmatprep.subr.mxu0 0.0
        %2257 = vmatpush1.msra.mxu0 0.0
        %2258 = vmatprep.subr.mxu0 0.0
        %2259 = vmatpush1.msra.mxu0 0.0
        %2260 = vmatprep.subr.mxu0 0.0
        %2261 = vmatpush1.msra.mxu0 0.0
        %2262 = vmatprep.subr.mxu0 0.0
        %2263 = vmatpush1.msra.mxu0 0.0
        %2264 = vmatprep.subr.mxu0 0.0
        %2265 = vmatpush1.msra.mxu0 0.0
        %2266 = vmatprep.subr.mxu0 0.0
        %2267 = vmatpush1.msra.mxu0 0.0
        %2268 = vmatprep.subr.mxu0 0.0
        %2269 = vmatpush1.msra.mxu0 0.0
        %2270 = vmatprep.subr.mxu0 0.0
        %2271 = vmatpush1.msra.mxu0 0.0
        %2272 = vmatprep.subr.mxu0 0.0
        %2273 = vmatpush1.msra.mxu0 0.0
        %2274 = vmatprep.subr.mxu0 0.0
        %2275 = vmatpush1.msra.mxu0 0.0
        %2276 = vmatprep.subr.mxu0 0.0
        %2277 = vmatpush1.msra.mxu0 0.0
        %2278 = vmatprep.subr.mxu0 0.0
        %2279 = vmatpush1.msra.mxu0 0.0
        %2280 = vmatprep.mubr.f32.mxu0 0.0
        %2281 = vmatmul.mubr.f32.gmra.mrb[0].mxu0 %v2214
        %v2282 = vpop.f32.mrb[0].mxu0
        %v2283 = vadd.f32 0.0, %v2282
        %v2284 = vpop.f32.mrb[0].mxu0
        %v2285 = vadd.f32 0.0, %v2284
        %2286 = vdwg.mxu0
        %v2288 = vsel %vm1853, %v2200, 0
        %2290 = vmatprep.subr.mxu0 %v2202
        %2291 = vmatpush1.msra.mxu0 %v2201
        %2292 = vmatprep.subr.mxu0 0.0
        %2293 = vmatpush1.msra.mxu0 0.0
        %2294 = vmatprep.subr.mxu0 0.0
        %2295 = vmatpush1.msra.mxu0 0.0
        %2296 = vmatprep.subr.mxu0 0.0
        %2297 = vmatpush1.msra.mxu0 0.0
        %2298 = vmatprep.subr.mxu0 0.0
        %2299 = vmatpush1.msra.mxu0 0.0
        %2300 = vmatprep.subr.mxu0 0.0
        %2301 = vmatpush1.msra.mxu0 0.0
        %2302 = vmatprep.subr.mxu0 0.0
        %2303 = vmatpush1.msra.mxu0 0.0
        %2304 = vmatprep.subr.mxu0 0.0
        %2305 = vmatpush1.msra.mxu0 0.0
        %2306 = vmatprep.subr.mxu0 0.0
        %2307 = vmatpush1.msra.mxu0 0.0
        %2308 = vmatprep.subr.mxu0 0.0
        %2309 = vmatpush1.msra.mxu0 0.0
        %2310 = vmatprep.subr.mxu0 0.0
        %2311 = vmatpush1.msra.mxu0 0.0
        %2312 = vmatprep.subr.mxu0 0.0
        %2313 = vmatpush1.msra.mxu0 0.0
        %2314 = vmatprep.subr.mxu0 0.0
        %2315 = vmatpush1.msra.mxu0 0.0
        %2316 = vmatprep.subr.mxu0 0.0
        %2317 = vmatpush1.msra.mxu0 0.0
        %2318 = vmatprep.subr.mxu0 0.0
        %2319 = vmatpush1.msra.mxu0 0.0
        %2320 = vmatprep.subr.mxu0 0.0
        %2321 = vmatpush1.msra.mxu0 0.0
        %2322 = vmatprep.subr.mxu0 0.0
        %2323 = vmatpush1.msra.mxu0 0.0
        %2324 = vmatprep.subr.mxu0 0.0
        %2325 = vmatpush1.msra.mxu0 0.0
        %2326 = vmatprep.subr.mxu0 0.0
        %2327 = vmatpush1.msra.mxu0 0.0
        %2328 = vmatprep.subr.mxu0 0.0
        %2329 = vmatpush1.msra.mxu0 0.0
        %2330 = vmatprep.subr.mxu0 0.0
        %2331 = vmatpush1.msra.mxu0 0.0
        %2332 = vmatprep.subr.mxu0 0.0
        %2333 = vmatpush1.msra.mxu0 0.0
        %2334 = vmatprep.subr.mxu0 0.0
        %2335 = vmatpush1.msra.mxu0 0.0
        %2336 = vmatprep.subr.mxu0 0.0
        %2337 = vmatpush1.msra.mxu0 0.0
        %2338 = vmatprep.subr.mxu0 0.0
        %2339 = vmatpush1.msra.mxu0 0.0
        %2340 = vmatprep.subr.mxu0 0.0
        %2341 = vmatpush1.msra.mxu0 0.0
        %2342 = vmatprep.subr.mxu0 0.0
        %2343 = vmatpush1.msra.mxu0 0.0
        %2344 = vmatprep.subr.mxu0 0.0
        %2345 = vmatpush1.msra.mxu0 0.0
        %2346 = vmatprep.subr.mxu0 0.0
        %2347 = vmatpush1.msra.mxu0 0.0
        %2348 = vmatprep.subr.mxu0 0.0
        %2349 = vmatpush1.msra.mxu0 0.0
        %2350 = vmatprep.subr.mxu0 0.0
        %2351 = vmatpush1.msra.mxu0 0.0
        %2352 = vmatprep.subr.mxu0 0.0
        %2353 = vmatpush1.msra.mxu0 0.0
        %2354 = vmatprep.mubr.f32.mxu0 0.0
        %2355 = vmatmul.mubr.f32.gmra.mrb[0].mxu0 %v2288
        %v2356 = vpop.f32.mrb[0].mxu0
        %v2357 = vadd.f32 %v2283, %v2356
        %v2358 = vpop.f32.mrb[0].mxu0
        %v2359 = vadd.f32 %v2285, %v2358
        %2360 = vdwg.mxu0
        %2361 = vrot.lane.b32.xlu0 %v2192, 15
        %v2362 = vpop.permute.xlu0 %2361
        %2363 = vrot.lane.b32.xlu0 %v2193, 15
        %v2364 = vpop.permute.xlu0 %2363
        %v2365 = vsel %vm1127, %v2362, %v2364
        %v2366 = vsel %vm1127, %v2364, %v2362
        %s2367 = scalar_lea.vmem %s8, 16
        %v2368 = vld [vmem:[%s2367] sm:$0xff]
        %v2369 = vmul.f32 %v1138, %v2366
        %v2370 = vmul.f32 %v1142, %v2365
        %v2372 = vsel %vm1853, %v2368, 0
        %2374 = vmatprep.subr.mxu0 %v2370
        %2375 = vmatpush1.msra.mxu0 %v2369
        %2376 = vmatprep.subr.mxu0 0.0
        %2377 = vmatpush1.msra.mxu0 0.0
        %2378 = vmatprep.subr.mxu0 0.0
        %2379 = vmatpush1.msra.mxu0 0.0
        %2380 = vmatprep.subr.mxu0 0.0
        %2381 = vmatpush1.msra.mxu0 0.0
        %2382 = vmatprep.subr.mxu0 0.0
        %2383 = vmatpush1.msra.mxu0 0.0
        %2384 = vmatprep.subr.mxu0 0.0
        %2385 = vmatpush1.msra.mxu0 0.0
        %2386 = vmatprep.subr.mxu0 0.0
        %2387 = vmatpush1.msra.mxu0 0.0
        %2388 = vmatprep.subr.mxu0 0.0
        %2389 = vmatpush1.msra.mxu0 0.0
        %2390 = vmatprep.subr.mxu0 0.0
        %2391 = vmatpush1.msra.mxu0 0.0
        %2392 = vmatprep.subr.mxu0 0.0
        %2393 = vmatpush1.msra.mxu0 0.0
        %2394 = vmatprep.subr.mxu0 0.0
        %2395 = vmatpush1.msra.mxu0 0.0
        %2396 = vmatprep.subr.mxu0 0.0
        %2397 = vmatpush1.msra.mxu0 0.0
        %2398 = vmatprep.subr.mxu0 0.0
        %2399 = vmatpush1.msra.mxu0 0.0
        %2400 = vmatprep.subr.mxu0 0.0
        %2401 = vmatpush1.msra.mxu0 0.0
        %2402 = vmatprep.subr.mxu0 0.0
        %2403 = vmatpush1.msra.mxu0 0.0
        %2404 = vmatprep.subr.mxu0 0.0
        %2405 = vmatpush1.msra.mxu0 0.0
        %2406 = vmatprep.subr.mxu0 0.0
        %2407 = vmatpush1.msra.mxu0 0.0
        %2408 = vmatprep.subr.mxu0 0.0
        %2409 = vmatpush1.msra.mxu0 0.0
        %2410 = vmatprep.subr.mxu0 0.0
        %2411 = vmatpush1.msra.mxu0 0.0
        %2412 = vmatprep.subr.mxu0 0.0
        %2413 = vmatpush1.msra.mxu0 0.0
        %2414 = vmatprep.subr.mxu0 0.0
        %2415 = vmatpush1.msra.mxu0 0.0
        %2416 = vmatprep.subr.mxu0 0.0
        %2417 = vmatpush1.msra.mxu0 0.0
        %2418 = vmatprep.subr.mxu0 0.0
        %2419 = vmatpush1.msra.mxu0 0.0
        %2420 = vmatprep.subr.mxu0 0.0
        %2421 = vmatpush1.msra.mxu0 0.0
        %2422 = vmatprep.subr.mxu0 0.0
        %2423 = vmatpush1.msra.mxu0 0.0
        %2424 = vmatprep.subr.mxu0 0.0
        %2425 = vmatpush1.msra.mxu0 0.0
        %2426 = vmatprep.subr.mxu0 0.0
        %2427 = vmatpush1.msra.mxu0 0.0
        %2428 = vmatprep.subr.mxu0 0.0
        %2429 = vmatpush1.msra.mxu0 0.0
        %2430 = vmatprep.subr.mxu0 0.0
        %2431 = vmatpush1.msra.mxu0 0.0
        %2432 = vmatprep.subr.mxu0 0.0
        %2433 = vmatpush1.msra.mxu0 0.0
        %2434 = vmatprep.subr.mxu0 0.0
        %2435 = vmatpush1.msra.mxu0 0.0
        %2436 = vmatprep.subr.mxu0 0.0
        %2437 = vmatpush1.msra.mxu0 0.0
        %2438 = vmatprep.mubr.f32.mxu0 0.0
        %2439 = vmatmul.mubr.f32.gmra.mrb[0].mxu0 %v2372
        %v2440 = vpop.f32.mrb[0].mxu0
        %v2441 = vadd.f32 0.0, %v2440
        %v2442 = vpop.f32.mrb[0].mxu0
        %v2443 = vadd.f32 0.0, %v2442
        %2444 = vdwg.mxu0
        %v2445 = vadd.f32 %v2357, %v2441
        %v2446 = vadd.f32 %v2359, %v2443
        %2447 = vrot.lane.b32.xlu0 %v2192, 1
        %v2448 = vpop.permute.xlu0 %2447
        %2449 = vrot.lane.b32.xlu0 %v2193, 1
        %v2450 = vpop.permute.xlu0 %2449
        %v2451 = vsel %vm1233, %v2448, %v2450
        %v2452 = vsel %vm1233, %v2450, %v2448
        %s2453 = scalar_lea.vmem %s8, 24
        %v2454 = vld [vmem:[%s2453] sm:$0xff]
        %v2455 = vmul.f32 %v1244, %v2452
        %v2456 = vmul.f32 %v1248, %v2451
        %v2458 = vsel %vm1853, %v2454, 0
        %2460 = vmatprep.subr.mxu0 %v2456
        %2461 = vmatpush1.msra.mxu0 %v2455
        %2462 = vmatprep.subr.mxu0 0.0
        %2463 = vmatpush1.msra.mxu0 0.0
        %2464 = vmatprep.subr.mxu0 0.0
        %2465 = vmatpush1.msra.mxu0 0.0
        %2466 = vmatprep.subr.mxu0 0.0
        %2467 = vmatpush1.msra.mxu0 0.0
        %2468 = vmatprep.subr.mxu0 0.0
        %2469 = vmatpush1.msra.mxu0 0.0
        %2470 = vmatprep.subr.mxu0 0.0
        %2471 = vmatpush1.msra.mxu0 0.0
        %2472 = vmatprep.subr.mxu0 0.0
        %2473 = vmatpush1.msra.mxu0 0.0
        %2474 = vmatprep.subr.mxu0 0.0
        %2475 = vmatpush1.msra.mxu0 0.0
        %2476 = vmatprep.subr.mxu0 0.0
        %2477 = vmatpush1.msra.mxu0 0.0
        %2478 = vmatprep.subr.mxu0 0.0
        %2479 = vmatpush1.msra.mxu0 0.0
        %2480 = vmatprep.subr.mxu0 0.0
        %2481 = vmatpush1.msra.mxu0 0.0
        %2482 = vmatprep.subr.mxu0 0.0
        %2483 = vmatpush1.msra.mxu0 0.0
        %2484 = vmatprep.subr.mxu0 0.0
        %2485 = vmatpush1.msra.mxu0 0.0
        %2486 = vmatprep.subr.mxu0 0.0
        %2487 = vmatpush1.msra.mxu0 0.0
        %2488 = vmatprep.subr.mxu0 0.0
        %2489 = vmatpush1.msra.mxu0 0.0
        %2490 = vmatprep.subr.mxu0 0.0
        %2491 = vmatpush1.msra.mxu0 0.0
        %2492 = vmatprep.subr.mxu0 0.0
        %2493 = vmatpush1.msra.mxu0 0.0
        %2494 = vmatprep.subr.mxu0 0.0
        %2495 = vmatpush1.msra.mxu0 0.0
        %2496 = vmatprep.subr.mxu0 0.0
        %2497 = vmatpush1.msra.mxu0 0.0
        %2498 = vmatprep.subr.mxu0 0.0
        %2499 = vmatpush1.msra.mxu0 0.0
        %2500 = vmatprep.subr.mxu0 0.0
        %2501 = vmatpush1.msra.mxu0 0.0
        %2502 = vmatprep.subr.mxu0 0.0
        %2503 = vmatpush1.msra.mxu0 0.0
        %2504 = vmatprep.subr.mxu0 0.0
        %2505 = vmatpush1.msra.mxu0 0.0
        %2506 = vmatprep.subr.mxu0 0.0
        %2507 = vmatpush1.msra.mxu0 0.0
        %2508 = vmatprep.subr.mxu0 0.0
        %2509 = vmatpush1.msra.mxu0 0.0
        %2510 = vmatprep.subr.mxu0 0.0
        %2511 = vmatpush1.msra.mxu0 0.0
        %2512 = vmatprep.subr.mxu0 0.0
        %2513 = vmatpush1.msra.mxu0 0.0
        %2514 = vmatprep.subr.mxu0 0.0
        %2515 = vmatpush1.msra.mxu0 0.0
        %2516 = vmatprep.subr.mxu0 0.0
        %2517 = vmatpush1.msra.mxu0 0.0
        %2518 = vmatprep.subr.mxu0 0.0
        %2519 = vmatpush1.msra.mxu0 0.0
        %2520 = vmatprep.subr.mxu0 0.0
        %2521 = vmatpush1.msra.mxu0 0.0
        %2522 = vmatprep.subr.mxu0 0.0
        %2523 = vmatpush1.msra.mxu0 0.0
        %2524 = vmatprep.mubr.f32.mxu0 0.0
        %2525 = vmatmul.mubr.f32.gmra.mrb[0].mxu0 %v2458
        %v2526 = vpop.f32.mrb[0].mxu0
        %v2527 = vadd.f32 0.0, %v2526
        %v2528 = vpop.f32.mrb[0].mxu0
        %v2529 = vadd.f32 0.0, %v2528
        %2530 = vdwg.mxu0
        %v2531 = vadd.f32 %v2445, %v2527
        %v2532 = vadd.f32 %v2446, %v2529
        %s2533 = scalar_lea.vmem %s8, 32
        %v2534 = vld [vmem:[%s2533] sm:$0xff]
        %v2536 = vsel %vm1853, %v2534, 0
        %2538 = vmatprep.subr.mxu0 %v2193
        %2539 = vmatpush1.msra.mxu0 %v2192
        %2540 = vmatprep.subr.mxu0 0.0
        %2541 = vmatpush1.msra.mxu0 0.0
        %2542 = vmatprep.subr.mxu0 0.0
        %2543 = vmatpush1.msra.mxu0 0.0
        %2544 = vmatprep.subr.mxu0 0.0
        %2545 = vmatpush1.msra.mxu0 0.0
        %2546 = vmatprep.subr.mxu0 0.0
        %2547 = vmatpush1.msra.mxu0 0.0
        %2548 = vmatprep.subr.mxu0 0.0
        %2549 = vmatpush1.msra.mxu0 0.0
        %2550 = vmatprep.subr.mxu0 0.0
        %2551 = vmatpush1.msra.mxu0 0.0
        %2552 = vmatprep.subr.mxu0 0.0
        %2553 = vmatpush1.msra.mxu0 0.0
        %2554 = vmatprep.subr.mxu0 0.0
        %2555 = vmatpush1.msra.mxu0 0.0
        %2556 = vmatprep.subr.mxu0 0.0
        %2557 = vmatpush1.msra.mxu0 0.0
        %2558 = vmatprep.subr.mxu0 0.0
        %2559 = vmatpush1.msra.mxu0 0.0
        %2560 = vmatprep.subr.mxu0 0.0
        %2561 = vmatpush1.msra.mxu0 0.0
        %2562 = vmatprep.subr.mxu0 0.0
        %2563 = vmatpush1.msra.mxu0 0.0
        %2564 = vmatprep.subr.mxu0 0.0
        %2565 = vmatpush1.msra.mxu0 0.0
        %2566 = vmatprep.subr.mxu0 0.0
        %2567 = vmatpush1.msra.mxu0 0.0
        %2568 = vmatprep.subr.mxu0 0.0
        %2569 = vmatpush1.msra.mxu0 0.0
        %2570 = vmatprep.subr.mxu0 0.0
        %2571 = vmatpush1.msra.mxu0 0.0
        %2572 = vmatprep.subr.mxu0 0.0
        %2573 = vmatpush1.msra.mxu0 0.0
        %2574 = vmatprep.subr.mxu0 0.0
        %2575 = vmatpush1.msra.mxu0 0.0
        %2576 = vmatprep.subr.mxu0 0.0
        %2577 = vmatpush1.msra.mxu0 0.0
        %2578 = vmatprep.subr.mxu0 0.0
        %2579 = vmatpush1.msra.mxu0 0.0
        %2580 = vmatprep.subr.mxu0 0.0
        %2581 = vmatpush1.msra.mxu0 0.0
        %2582 = vmatprep.subr.mxu0 0.0
        %2583 = vmatpush1.msra.mxu0 0.0
        %2584 = vmatprep.subr.mxu0 0.0
        %2585 = vmatpush1.msra.mxu0 0.0
        %2586 = vmatprep.subr.mxu0 0.0
        %2587 = vmatpush1.msra.mxu0 0.0
        %2588 = vmatprep.subr.mxu0 0.0
        %2589 = vmatpush1.msra.mxu0 0.0
        %2590 = vmatprep.subr.mxu0 0.0
        %2591 = vmatpush1.msra.mxu0 0.0
        %2592 = vmatprep.subr.mxu0 0.0
        %2593 = vmatpush1.msra.mxu0 0.0
        %2594 = vmatprep.subr.mxu0 0.0
        %2595 = vmatpush1.msra.mxu0 0.0
        %2596 = vmatprep.subr.mxu0 0.0
        %2597 = vmatpush1.msra.mxu0 0.0
        %2598 = vmatprep.subr.mxu0 0.0
        %2599 = vmatpush1.msra.mxu0 0.0
        %2600 = vmatprep.subr.mxu0 0.0
        %2601 = vmatpush1.msra.mxu0 0.0
        %2602 = vmatprep.mubr.f32.mxu0 0.0
        %2603 = vmatmul.mubr.f32.gmra.mrb[0].mxu0 %v2536
        %v2604 = vpop.f32.mrb[0].mxu0
        %v2605 = vadd.f32 0.0, %v2604
        %v2606 = vpop.f32.mrb[0].mxu0
        %v2607 = vadd.f32 0.0, %v2606
        %2608 = vdwg.mxu0
        %v2609 = vadd.f32 %v2531, %v2605
        %v2610 = vadd.f32 %v2532, %v2607
        %2611 = vrot.lane.b32.xlu0 %v2192, 127
        %v2612 = vpop.permute.xlu0 %2611
        %2613 = vrot.lane.b32.xlu0 %v2193, 127
        %v2614 = vpop.permute.xlu0 %2613
        %v2615 = vsel %vm1421, %v2612, %v2614
        %v2616 = vsel %vm1421, %v2614, %v2612
        %s2617 = scalar_lea.vmem %s8, 40
        %v2618 = vld [vmem:[%s2617] sm:$0xff]
        %v2619 = vmul.f32 %v1432, %v2615
        %v2620 = vmul.f32 %v1436, %v2616
        %v2622 = vsel %vm1853, %v2618, 0
        %2624 = vmatprep.subr.mxu0 %v2620
        %2625 = vmatpush1.msra.mxu0 %v2619
        %2626 = vmatprep.subr.mxu0 0.0
        %2627 = vmatpush1.msra.mxu0 0.0
        %2628 = vmatprep.subr.mxu0 0.0
        %2629 = vmatpush1.msra.mxu0 0.0
        %2630 = vmatprep.subr.mxu0 0.0
        %2631 = vmatpush1.msra.mxu0 0.0
        %2632 = vmatprep.subr.mxu0 0.0
        %2633 = vmatpush1.msra.mxu0 0.0
        %2634 = vmatprep.subr.mxu0 0.0
        %2635 = vmatpush1.msra.mxu0 0.0
        %2636 = vmatprep.subr.mxu0 0.0
        %2637 = vmatpush1.msra.mxu0 0.0
        %2638 = vmatprep.subr.mxu0 0.0
        %2639 = vmatpush1.msra.mxu0 0.0
        %2640 = vmatprep.subr.mxu0 0.0
        %2641 = vmatpush1.msra.mxu0 0.0
        %2642 = vmatprep.subr.mxu0 0.0
        %2643 = vmatpush1.msra.mxu0 0.0
        %2644 = vmatprep.subr.mxu0 0.0
        %2645 = vmatpush1.msra.mxu0 0.0
        %2646 = vmatprep.subr.mxu0 0.0
        %2647 = vmatpush1.msra.mxu0 0.0
        %2648 = vmatprep.subr.mxu0 0.0
        %2649 = vmatpush1.msra.mxu0 0.0
        %2650 = vmatprep.subr.mxu0 0.0
        %2651 = vmatpush1.msra.mxu0 0.0
        %2652 = vmatprep.subr.mxu0 0.0
        %2653 = vmatpush1.msra.mxu0 0.0
        %2654 = vmatprep.subr.mxu0 0.0
        %2655 = vmatpush1.msra.mxu0 0.0
        %2656 = vmatprep.subr.mxu0 0.0
        %2657 = vmatpush1.msra.mxu0 0.0
        %2658 = vmatprep.subr.mxu0 0.0
        %2659 = vmatpush1.msra.mxu0 0.0
        %2660 = vmatprep.subr.mxu0 0.0
        %2661 = vmatpush1.msra.mxu0 0.0
        %2662 = vmatprep.subr.mxu0 0.0
        %2663 = vmatpush1.msra.mxu0 0.0
        %2664 = vmatprep.subr.mxu0 0.0
        %2665 = vmatpush1.msra.mxu0 0.0
        %2666 = vmatprep.subr.mxu0 0.0
        %2667 = vmatpush1.msra.mxu0 0.0
        %2668 = vmatprep.subr.mxu0 0.0
        %2669 = vmatpush1.msra.mxu0 0.0
        %2670 = vmatprep.subr.mxu0 0.0
        %2671 = vmatpush1.msra.mxu0 0.0
        %2672 = vmatprep.subr.mxu0 0.0
        %2673 = vmatpush1.msra.mxu0 0.0
        %2674 = vmatprep.subr.mxu0 0.0
        %2675 = vmatpush1.msra.mxu0 0.0
        %2676 = vmatprep.subr.mxu0 0.0
        %2677 = vmatpush1.msra.mxu0 0.0
        %2678 = vmatprep.subr.mxu0 0.0
        %2679 = vmatpush1.msra.mxu0 0.0
        %2680 = vmatprep.subr.mxu0 0.0
        %2681 = vmatpush1.msra.mxu0 0.0
        %2682 = vmatprep.subr.mxu0 0.0
        %2683 = vmatpush1.msra.mxu0 0.0
        %2684 = vmatprep.subr.mxu0 0.0
        %2685 = vmatpush1.msra.mxu0 0.0
        %2686 = vmatprep.subr.mxu0 0.0
        %2687 = vmatpush1.msra.mxu0 0.0
        %2688 = vmatprep.mubr.f32.mxu0 0.0
        %2689 = vmatmul.mubr.f32.gmra.mrb[0].mxu0 %v2622
        %v2690 = vpop.f32.mrb[0].mxu0
        %v2691 = vadd.f32 0.0, %v2690
        %v2692 = vpop.f32.mrb[0].mxu0
        %v2693 = vadd.f32 0.0, %v2692
        %2694 = vdwg.mxu0
        %v2695 = vadd.f32 %v2609, %v2691
        %v2696 = vadd.f32 %v2610, %v2693
        %2697 = vrot.lane.b32.xlu0 %v2192, 113
        %v2698 = vpop.permute.xlu0 %2697
        %2699 = vrot.lane.b32.xlu0 %v2193, 113
        %v2700 = vpop.permute.xlu0 %2699
        %v2701 = vsel %vm1527, %v2698, %v2700
        %v2702 = vsel %vm1527, %v2700, %v2698
        %s2703 = scalar_lea.vmem %s8, 48
        %v2704 = vld [vmem:[%s2703] sm:$0xff]
        %v2705 = vmul.f32 %v1538, %v2701
        %v2706 = vmul.f32 %v1542, %v2702
        %v2708 = vsel %vm1853, %v2704, 0
        %2710 = vmatprep.subr.mxu0 %v2706
        %2711 = vmatpush1.msra.mxu0 %v2705
        %2712 = vmatprep.subr.mxu0 0.0
        %2713 = vmatpush1.msra.mxu0 0.0
        %2714 = vmatprep.subr.mxu0 0.0
        %2715 = vmatpush1.msra.mxu0 0.0
        %2716 = vmatprep.subr.mxu0 0.0
        %2717 = vmatpush1.msra.mxu0 0.0
        %2718 = vmatprep.subr.mxu0 0.0
        %2719 = vmatpush1.msra.mxu0 0.0
        %2720 = vmatprep.subr.mxu0 0.0
        %2721 = vmatpush1.msra.mxu0 0.0
        %2722 = vmatprep.subr.mxu0 0.0
        %2723 = vmatpush1.msra.mxu0 0.0
        %2724 = vmatprep.subr.mxu0 0.0
        %2725 = vmatpush1.msra.mxu0 0.0
        %2726 = vmatprep.subr.mxu0 0.0
        %2727 = vmatpush1.msra.mxu0 0.0
        %2728 = vmatprep.subr.mxu0 0.0
        %2729 = vmatpush1.msra.mxu0 0.0
        %2730 = vmatprep.subr.mxu0 0.0
        %2731 = vmatpush1.msra.mxu0 0.0
        %2732 = vmatprep.subr.mxu0 0.0
        %2733 = vmatpush1.msra.mxu0 0.0
        %2734 = vmatprep.subr.mxu0 0.0
        %2735 = vmatpush1.msra.mxu0 0.0
        %2736 = vmatprep.subr.mxu0 0.0
        %2737 = vmatpush1.msra.mxu0 0.0
        %2738 = vmatprep.subr.mxu0 0.0
        %2739 = vmatpush1.msra.mxu0 0.0
        %2740 = vmatprep.subr.mxu0 0.0
        %2741 = vmatpush1.msra.mxu0 0.0
        %2742 = vmatprep.subr.mxu0 0.0
        %2743 = vmatpush1.msra.mxu0 0.0
        %2744 = vmatprep.subr.mxu0 0.0
        %2745 = vmatpush1.msra.mxu0 0.0
        %2746 = vmatprep.subr.mxu0 0.0
        %2747 = vmatpush1.msra.mxu0 0.0
        %2748 = vmatprep.subr.mxu0 0.0
        %2749 = vmatpush1.msra.mxu0 0.0
        %2750 = vmatprep.subr.mxu0 0.0
        %2751 = vmatpush1.msra.mxu0 0.0
        %2752 = vmatprep.subr.mxu0 0.0
        %2753 = vmatpush1.msra.mxu0 0.0
        %2754 = vmatprep.subr.mxu0 0.0
        %2755 = vmatpush1.msra.mxu0 0.0
        %2756 = vmatprep.subr.mxu0 0.0
        %2757 = vmatpush1.msra.mxu0 0.0
        %2758 = vmatprep.subr.mxu0 0.0
        %2759 = vmatpush1.msra.mxu0 0.0
        %2760 = vmatprep.subr.mxu0 0.0
        %2761 = vmatpush1.msra.mxu0 0.0
        %2762 = vmatprep.subr.mxu0 0.0
        %2763 = vmatpush1.msra.mxu0 0.0
        %2764 = vmatprep.subr.mxu0 0.0
        %2765 = vmatpush1.msra.mxu0 0.0
        %2766 = vmatprep.subr.mxu0 0.0
        %2767 = vmatpush1.msra.mxu0 0.0
        %2768 = vmatprep.subr.mxu0 0.0
        %2769 = vmatpush1.msra.mxu0 0.0
        %2770 = vmatprep.subr.mxu0 0.0
        %2771 = vmatpush1.msra.mxu0 0.0
        %2772 = vmatprep.subr.mxu0 0.0
        %2773 = vmatpush1.msra.mxu0 0.0
        %2774 = vmatprep.mubr.f32.mxu0 0.0
        %2775 = vmatmul.mubr.f32.gmra.mrb[0].mxu0 %v2708
        %v2776 = vpop.f32.mrb[0].mxu0
        %v2777 = vadd.f32 0.0, %v2776
        %v2778 = vpop.f32.mrb[0].mxu0
        %v2779 = vadd.f32 0.0, %v2778
        %2780 = vdwg.mxu0
        %v2781 = vadd.f32 %v2695, %v2777
        %v2782 = vadd.f32 %v2696, %v2779
        %2783 = vrot.lane.b32.xlu0 %v2192, 112
        %v2784 = vpop.permute.xlu0 %2783
        %2785 = vrot.lane.b32.xlu0 %v2193, 112
        %v2786 = vpop.permute.xlu0 %2785
        %v2787 = vsel %vm1633, %v2784, %v2786
        %v2788 = vsel %vm1633, %v2786, %v2784
        %s2789 = scalar_lea.vmem %s8, 56
        %v2790 = vld [vmem:[%s2789] sm:$0xff]
        %v2791 = vmul.f32 %v1644, %v2787
        %v2792 = vmul.f32 %v1648, %v2788
        %v2794 = vsel %vm1853, %v2790, 0
        %2796 = vmatprep.subr.mxu0 %v2792
        %2797 = vmatpush1.msra.mxu0 %v2791
        %2798 = vmatprep.subr.mxu0 0.0
        %2799 = vmatpush1.msra.mxu0 0.0
        %2800 = vmatprep.subr.mxu0 0.0
        %2801 = vmatpush1.msra.mxu0 0.0
        %2802 = vmatprep.subr.mxu0 0.0
        %2803 = vmatpush1.msra.mxu0 0.0
        %2804 = vmatprep.subr.mxu0 0.0
        %2805 = vmatpush1.msra.mxu0 0.0
        %2806 = vmatprep.subr.mxu0 0.0
        %2807 = vmatpush1.msra.mxu0 0.0
        %2808 = vmatprep.subr.mxu0 0.0
        %2809 = vmatpush1.msra.mxu0 0.0
        %2810 = vmatprep.subr.mxu0 0.0
        %2811 = vmatpush1.msra.mxu0 0.0
        %2812 = vmatprep.subr.mxu0 0.0
        %2813 = vmatpush1.msra.mxu0 0.0
        %2814 = vmatprep.subr.mxu0 0.0
        %2815 = vmatpush1.msra.mxu0 0.0
        %2816 = vmatprep.subr.mxu0 0.0
        %2817 = vmatpush1.msra.mxu0 0.0
        %2818 = vmatprep.subr.mxu0 0.0
        %2819 = vmatpush1.msra.mxu0 0.0
        %2820 = vmatprep.subr.mxu0 0.0
        %2821 = vmatpush1.msra.mxu0 0.0
        %2822 = vmatprep.subr.mxu0 0.0
        %2823 = vmatpush1.msra.mxu0 0.0
        %2824 = vmatprep.subr.mxu0 0.0
        %2825 = vmatpush1.msra.mxu0 0.0
        %2826 = vmatprep.subr.mxu0 0.0
        %2827 = vmatpush1.msra.mxu0 0.0
        %2828 = vmatprep.subr.mxu0 0.0
        %2829 = vmatpush1.msra.mxu0 0.0
        %2830 = vmatprep.subr.mxu0 0.0
        %2831 = vmatpush1.msra.mxu0 0.0
        %2832 = vmatprep.subr.mxu0 0.0
        %2833 = vmatpush1.msra.mxu0 0.0
        %2834 = vmatprep.subr.mxu0 0.0
        %2835 = vmatpush1.msra.mxu0 0.0
        %2836 = vmatprep.subr.mxu0 0.0
        %2837 = vmatpush1.msra.mxu0 0.0
        %2838 = vmatprep.subr.mxu0 0.0
        %2839 = vmatpush1.msra.mxu0 0.0
        %2840 = vmatprep.subr.mxu0 0.0
        %2841 = vmatpush1.msra.mxu0 0.0
        %2842 = vmatprep.subr.mxu0 0.0
        %2843 = vmatpush1.msra.mxu0 0.0
        %2844 = vmatprep.subr.mxu0 0.0
        %2845 = vmatpush1.msra.mxu0 0.0
        %2846 = vmatprep.subr.mxu0 0.0
        %2847 = vmatpush1.msra.mxu0 0.0
        %2848 = vmatprep.subr.mxu0 0.0
        %2849 = vmatpush1.msra.mxu0 0.0
        %2850 = vmatprep.subr.mxu0 0.0
        %2851 = vmatpush1.msra.mxu0 0.0
        %2852 = vmatprep.subr.mxu0 0.0
        %2853 = vmatpush1.msra.mxu0 0.0
        %2854 = vmatprep.subr.mxu0 0.0
        %2855 = vmatpush1.msra.mxu0 0.0
        %2856 = vmatprep.subr.mxu0 0.0
        %2857 = vmatpush1.msra.mxu0 0.0
        %2858 = vmatprep.subr.mxu0 0.0
        %2859 = vmatpush1.msra.mxu0 0.0
        %2860 = vmatprep.mubr.f32.mxu0 0.0
        %2861 = vmatmul.mubr.f32.gmra.mrb[0].mxu0 %v2794
        %v2862 = vpop.f32.mrb[0].mxu0
        %v2863 = vadd.f32 0.0, %v2862
        %v2864 = vpop.f32.mrb[0].mxu0
        %v2865 = vadd.f32 0.0, %v2864
        %2866 = vdwg.mxu0
        %v2867 = vadd.f32 %v2781, %v2863
        %v2868 = vadd.f32 %v2782, %v2865
        %2869 = vrot.lane.b32.xlu0 %v2192, 111
        %v2870 = vpop.permute.xlu0 %2869
        %2871 = vrot.lane.b32.xlu0 %v2193, 111
        %v2872 = vpop.permute.xlu0 %2871
        %v2873 = vsel %vm1739, %v2870, %v2872
        %v2874 = vsel %vm1739, %v2872, %v2870
        %s2875 = scalar_lea.vmem %s8, 64
        %v2876 = vld [vmem:[%s2875] sm:$0xff]
        %v2877 = vmul.f32 %v1750, %v2873
        %v2878 = vmul.f32 %v1754, %v2874
        %v2880 = vsel %vm1853, %v2876, 0
        %2882 = vmatprep.subr.mxu0 %v2878
        %2883 = vmatpush1.msra.mxu0 %v2877
        %2884 = vmatprep.subr.mxu0 0.0
        %2885 = vmatpush1.msra.mxu0 0.0
        %2886 = vmatprep.subr.mxu0 0.0
        %2887 = vmatpush1.msra.mxu0 0.0
        %2888 = vmatprep.subr.mxu0 0.0
        %2889 = vmatpush1.msra.mxu0 0.0
        %2890 = vmatprep.subr.mxu0 0.0
        %2891 = vmatpush1.msra.mxu0 0.0
        %2892 = vmatprep.subr.mxu0 0.0
        %2893 = vmatpush1.msra.mxu0 0.0
        %2894 = vmatprep.subr.mxu0 0.0
        %2895 = vmatpush1.msra.mxu0 0.0
        %2896 = vmatprep.subr.mxu0 0.0
        %2897 = vmatpush1.msra.mxu0 0.0
        %2898 = vmatprep.subr.mxu0 0.0
        %2899 = vmatpush1.msra.mxu0 0.0
        %2900 = vmatprep.subr.mxu0 0.0
        %2901 = vmatpush1.msra.mxu0 0.0
        %2902 = vmatprep.subr.mxu0 0.0
        %2903 = vmatpush1.msra.mxu0 0.0
        %2904 = vmatprep.subr.mxu0 0.0
        %2905 = vmatpush1.msra.mxu0 0.0
        %2906 = vmatprep.subr.mxu0 0.0
        %2907 = vmatpush1.msra.mxu0 0.0
        %2908 = vmatprep.subr.mxu0 0.0
        %2909 = vmatpush1.msra.mxu0 0.0
        %2910 = vmatprep.subr.mxu0 0.0
        %2911 = vmatpush1.msra.mxu0 0.0
        %2912 = vmatprep.subr.mxu0 0.0
        %2913 = vmatpush1.msra.mxu0 0.0
        %2914 = vmatprep.subr.mxu0 0.0
        %2915 = vmatpush1.msra.mxu0 0.0
        %2916 = vmatprep.subr.mxu0 0.0
        %2917 = vmatpush1.msra.mxu0 0.0
        %2918 = vmatprep.subr.mxu0 0.0
        %2919 = vmatpush1.msra.mxu0 0.0
        %2920 = vmatprep.subr.mxu0 0.0
        %2921 = vmatpush1.msra.mxu0 0.0
        %2922 = vmatprep.subr.mxu0 0.0
        %2923 = vmatpush1.msra.mxu0 0.0
        %2924 = vmatprep.subr.mxu0 0.0
        %2925 = vmatpush1.msra.mxu0 0.0
        %2926 = vmatprep.subr.mxu0 0.0
        %2927 = vmatpush1.msra.mxu0 0.0
        %2928 = vmatprep.subr.mxu0 0.0
        %2929 = vmatpush1.msra.mxu0 0.0
        %2930 = vmatprep.subr.mxu0 0.0
        %2931 = vmatpush1.msra.mxu0 0.0
        %2932 = vmatprep.subr.mxu0 0.0
        %2933 = vmatpush1.msra.mxu0 0.0
        %2934 = vmatprep.subr.mxu0 0.0
        %2935 = vmatpush1.msra.mxu0 0.0
        %2936 = vmatprep.subr.mxu0 0.0
        %2937 = vmatpush1.msra.mxu0 0.0
        %2938 = vmatprep.subr.mxu0 0.0
        %2939 = vmatpush1.msra.mxu0 0.0
        %2940 = vmatprep.subr.mxu0 0.0
        %2941 = vmatpush1.msra.mxu0 0.0
        %2942 = vmatprep.subr.mxu0 0.0
        %2943 = vmatpush1.msra.mxu0 0.0
        %2944 = vmatprep.subr.mxu0 0.0
        %2945 = vmatpush1.msra.mxu0 0.0
        %2946 = vmatprep.mubr.f32.mxu0 0.0
        %2947 = vmatmul.mubr.f32.gmra.mrb[0].mxu0 %v2880
        %v2948 = vpop.f32.mrb[0].mxu0
        %v2949 = vadd.f32 0.0, %v2948
        %v2950 = vpop.f32.mrb[0].mxu0
        %v2951 = vadd.f32 0.0, %v2950
        %2952 = vdwg.mxu0
        %v2953 = vadd.f32 %v2867, %v2949
        %v2954 = vadd.f32 %v2868, %v2951
        %v2955 = vld [vmem:[%s9] sm:$0xff]
        %2957 = vset.pattern.permute.xlu0 0
        %2958 = vperm.xlu0 %2957, %v2955
        %v2959 = vpop.permute.xlu0 %2958
        %v2961 = vadd.f32 %v2953, %v2959
        %v2962 = vadd.f32 %v2954, %v2959
        %v2963 = vld [vmem:[%s14] sm:$0xff]
        %v2964 = vld [vmem:[%s15] sm:$0xff]
        %2966 = vset.pattern.permute.xlu0 0
        %2967 = vperm.xlu0 %2966, %v2964
        %v2968 = vpop.permute.xlu0 %2967
        %v2971 = vsel %vm548, %v2963, 0
        %v2973 = vsel %vm541, %v537, 0
        %v2975 = vsel %vm541, %v539, 0
        %2977 = vmatprep.subr.mxu0 %v2975
        %2978 = vmatpush1.msra.mxu0 %v2973
        %2979 = vmatprep.subr.mxu0 0.0
        %2980 = vmatpush1.msra.mxu0 0.0
        %2981 = vmatprep.subr.mxu0 0.0
        %2982 = vmatpush1.msra.mxu0 0.0
        %2983 = vmatprep.subr.mxu0 0.0
        %2984 = vmatpush1.msra.mxu0 0.0
        %2985 = vmatprep.subr.mxu0 0.0
        %2986 = vmatpush1.msra.mxu0 0.0
        %2987 = vmatprep.subr.mxu0 0.0
        %2988 = vmatpush1.msra.mxu0 0.0
        %2989 = vmatprep.subr.mxu0 0.0
        %2990 = vmatpush1.msra.mxu0 0.0
        %2991 = vmatprep.subr.mxu0 0.0
        %2992 = vmatpush1.msra.mxu0 0.0
        %2993 = vmatprep.subr.mxu0 0.0
        %2994 = vmatpush1.msra.mxu0 0.0
        %2995 = vmatprep.subr.mxu0 0.0
        %2996 = vmatpush1.msra.mxu0 0.0
        %2997 = vmatprep.subr.mxu0 0.0
        %2998 = vmatpush1.msra.mxu0 0.0
        %2999 = vmatprep.subr.mxu0 0.0
        %3000 = vmatpush1.msra.mxu0 0.0
        %3001 = vmatprep.subr.mxu0 0.0
        %3002 = vmatpush1.msra.mxu0 0.0
        %3003 = vmatprep.subr.mxu0 0.0
        %3004 = vmatpush1.msra.mxu0 0.0
        %3005 = vmatprep.subr.mxu0 0.0
        %3006 = vmatpush1.msra.mxu0 0.0
        %3007 = vmatprep.subr.mxu0 0.0
        %3008 = vmatpush1.msra.mxu0 0.0
        %3009 = vmatprep.subr.mxu0 0.0
        %3010 = vmatpush1.msra.mxu0 0.0
        %3011 = vmatprep.subr.mxu0 0.0
        %3012 = vmatpush1.msra.mxu0 0.0
        %3013 = vmatprep.subr.mxu0 0.0
        %3014 = vmatpush1.msra.mxu0 0.0
        %3015 = vmatprep.subr.mxu0 0.0
        %3016 = vmatpush1.msra.mxu0 0.0
        %3017 = vmatprep.subr.mxu0 0.0
        %3018 = vmatpush1.msra.mxu0 0.0
        %3019 = vmatprep.subr.mxu0 0.0
        %3020 = vmatpush1.msra.mxu0 0.0
        %3021 = vmatprep.subr.mxu0 0.0
        %3022 = vmatpush1.msra.mxu0 0.0
        %3023 = vmatprep.subr.mxu0 0.0
        %3024 = vmatpush1.msra.mxu0 0.0
        %3025 = vmatprep.subr.mxu0 0.0
        %3026 = vmatpush1.msra.mxu0 0.0
        %3027 = vmatprep.subr.mxu0 0.0
        %3028 = vmatpush1.msra.mxu0 0.0
        %3029 = vmatprep.subr.mxu0 0.0
        %3030 = vmatpush1.msra.mxu0 0.0
        %3031 = vmatprep.subr.mxu0 0.0
        %3032 = vmatpush1.msra.mxu0 0.0
        %3033 = vmatprep.subr.mxu0 0.0
        %3034 = vmatpush1.msra.mxu0 0.0
        %3035 = vmatprep.subr.mxu0 0.0
        %3036 = vmatpush1.msra.mxu0 0.0
        %3037 = vmatprep.subr.mxu0 0.0
        %3038 = vmatpush1.msra.mxu0 0.0
        %3039 = vmatprep.subr.mxu0 0.0
        %3040 = vmatpush1.msra.mxu0 0.0
        %3041 = vmatprep.mubr.f32.mxu0 0.0
        %3042 = vmatmul.mubr.f32.gmra.mrb[0].mxu0 %v2971
        %v3043 = vpop.f32.mrb[0].mxu0
        %v3044 = vadd.f32 %v2968, %v3043
        %v3045 = vpop.f32.mrb[0].mxu0
        %v3046 = vadd.f32 %v2968, %v3045
        %3047 = vdwg.mxu0
        %v3048 = vadd.f32 %v2961, %v3044
        %v3049 = vadd.f32 %v2962, %v3046
        %3050 = vst [vmem:[%s527] sm:$0xff] %v3048
        %3051 = vst [vmem:[%s527 + $0x8] sm:$0xff] %v3049
        %s3052 = sand.u32 %s384, 1
        %s3053 = scalar_lea.sflag [#allocation3], %s3052
        %s3054 = sand.u32 %s384, 1
        %s3055 = smul.addr %s3054, 16
        %s3056 = scalar_lea.vmem [#allocation2], %s3055
        // Predicated region
        $region85: #{tpu_custom_call.1} parent=83 // pred_check
          %p3057 = pneg %p394
        $region86: #{tpu_custom_call.1} parent=83 // pred_check_branch
          %3059 = sbr.rel (%p3057) target = $region88
        $region87: #{tpu_custom_call.1} parent=83 // pred_region
          %s3061 = ssub.s32 256, 256
          %3062 = vsyncadd %s3053, %s3061
          %s3063 = smul.addr %s30, 2
          %s3064 = smul.addr %s3063, 128
          %s3065 = scalar_lea.hbm %s16, %s3064
          %s3067 = sshll.u32 %s3056, 4
          %s3068 = int_to_ptr.vmem [resolvable:$true] %s3067
          %3070 = dma.vmem_to_hbm [thread:$0]  %s3068, 256, %s3065, %s3053
        $region88: #{tpu_custom_call.1} parent=83 // pred_fallthru
          _
      $region84: #{tpu_custom_call.1} parent=5 // pred_fallthru
        _
      %p3071 = scmp.le.s32.totalorder 2, %s25
      // Predicated region
      $region89: #{tpu_custom_call.1} parent=5 // pred_check
        %p3072 = pneg %p3071
      $region90: #{tpu_custom_call.1} parent=5 // pred_check_branch
        %3074 = sbr.rel (%p3072) target = $region92
      $region91: #{tpu_custom_call.1} parent=5 // pred_region
        %s3075 = ssub.s32 %s25, 2
        // Predicated region
        $region93: #{tpu_custom_call.1} parent=91 // pred_check
          %p3076 = pneg %p400
        $region94: #{tpu_custom_call.1} parent=91 // pred_check_branch
          %3078 = sbr.rel (%p3076) target = $region96
        $region95: #{tpu_custom_call.1} parent=91 // pred_region
          %s3079 = sand.u32 %s385, 1
          %s3080 = scalar_lea.sflag [#allocation3], %s3079
          %s3081 = sand.u32 %s385, 1
          %s3082 = smul.addr %s3081, 16
          %s3083 = scalar_lea.vmem [#allocation2], %s3082
          %3084 = dma.done %s3080, 256
        $region96: #{tpu_custom_call.1} parent=91 // pred_fallthru
          _
      $region92: #{tpu_custom_call.1} parent=5 // pred_fallthru
        _
    $region6: #{tpu_custom_call.1} parent=1 // loop_footer
      %s29 = sadd.s32 1, %s25
    $region7: #{tpu_custom_call.1} parent=1 // loop_footer_branch
      %24 = sbr.rel target = $region3
    $region8: #{tpu_custom_call.1} parent=1 // loop_exit
      _
    %3085 = vsyncpa [#allocation3], 1
    %s3086 = scalar_lea.sflag [#allocation3], 1
    %3087 = vsyncpa %s3086, 1

</llo_original>
